<compile_context>
chip_gen: v7x
topology: tpu7x:2x2x1
jax: 0.10.0
libtpu: 0.0.40
codegen_flags: <defaults>
</compile_context>

<pallas_src>
import functools
import math

import jax
import jax.numpy as jnp
from jax import lax
from jax.experimental import pallas as pl
from jax.experimental.pallas import tpu as pltpu


def _vmem_capacity_bytes():
    try:
        info = pltpu.get_tpu_info()
        return int(getattr(info, "vmem_capacity_bytes", 64 * 1024 * 1024))
    except Exception:
        return 64 * 1024 * 1024


_VMEM_CAP = _vmem_capacity_bytes()
_VMEM_LIMIT = int(min(int(_VMEM_CAP * 0.85), 100 * 1024 * 1024))


def _pick_tile(dim, ideal, align):
    """Largest tile <= ideal that is a multiple of `align` and evenly divides `dim`.
    Falls back to the full dimension (block == array extent is always legal)."""
    if dim <= ideal:
        return dim
    t = (min(ideal, dim) // align) * align
    while t >= align:
        if dim % t == 0:
            return t
        t -= align
    return dim


# ------------------- fused RMSNorm + per-head QKV projection + RoPE -------------------
def _qkv_rope_kernel(x_ref, rmsw_ref, wq_ref, wk_ref, wv_ref, bq_ref, bk_ref, bv_ref,
                     cos_ref, sin_ref, q_ref, k_ref, v_ref, *, eps, head_dim):
    x = x_ref[0].astype(jnp.float32)                                  # (ts, D)
    var = jnp.mean(x * x, axis=-1, keepdims=True)
    nx = (rmsw_ref[...] * x * lax.rsqrt(var + eps)).astype(jnp.bfloat16)   # bf16 MXU operand

    q = jnp.dot(nx, wq_ref[0], preferred_element_type=jnp.float32) + bq_ref[0]
    k = jnp.dot(nx, wk_ref[0], preferred_element_type=jnp.float32) + bk_ref[0]
    v = jnp.dot(nx, wv_ref[0], preferred_element_type=jnp.float32) + bv_ref[0]

    cos = cos_ref[...]                                                # (ts, hd)
    sin_s = sin_ref[...]                                              # sign folded in
    half = head_dim // 2

    def swap_halves(t):
        if head_dim >= 128:                                           # XLU lane-roll (free slot)
            return pltpu.roll(t, shift=half, axis=-1)
        t1 = t[:, :half]
        t2 = t[:, half:]
        return jnp.concatenate([t2, t1], axis=-1)

    q = q * cos + swap_halves(q) * sin_s                              # rotate-half RoPE
    k = k * cos + swap_halves(k) * sin_s

    q_ref[0, 0] = q.astype(q_ref.dtype)
    k_ref[0, 0] = k.astype(k_ref.dtype)
    v_ref[0, 0] = v.astype(v_ref.dtype)


def qkv_rope(x, layer, cos, sin_signed, n_heads, eps=1e-5):
    B, S, D = x.shape
    hd = D // n_heads
    ts = _pick_tile(S, 256, 8)
    grid = (B, n_heads, S // ts)
    qkv_shape = jax.ShapeDtypeStruct((B, n_heads, S, hd), jnp.bfloat16)

    return pl.pallas_call(
        functools.partial(_qkv_rope_kernel, eps=eps, head_dim=hd),
        out_shape=(qkv_shape, qkv_shape, qkv_shape),
        grid=grid,
        in_specs=[
            pl.BlockSpec((1, ts, D), lambda b, h, si: (b, si, 0)),    # x row tile
            pl.BlockSpec((1, D), lambda b, h, si: (0, 0)),            # rms1 weight
            pl.BlockSpec((1, D, hd), lambda b, h, si: (h, 0, 0)),     # wq (per head)
            pl.BlockSpec((1, D, hd), lambda b, h, si: (h, 0, 0)),     # wk
            pl.BlockSpec((1, D, hd), lambda b, h, si: (h, 0, 0)),     # wv
            pl.BlockSpec((1, 1, hd), lambda b, h, si: (h, 0, 0)),     # bq
            pl.BlockSpec((1, 1, hd), lambda b, h, si: (h, 0, 0)),     # bk
            pl.BlockSpec((1, 1, hd), lambda b, h, si: (h, 0, 0)),     # bv
            pl.BlockSpec((ts, hd), lambda b, h, si: (si, 0)),         # cos
            pl.BlockSpec((ts, hd), lambda b, h, si: (si, 0)),         # signed sin
        ],
        out_specs=(
            pl.BlockSpec((1, 1, ts, hd), lambda b, h, si: (b, h, si, 0)),
            pl.BlockSpec((1, 1, ts, hd), lambda b, h, si: (b, h, si, 0)),
            pl.BlockSpec((1, 1, ts, hd), lambda b, h, si: (b, h, si, 0)),
        ),
        compiler_params=pltpu.CompilerParams(
            dimension_semantics=("parallel", "parallel", "parallel"),
            vmem_limit_bytes=_VMEM_LIMIT),
    )(x, layer["rms1_w"], layer["wq"], layer["wk"], layer["wv"],
      layer["bq"], layer["bk"], layer["bv"], cos, sin_signed)


# --------- flash attention (online softmax, causal tile skip) + out-proj + residual ---------
def _flash_kernel(x_ref, q_ref, k_ref, v_ref, wo_ref, bo_ref, o_ref,
                  m_ref, l_ref, pv_ref, oacc_ref, *, scale, tq, tkv):
    qi = pl.program_id(1)
    h = pl.program_id(2)
    kv = pl.program_id(3)
    nh = pl.num_programs(2)
    nkv = pl.num_programs(3)

    @pl.when((h == 0) & (kv == 0))
    def _init_out():
        # residual + output-projection bias, added once per (batch, q-tile)
        oacc_ref[...] = x_ref[0].astype(jnp.float32) + bo_ref[...]

    @pl.when(kv == 0)
    def _init_head():
        m_ref[...] = jnp.full_like(m_ref, -jnp.inf)
        l_ref[...] = jnp.zeros_like(l_ref)
        pv_ref[...] = jnp.zeros_like(pv_ref)

    # skip KV tiles entirely above the causal diagonal (half the MXU work)
    needed = kv * tkv <= qi * tq + (tq - 1)

    @pl.when(needed)
    def _compute():
        q = q_ref[0, 0]                                               # (tq, hd) bf16
        k = k_ref[0, 0]                                               # (tkv, hd) bf16
        v = v_ref[0, 0]
        s = lax.dot_general(q, k, (((1,), (1,)), ((), ())),
                            preferred_element_type=jnp.float32) * scale
        row = qi * tq + lax.broadcasted_iota(jnp.int32, (tq, tkv), 0)
        col = kv * tkv + lax.broadcasted_iota(jnp.int32, (tq, tkv), 1)
        s = jnp.where(col <= row, s, -jnp.inf)                        # causal mask (1 - triu)

        m_new = jnp.maximum(m_ref[...], jnp.max(s, axis=-1, keepdims=True))
        alpha = jnp.exp(m_ref[...] - m_new)
        p = jnp.exp(s - m_new)
        l_ref[...] = alpha * l_ref[...] + jnp.sum(p, axis=-1, keepdims=True)
        pv_ref[...] = alpha * pv_ref[...] + jnp.dot(
            p.astype(jnp.bfloat16), v, preferred_element_type=jnp.float32)
        m_ref[...] = m_new

    @pl.when(kv == nkv - 1)
    def _finish_head():
        attn = pv_ref[...] * pl.reciprocal(l_ref[...], approx=True)   # (tq, hd) f32
        # head axis acts as the reduction of the output projection
        oacc_ref[...] += jnp.dot(attn.astype(jnp.bfloat16), wo_ref[0],
                                 preferred_element_type=jnp.float32)

    @pl.when((h == nh - 1) & (kv == nkv - 1))
    def _finalize():
        o_ref[0] = oacc_ref[...].astype(o_ref.dtype)


def flash_attention_out(x, q, k, v, layer):
    B, S, D = x.shape
    H, hd = q.shape[1], q.shape[3]
    tq = _pick_tile(S, 256, 8)
    tkv = _pick_tile(S, 256, 128)
    grid = (B, S // tq, H, S // tkv)

    return pl.pallas_call(
        functools.partial(_flash_kernel, scale=1.0 / math.sqrt(hd), tq=tq, tkv=tkv),
        out_shape=jax.ShapeDtypeStruct((B, S, D), x.dtype),
        grid=grid,
        in_specs=[
            pl.BlockSpec((1, tq, D), lambda b, qi, h, kv: (b, qi, 0)),        # residual x
            pl.BlockSpec((1, 1, tq, hd), lambda b, qi, h, kv: (b, h, qi, 0)),  # q
            pl.BlockSpec((1, 1, tkv, hd), lambda b, qi, h, kv: (b, h, kv, 0)), # k
            pl.BlockSpec((1, 1, tkv, hd), lambda b, qi, h, kv: (b, h, kv, 0)), # v
            pl.BlockSpec((1, hd, D), lambda b, qi, h, kv: (h, 0, 0)),          # wo (per head)
            pl.BlockSpec((1, D), lambda b, qi, h, kv: (0, 0)),                 # bo
        ],
        out_specs=pl.BlockSpec((1, tq, D), lambda b, qi, h, kv: (b, qi, 0)),
        scratch_shapes=[pltpu.VMEM((tq, 1), jnp.float32),    # running max m
                        pltpu.VMEM((tq, 1), jnp.float32),    # running denom l
                        pltpu.VMEM((tq, hd), jnp.float32),   # running p@v
                        pltpu.VMEM((tq, D), jnp.float32)],   # out acc: x + bo + sum_h o_h @ wo_h
        compiler_params=pltpu.CompilerParams(
            dimension_semantics=("parallel", "parallel", "arbitrary", "arbitrary"),
            vmem_limit_bytes=_VMEM_LIMIT),
    )(x, q, k, v, layer["wo"], layer["bo"])


# ------------------- fused RMSNorm + SwiGLU FFN + residual -------------------
def _ffn_kernel(x_ref, rmsw_ref, w1_ref, b1_ref, w3_ref, b3_ref, w2_ref, b2_ref,
                o_ref, acc_ref, nx_ref, *, eps):
    j = pl.program_id(1)

    @pl.when(j == 0)
    def _init():
        x = x_ref[...].astype(jnp.float32)
        var = jnp.mean(x * x, axis=-1, keepdims=True)
        nx_ref[...] = (rmsw_ref[...] * x * lax.rsqrt(var + eps)).astype(nx_ref.dtype)
        acc_ref[...] = x + b2_ref[...]                                # residual + w2 bias

    nx = nx_ref[...]                                                  # (tr, D) bf16, cached
    h1 = jnp.dot(nx, w1_ref[...], preferred_element_type=jnp.float32) + b1_ref[...]
    h3 = jnp.dot(nx, w3_ref[...], preferred_element_type=jnp.float32) + b3_ref[...]
    gate = h1 * pl.reciprocal(1.0 + jnp.exp(-h1), approx=True)        # SiLU via EUP reciprocal
    acc_ref[...] += jnp.dot((gate * h3).astype(jnp.bfloat16), w2_ref[...],
                            preferred_element_type=jnp.float32)

    @pl.when(j == pl.num_programs(1) - 1)
    def _finalize():
        o_ref[...] = acc_ref[...].astype(o_ref.dtype)


def swiglu_ffn(x2d, layer, eps=1e-5):
    R, D = x2d.shape
    Hf = layer["w1"].shape[1]
    tr = _pick_tile(R, 512, 8)                                        # large: amortizes weight streaming
    th_ideal = 512 if _VMEM_CAP >= (96 << 20) else 256                # 256 on 64 MiB v7x VMEM
    th = _pick_tile(Hf, th_ideal, 128)
    grid = (R // tr, Hf // th)

    return pl.pallas_call(
        functools.partial(_ffn_kernel, eps=eps),
        out_shape=jax.ShapeDtypeStruct((R, D), x2d.dtype),
        grid=grid,
        in_specs=[
            pl.BlockSpec((tr, D), lambda i, j: (i, 0)),               # x row tile
            pl.BlockSpec((1, D), lambda i, j: (0, 0)),                # rms2 weight
            pl.BlockSpec((D, th), lambda i, j: (0, j)),               # w1 (bf16)
            pl.BlockSpec((1, th), lambda i, j: (0, j)),               # b1
            pl.BlockSpec((D, th), lambda i, j: (0, j)),               # w3 (bf16)
            pl.BlockSpec((1, th), lambda i, j: (0, j)),               # b3
            pl.BlockSpec((th, D), lambda i, j: (j, 0)),               # w2 (bf16)
            pl.BlockSpec((1, D), lambda i, j: (0, 0)),                # b2
        ],
        out_specs=pl.BlockSpec((tr, D), lambda i, j: (i, 0)),
        scratch_shapes=[pltpu.VMEM((tr, D), jnp.float32),             # f32 accumulator
                        pltpu.VMEM((tr, D), jnp.bfloat16)],           # cached rms-normed tile
        compiler_params=pltpu.CompilerParams(
            dimension_semantics=("parallel", "arbitrary"),
            vmem_limit_bytes=_VMEM_LIMIT),
    )(x2d, layer["rms2_w"], layer["w1"], layer["b1"], layer["w3"], layer["b3"],
      layer["w2"], layer["b2"])


# ------------------- tiled dense (LM head) matmul -------------------
def _dense_kernel(x_ref, w_ref, b_ref, o_ref, acc_ref):
    k = pl.program_id(2)

    @pl.when(k == 0)
    def _init():
        acc_ref[...] = jnp.zeros_like(acc_ref)

    acc_ref[...] += jnp.dot(x_ref[...].astype(jnp.bfloat16), w_ref[...],
                            preferred_element_type=jnp.float32)

    @pl.when(k == pl.num_programs(2) - 1)
    def _finalize():
        o_ref[...] = (acc_ref[...] + b_ref[...]).astype(o_ref.dtype)


def dense(x2d, w, b):
    R, D = x2d.shape
    V = w.shape[1]
    tm = _pick_tile(R, 256, 8)
    tn = _pick_tile(V, 1024, 128)                                     # lane-dense vocab tiles
    tk = _pick_tile(D, 512, 128)
    grid = (R // tm, V // tn, D // tk)

    w_spec = pl.BlockSpec((tk, tn), lambda i, j, k: (k, j))
    if D // tk >= 3:                                                  # deeper weight pipeline
        w_spec = pl.BlockSpec((tk, tn), lambda i, j, k: (k, j), pipeline_mode=pl.Buffered(3))

    return pl.pallas_call(
        _dense_kernel,
        out_shape=jax.ShapeDtypeStruct((R, V), x2d.dtype),
        grid=grid,
        in_specs=[pl.BlockSpec((tm, tk), lambda i, j, k: (i, k)),
                  w_spec,
                  pl.BlockSpec((1, tn), lambda i, j, k: (0, j))],
        out_specs=pl.BlockSpec((tm, tn), lambda i, j, k: (i, j)),
        scratch_shapes=[pltpu.VMEM((tm, tn), jnp.float32)],
        compiler_params=pltpu.CompilerParams(
            dimension_semantics=("parallel", "parallel", "arbitrary"),
            vmem_limit_bytes=_VMEM_LIMIT),
    )(x2d, w, b)


# ------------------- model (parameters + forward) -------------------
def _linear_params(key, d_in, d_out, scale=0.02):
    kw, kb = jax.random.split(key)
    w = scale * jax.random.normal(kw, (d_in, d_out), jnp.float32)
    b = scale * jax.random.normal(kb, (d_out,), jnp.float32)
    return w, b


def init_llama_params(key, config):
    V, D, L = config["vocab_size"], config["dim"], config["n_layers"]
    mult, ffn_mult = config["multiple_of"], config["ffn_dim_multiplier"]
    H = config["n_heads"]
    hd = D // H
    Hf = int(ffn_mult * 8 * D // 3)
    Hf = mult * ((Hf + mult - 1) // mult)

    keys = jax.random.split(key, 2 + L)
    wd, bd = _linear_params(keys[1], D, V)
    params = {
        "embedding": 0.02 * jax.random.normal(keys[0], (V, D), jnp.float32),
        "dense": (wd.astype(jnp.bfloat16), bd.reshape(1, V)),
        "layers": [],
    }
    for i in range(L):
        lk = jax.random.split(keys[2 + i], 7)
        wq, bq = _linear_params(lk[0], D, D)
        wk, bk = _linear_params(lk[1], D, D)
        wv, bv = _linear_params(lk[2], D, D)
        wo, bo = _linear_params(lk[3], D, D)
        w1, b1 = _linear_params(lk[4], D, Hf)
        w3, b3 = _linear_params(lk[5], D, Hf)
        w2, b2 = _linear_params(lk[6], Hf, D)
        # head-major bf16 weight layout fixed once at init (no per-forward transposes)
        layer = {
            "rms1_w": jnp.ones((1, D), jnp.float32),
            "rms2_w": jnp.ones((1, D), jnp.float32),
            "wq": wq.reshape(D, H, hd).transpose(1, 0, 2).astype(jnp.bfloat16),
            "wk": wk.reshape(D, H, hd).transpose(1, 0, 2).astype(jnp.bfloat16),
            "wv": wv.reshape(D, H, hd).transpose(1, 0, 2).astype(jnp.bfloat16),
            "wo": wo.reshape(H, hd, D).astype(jnp.bfloat16),
            "bq": bq.reshape(H, 1, hd),
            "bk": bk.reshape(H, 1, hd),
            "bv": bv.reshape(H, 1, hd),
            "bo": bo.reshape(1, D),
            "w1": w1.astype(jnp.bfloat16), "b1": b1.reshape(1, Hf),
            "w3": w3.astype(jnp.bfloat16), "b3": b3.reshape(1, Hf),
            "w2": w2.astype(jnp.bfloat16), "b2": b2.reshape(1, D),
        }
        params["layers"].append(layer)
    return params


def _rope_tables(seq_len, head_dim, base=10000.0):
    inv_freq = 1.0 / (base ** (jnp.arange(0, head_dim, 2, dtype=jnp.float32) / head_dim))
    pos = jnp.arange(seq_len, dtype=jnp.float32)
    freqs = pos[:, None] * inv_freq[None, :]                          # (S, head_dim/2)
    cos = jnp.cos(jnp.concatenate([freqs, freqs], axis=-1))           # (S, head_dim)
    sinf = jnp.sin(freqs)
    # rotate_half(t) * sin  ==  swap_halves(t) * sin_signed  (sign folded into the table)
    sin_signed = jnp.concatenate([-sinf, sinf], axis=-1)
    return cos, sin_signed


def llama_forward(params, tokens, config):
    B, S = tokens.shape
    D = config["dim"]
    n_heads = config["n_heads"]
    head_dim = D // n_heads

    x = jnp.take(params["embedding"], tokens, axis=0)                 # (B, S, D) embedding gather (glue)
    cos, sin_signed = _rope_tables(S, head_dim)

    for layer in params["layers"]:
        # fused: rms1 -> per-head QKV projection + RoPE
        q, k, v = qkv_rope(x, layer, cos, sin_signed, n_heads)
        # flash attention (online softmax, causal tile skip) + out-proj + residual
        x = flash_attention_out(x, q, k, v, layer)
        # fused: rms2 -> SwiGLU FFN -> +residual
        x = swiglu_ffn(x.reshape(B * S, D), layer).reshape(B, S, D)

    w_d, b_d = params["dense"]
    logits = dense(x.reshape(B * S, D), w_d, b_d)
    return logits.reshape(B, S, -1)


# ----------------------------------- main -----------------------------------
if __name__ == "__main__":
    config = {
        "vocab_size": 64,
        "dim": 32,
        "n_layers": 2,
        "multiple_of": 32,
        "ffn_dim_multiplier": 1.3,
        "n_heads": 4,
    }
    key = jax.random.PRNGKey(0)
    pkey, tkey = jax.random.split(key)

    params = init_llama_params(pkey, config)
    tokens = jax.random.randint(tkey, (2, 8), 0, config["vocab_size"], dtype=jnp.int32)

    fwd = jax.jit(functools.partial(llama_forward, config=config))
    out = jax.block_until_ready(fwd(params, tokens))

    assert out.shape == (2, 8, config["vocab_size"])
    assert bool(jnp.all(jnp.isfinite(out)))
    print("KERNEL_OK")
</pallas_src>

<mosaic_0001>
module attributes {stable_mosaic.version = 11 : i64} {
  func.func @_flash_kernel(%arg0: i32, %arg1: i32, %arg2: i32, %arg3: i32, %arg4: memref<1x8x32xf32, #tpu.memory_space<vmem>>, %arg5: memref<1x1x8x8xbf16, #tpu.memory_space<vmem>>, %arg6: memref<1x1x8x8xbf16, #tpu.memory_space<vmem>>, %arg7: memref<1x1x8x8xbf16, #tpu.memory_space<vmem>>, %arg8: memref<1x8x32xbf16, #tpu.memory_space<vmem>>, %arg9: memref<1x32xf32, #tpu.memory_space<vmem>>, %arg10: memref<1x8x32xf32, #tpu.memory_space<vmem>>, %arg11: memref<8x1xf32, #tpu.memory_space<vmem>>, %arg12: memref<8x1xf32, #tpu.memory_space<vmem>>, %arg13: memref<8x8xf32, #tpu.memory_space<vmem>>, %arg14: memref<8x32xf32, #tpu.memory_space<vmem>>) attributes {dimension_semantics = [#tpu.dimension_semantics<parallel>, #tpu.dimension_semantics<parallel>, #tpu.dimension_semantics<arbitrary>, #tpu.dimension_semantics<arbitrary>], iteration_bounds = array<i64: 2, 1, 4, 1>, scalar_prefetch = 0 : i64, scratch_operands = 4 : i64, tpu.core_type = #tpu.core_type<tc>, window_params = [{transform_indices = @transform_0, window_bounds = array<i64: 1, 8, 32>}, {transform_indices = @transform_1, window_bounds = array<i64: 1, 1, 8, 8>}, {transform_indices = @transform_2, window_bounds = array<i64: 1, 1, 8, 8>}, {transform_indices = @transform_3, window_bounds = array<i64: 1, 1, 8, 8>}, {transform_indices = @transform_4, window_bounds = array<i64: 1, 8, 32>}, {pipeline_mode = #tpu.pipeline_mode<synchronous>, transform_indices = @transform_5, window_bounds = array<i64: 1, 32>}, {transform_indices = @transform_6, window_bounds = array<i64: 1, 8, 32>}]} {
    %c0_i32 = arith.constant 0 : i32
    %0 = arith.cmpi eq, %arg2, %c0_i32 : i32
    %c0_i32_0 = arith.constant 0 : i32
    %1 = arith.cmpi eq, %arg3, %c0_i32_0 : i32
    %2 = arith.andi %0, %1 : i1
    %3 = arith.extui %2 : i1 to i32
    %c0_i32_1 = arith.constant 0 : i32
    %4 = arith.cmpi ne, %3, %c0_i32_1 : i32
    scf.if %4 {
      %c0 = arith.constant 0 : index
      %c0_10 = arith.constant 0 : index
      %c0_11 = arith.constant 0 : index
      %22 = vector.load %arg4[%c0, %c0_10, %c0_11] : memref<1x8x32xf32, #tpu.memory_space<vmem>>, vector<1x8x32xf32>
      %23 = vector.shape_cast %22 : vector<1x8x32xf32> to vector<8x32xf32>
      %c0_12 = arith.constant 0 : index
      %c0_13 = arith.constant 0 : index
      %24 = vector.load %arg9[%c0_12, %c0_13] : memref<1x32xf32, #tpu.memory_space<vmem>>, vector<1x32xf32>
      %25 = vector.broadcast %24 : vector<1x32xf32> to vector<8x32xf32>
      %26 = arith.addf %23, %25 : vector<8x32xf32>
      %c0_14 = arith.constant 0 : index
      %c0_15 = arith.constant 0 : index
      %27 = vector.load %arg14[%c0_14, %c0_15] : memref<8x32xf32, #tpu.memory_space<vmem>>, vector<8x32xf32>
      tpu.vector_store %arg14[%c0_14, %c0_15], %26 {strides = array<i32>} : memref<8x32xf32, #tpu.memory_space<vmem>>, vector<8x32xf32>,
    } else {
    }
    %c0_i32_2 = arith.constant 0 : i32
    %5 = arith.cmpi eq, %arg3, %c0_i32_2 : i32
    %6 = arith.extui %5 : i1 to i32
    %c0_i32_3 = arith.constant 0 : i32
    %7 = arith.cmpi ne, %6, %c0_i32_3 : i32
    scf.if %7 {
      %cst = arith.constant 0xFF800000 : f32
      %22 = vector.broadcast %cst : f32 to vector<8x1xf32>
      %c0 = arith.constant 0 : index
      %c0_10 = arith.constant 0 : index
      %23 = vector.load %arg11[%c0, %c0_10] : memref<8x1xf32, #tpu.memory_space<vmem>>, vector<8x1xf32>
      tpu.vector_store %arg11[%c0, %c0_10], %22 {strides = array<i32>} : memref<8x1xf32, #tpu.memory_space<vmem>>, vector<8x1xf32>,
      %cst_11 = arith.constant 0.000000e+00 : f32
      %24 = vector.broadcast %cst_11 : f32 to vector<8x1xf32>
      %c0_12 = arith.constant 0 : index
      %c0_13 = arith.constant 0 : index
      %25 = vector.load %arg12[%c0_12, %c0_13] : memref<8x1xf32, #tpu.memory_space<vmem>>, vector<8x1xf32>
      tpu.vector_store %arg12[%c0_12, %c0_13], %24 {strides = array<i32>} : memref<8x1xf32, #tpu.memory_space<vmem>>, vector<8x1xf32>,
      %cst_14 = arith.constant 0.000000e+00 : f32
      %26 = vector.broadcast %cst_14 : f32 to vector<8x8xf32>
      %c0_15 = arith.constant 0 : index
      %c0_16 = arith.constant 0 : index
      %27 = vector.load %arg13[%c0_15, %c0_16] : memref<8x8xf32, #tpu.memory_space<vmem>>, vector<8x8xf32>
      tpu.vector_store %arg13[%c0_15, %c0_16], %26 {strides = array<i32>} : memref<8x8xf32, #tpu.memory_space<vmem>>, vector<8x8xf32>,
    } else {
    }
    %c8_i32 = arith.constant 8 : i32
    %8 = arith.muli %arg3, %c8_i32 : i32
    %c8_i32_4 = arith.constant 8 : i32
    %9 = arith.muli %arg1, %c8_i32_4 : i32
    %c7_i32 = arith.constant 7 : i32
    %10 = arith.addi %9, %c7_i32 : i32
    %11 = arith.cmpi sle, %8, %10 : i32
    %12 = arith.extui %11 : i1 to i32
    %c0_i32_5 = arith.constant 0 : i32
    %13 = arith.cmpi ne, %12, %c0_i32_5 : i32
    scf.if %13 {
      %c0 = arith.constant 0 : index
      %c0_10 = arith.constant 0 : index
      %c0_11 = arith.constant 0 : index
      %c0_12 = arith.constant 0 : index
      %22 = vector.load %arg5[%c0, %c0_10, %c0_11, %c0_12] : memref<1x1x8x8xbf16, #tpu.memory_space<vmem>>, vector<1x1x8x8xbf16>
      %23 = vector.shape_cast %22 : vector<1x1x8x8xbf16> to vector<8x8xbf16>
      %c0_13 = arith.constant 0 : index
      %c0_14 = arith.constant 0 : index
      %c0_15 = arith.constant 0 : index
      %c0_16 = arith.constant 0 : index
      %24 = vector.load %arg6[%c0_13, %c0_14, %c0_15, %c0_16] : memref<1x1x8x8xbf16, #tpu.memory_space<vmem>>, vector<1x1x8x8xbf16>
      %25 = vector.shape_cast %24 : vector<1x1x8x8xbf16> to vector<8x8xbf16>
      %c0_17 = arith.constant 0 : index
      %c0_18 = arith.constant 0 : index
      %c0_19 = arith.constant 0 : index
      %c0_20 = arith.constant 0 : index
      %26 = vector.load %arg7[%c0_17, %c0_18, %c0_19, %c0_20] : memref<1x1x8x8xbf16, #tpu.memory_space<vmem>>, vector<1x1x8x8xbf16>
      %27 = vector.shape_cast %26 : vector<1x1x8x8xbf16> to vector<8x8xbf16>
      %cst = arith.constant dense<0.000000e+00> : vector<8x8xf32>
      %28 = tpu.matmul %23, %25, %cst {dimension_numbers = #tpu.dot_dimension_numbers<[1], [1], [0], [0], [0, 0, 1, 0], [], []>} : vector<8x8xbf16>, vector<8x8xbf16>, vector<8x8xf32> -> vector<8x8xf32>
      %cst_21 = arith.constant 0.353553385 : f32
      %29 = vector.broadcast %cst_21 : f32 to vector<8x8xf32>
      %30 = arith.mulf %28, %29 : vector<8x8xf32>
      %c8_i32_22 = arith.constant 8 : i32
      %31 = arith.muli %arg1, %c8_i32_22 : i32
      %32 = tpu.iota {dimensions = array<i32: 0>} : vector<8x8xi32>
      %33 = vector.broadcast %31 : i32 to vector<8x8xi32>
      %34 = arith.addi %33, %32 : vector<8x8xi32>
      %c8_i32_23 = arith.constant 8 : i32
      %35 = arith.muli %arg3, %c8_i32_23 : i32
      %36 = tpu.iota {dimensions = array<i32: 1>} : vector<8x8xi32>
      %37 = vector.broadcast %35 : i32 to vector<8x8xi32>
      %38 = arith.addi %37, %36 : vector<8x8xi32>
      %39 = arith.cmpi sle, %38, %34 : vector<8x8xi32>
      %cst_24 = arith.constant 0xFF800000 : f32
      %40 = vector.broadcast %cst_24 : f32 to vector<8x8xf32>
      %41 = arith.select %39, %30, %40 : vector<8x8xi1>, vector<8x8xf32>
      %c0_25 = arith.constant 0 : index
      %c0_26 = arith.constant 0 : index
      %42 = vector.load %arg11[%c0_25, %c0_26] : memref<8x1xf32, #tpu.memory_space<vmem>>, vector<8x1xf32>
      %cst_27 = arith.constant dense<0xFF800000> : vector<8xf32>
      %43 = vector.multi_reduction <maximumf>, %41, %cst_27 [1] : vector<8x8xf32> to vector<8xf32>
      %44 = vector.shape_cast %43 : vector<8xf32> to vector<8x1xf32>
      %45 = arith.maximumf %42, %44 : vector<8x1xf32>
      %c0_28 = arith.constant 0 : index
      %c0_29 = arith.constant 0 : index
      %46 = vector.load %arg11[%c0_28, %c0_29] : memref<8x1xf32, #tpu.memory_space<vmem>>, vector<8x1xf32>
      %47 = arith.subf %46, %45 : vector<8x1xf32>
      %48 = math.exp %47 : vector<8x1xf32>
      %49 = vector.broadcast %45 : vector<8x1xf32> to vector<8x8xf32>
      %50 = arith.subf %41, %49 : vector<8x8xf32>
      %51 = math.exp %50 : vector<8x8xf32>
      %c0_30 = arith.constant 0 : index
      %c0_31 = arith.constant 0 : index
      %52 = vector.load %arg12[%c0_30, %c0_31] : memref<8x1xf32, #tpu.memory_space<vmem>>, vector<8x1xf32>
      %53 = arith.mulf %48, %52 : vector<8x1xf32>
      %cst_32 = arith.constant dense<0.000000e+00> : vector<8xf32>
      %54 = vector.multi_reduction <add>, %51, %cst_32 [1] : vector<8x8xf32> to vector<8xf32>
      %55 = vector.shape_cast %54 : vector<8xf32> to vector<8x1xf32>
      %56 = arith.addf %53, %55 : vector<8x1xf32>
      %c0_33 = arith.constant 0 : index
      %c0_34 = arith.constant 0 : index
      %57 = vector.load %arg12[%c0_33, %c0_34] : memref<8x1xf32, #tpu.memory_space<vmem>>, vector<8x1xf32>
      tpu.vector_store %arg12[%c0_33, %c0_34], %56 {strides = array<i32>} : memref<8x1xf32, #tpu.memory_space<vmem>>, vector<8x1xf32>,
      %c0_35 = arith.constant 0 : index
      %c0_36 = arith.constant 0 : index
      %58 = vector.load %arg13[%c0_35, %c0_36] : memref<8x8xf32, #tpu.memory_space<vmem>>, vector<8x8xf32>
      %59 = vector.broadcast %48 : vector<8x1xf32> to vector<8x8xf32>
      %60 = arith.mulf %59, %58 : vector<8x8xf32>
      %61 = arith.truncf %51 : vector<8x8xf32> to vector<8x8xbf16>
      %cst_37 = arith.constant dense<0.000000e+00> : vector<8x8xf32>
      %62 = tpu.matmul %61, %27, %cst_37 {dimension_numbers = #tpu.dot_dimension_numbers<[1], [0], [0], [1], [0, 0, 1, 1], [], []>} : vector<8x8xbf16>, vector<8x8xbf16>, vector<8x8xf32> -> vector<8x8xf32>
      %63 = arith.addf %60, %62 : vector<8x8xf32>
      %c0_38 = arith.constant 0 : index
      %c0_39 = arith.constant 0 : index
      %64 = vector.load %arg13[%c0_38, %c0_39] : memref<8x8xf32, #tpu.memory_space<vmem>>, vector<8x8xf32>
      tpu.vector_store %arg13[%c0_38, %c0_39], %63 {strides = array<i32>} : memref<8x8xf32, #tpu.memory_space<vmem>>, vector<8x8xf32>,
      %c0_40 = arith.constant 0 : index
      %c0_41 = arith.constant 0 : index
      %65 = vector.load %arg11[%c0_40, %c0_41] : memref<8x1xf32, #tpu.memory_space<vmem>>, vector<8x1xf32>
      tpu.vector_store %arg11[%c0_40, %c0_41], %45 {strides = array<i32>} : memref<8x1xf32, #tpu.memory_space<vmem>>, vector<8x1xf32>,
    } else {
    }
    %c0_i32_6 = arith.constant 0 : i32
    %14 = arith.cmpi eq, %arg3, %c0_i32_6 : i32
    %15 = arith.extui %14 : i1 to i32
    %c0_i32_7 = arith.constant 0 : i32
    %16 = arith.cmpi ne, %15, %c0_i32_7 : i32
    scf.if %16 {
      %c0 = arith.constant 0 : index
      %c0_10 = arith.constant 0 : index
      %22 = vector.load %arg13[%c0, %c0_10] : memref<8x8xf32, #tpu.memory_space<vmem>>, vector<8x8xf32>
      %c0_11 = arith.constant 0 : index
      %c0_12 = arith.constant 0 : index
      %23 = vector.load %arg12[%c0_11, %c0_12] : memref<8x1xf32, #tpu.memory_space<vmem>>, vector<8x1xf32>
      %24 = tpu.reciprocal %23 {approx = true} : vector<8x1xf32> -> vector<8x1xf32>
      %25 = vector.broadcast %24 : vector<8x1xf32> to vector<8x8xf32>
      %26 = arith.mulf %22, %25 : vector<8x8xf32>
      %c0_13 = arith.constant 0 : index
      %c0_14 = arith.constant 0 : index
      %27 = vector.load %arg14[%c0_13, %c0_14] : memref<8x32xf32, #tpu.memory_space<vmem>>, vector<8x32xf32>
      %28 = arith.truncf %26 : vector<8x8xf32> to vector<8x8xbf16>
      %c0_15 = arith.constant 0 : index
      %c0_16 = arith.constant 0 : index
      %c0_17 = arith.constant 0 : index
      %29 = vector.load %arg8[%c0_15, %c0_16, %c0_17] : memref<1x8x32xbf16, #tpu.memory_space<vmem>>, vector<1x8x32xbf16>
      %30 = vector.shape_cast %29 : vector<1x8x32xbf16> to vector<8x32xbf16>
      %cst = arith.constant dense<0.000000e+00> : vector<8x32xf32>
      %31 = tpu.matmul %28, %30, %cst {dimension_numbers = #tpu.dot_dimension_numbers<[1], [0], [0], [1], [0, 0, 1, 1], [], []>} : vector<8x8xbf16>, vector<8x32xbf16>, vector<8x32xf32> -> vector<8x32xf32>
      %32 = arith.addf %27, %31 : vector<8x32xf32>
      %c0_18 = arith.constant 0 : index
      %c0_19 = arith.constant 0 : index
      %33 = vector.load %arg14[%c0_18, %c0_19] : memref<8x32xf32, #tpu.memory_space<vmem>>, vector<8x32xf32>
      tpu.vector_store %arg14[%c0_18, %c0_19], %32 {strides = array<i32>} : memref<8x32xf32, #tpu.memory_space<vmem>>, vector<8x32xf32>,
    } else {
    }
    %c3_i32 = arith.constant 3 : i32
    %17 = arith.cmpi eq, %arg2, %c3_i32 : i32
    %c0_i32_8 = arith.constant 0 : i32
    %18 = arith.cmpi eq, %arg3, %c0_i32_8 : i32
    %19 = arith.andi %17, %18 : i1
    %20 = arith.extui %19 : i1 to i32
    %c0_i32_9 = arith.constant 0 : i32
    %21 = arith.cmpi ne, %20, %c0_i32_9 : i32
    scf.if %21 {
      %c0 = arith.constant 0 : index
      %c0_10 = arith.constant 0 : index
      %22 = vector.load %arg14[%c0, %c0_10] : memref<8x32xf32, #tpu.memory_space<vmem>>, vector<8x32xf32>
      %c0_11 = arith.constant 0 : index
      %c0_12 = arith.constant 0 : index
      %c0_13 = arith.constant 0 : index
      %23 = vector.load %arg10[%c0_11, %c0_12, %c0_13] : memref<1x8x32xf32, #tpu.memory_space<vmem>>, vector<1x8x32xf32>
      %24 = vector.shape_cast %23 : vector<1x8x32xf32> to vector<8x32xf32>
      %25 = vector.shape_cast %22 : vector<8x32xf32> to vector<1x8x32xf32>
      tpu.vector_store %arg10[%c0_11, %c0_12, %c0_13], %25 {strides = array<i32>} : memref<1x8x32xf32, #tpu.memory_space<vmem>>, vector<1x8x32xf32>,
    } else {
    }
    return
  }
  func.func @transform_0(%arg0: i32, %arg1: i32, %arg2: i32, %arg3: i32) -> (i32, i32, i32) {
    %c0_i32 = arith.constant 0 : i32
    %c0_i32_0 = arith.constant 0 : i32
    return %arg0, %arg1, %c0_i32 : i32, i32, i32
  }
  func.func @transform_1(%arg0: i32, %arg1: i32, %arg2: i32, %arg3: i32) -> (i32, i32, i32, i32) {
    %c0_i32 = arith.constant 0 : i32
    %c0_i32_0 = arith.constant 0 : i32
    return %arg0, %arg2, %arg1, %c0_i32 : i32, i32, i32, i32
  }
  func.func @transform_2(%arg0: i32, %arg1: i32, %arg2: i32, %arg3: i32) -> (i32, i32, i32, i32) {
    %c0_i32 = arith.constant 0 : i32
    %c0_i32_0 = arith.constant 0 : i32
    return %arg0, %arg2, %arg3, %c0_i32 : i32, i32, i32, i32
  }
  func.func @transform_3(%arg0: i32, %arg1: i32, %arg2: i32, %arg3: i32) -> (i32, i32, i32, i32) {
    %c0_i32 = arith.constant 0 : i32
    %c0_i32_0 = arith.constant 0 : i32
    return %arg0, %arg2, %arg3, %c0_i32 : i32, i32, i32, i32
  }
  func.func @transform_4(%arg0: i32, %arg1: i32, %arg2: i32, %arg3: i32) -> (i32, i32, i32) {
    %c0_i32 = arith.constant 0 : i32
    %c0_i32_0 = arith.constant 0 : i32
    %c0_i32_1 = arith.constant 0 : i32
    return %arg2, %c0_i32, %c0_i32_0 : i32, i32, i32
  }
  func.func @transform_5(%arg0: i32, %arg1: i32, %arg2: i32, %arg3: i32) -> (i32, i32) {
    %c0_i32 = arith.constant 0 : i32
    %c0_i32_0 = arith.constant 0 : i32
    %c0_i32_1 = arith.constant 0 : i32
    return %c0_i32, %c0_i32_0 : i32, i32
  }
  func.func @transform_6(%arg0: i32, %arg1: i32, %arg2: i32, %arg3: i32) -> (i32, i32, i32) {
    %c0_i32 = arith.constant 0 : i32
    %c0_i32_0 = arith.constant 0 : i32
    return %arg0, %arg1, %c0_i32 : i32, i32, i32
  }
}

module attributes {stable_mosaic.version = 11 : i64} {
  func.func @_dense_kernel(%arg0: i32, %arg1: i32, %arg2: i32, %arg3: memref<16x32xf32, #tpu.memory_space<vmem>>, %arg4: memref<32x64xbf16, #tpu.memory_space<vmem>>, %arg5: memref<1x64xf32, #tpu.memory_space<vmem>>, %arg6: memref<16x64xf32, #tpu.memory_space<vmem>>, %arg7: memref<16x64xf32, #tpu.memory_space<vmem>>) attributes {dimension_semantics = [#tpu.dimension_semantics<parallel>, #tpu.dimension_semantics<parallel>, #tpu.dimension_semantics<arbitrary>], iteration_bounds = array<i64: 1, 1, 1>, scalar_prefetch = 0 : i64, scratch_operands = 1 : i64, tpu.core_type = #tpu.core_type<tc>, window_params = [{transform_indices = @transform_0, window_bounds = array<i64: 16, 32>}, {transform_indices = @transform_1, window_bounds = array<i64: 32, 64>}, {transform_indices = @transform_2, window_bounds = array<i64: 1, 64>}, {transform_indices = @transform_3, window_bounds = array<i64: 16, 64>}]} {
    %c0_i32 = arith.constant 0 : i32
    %0 = arith.cmpi eq, %arg2, %c0_i32 : i32
    %1 = arith.extui %0 : i1 to i32
    %c0_i32_0 = arith.constant 0 : i32
    %2 = arith.cmpi ne, %1, %c0_i32_0 : i32
    scf.if %2 {
      %cst_10 = arith.constant 0.000000e+00 : f32
      %13 = vector.broadcast %cst_10 : f32 to vector<16x64xf32>
      %c0_11 = arith.constant 0 : index
      %c0_12 = arith.constant 0 : index
      %14 = vector.load %arg7[%c0_11, %c0_12] : memref<16x64xf32, #tpu.memory_space<vmem>>, vector<16x64xf32>
      tpu.vector_store %arg7[%c0_11, %c0_12], %13 {strides = array<i32>} : memref<16x64xf32, #tpu.memory_space<vmem>>, vector<16x64xf32>,
    } else {
    }
    %c0 = arith.constant 0 : index
    %c0_1 = arith.constant 0 : index
    %3 = vector.load %arg7[%c0, %c0_1] : memref<16x64xf32, #tpu.memory_space<vmem>>, vector<16x64xf32>
    %c0_2 = arith.constant 0 : index
    %c0_3 = arith.constant 0 : index
    %4 = vector.load %arg3[%c0_2, %c0_3] : memref<16x32xf32, #tpu.memory_space<vmem>>, vector<16x32xf32>
    %5 = arith.truncf %4 : vector<16x32xf32> to vector<16x32xbf16>
    %c0_4 = arith.constant 0 : index
    %c0_5 = arith.constant 0 : index
    %6 = vector.load %arg4[%c0_4, %c0_5] : memref<32x64xbf16, #tpu.memory_space<vmem>>, vector<32x64xbf16>
    %cst = arith.constant dense<0.000000e+00> : vector<16x64xf32>
    %7 = tpu.matmul %5, %6, %cst {dimension_numbers = #tpu.dot_dimension_numbers<[1], [0], [0], [1], [0, 0, 1, 1], [], []>} : vector<16x32xbf16>, vector<32x64xbf16>, vector<16x64xf32> -> vector<16x64xf32>
    %8 = arith.addf %3, %7 : vector<16x64xf32>
    %c0_6 = arith.constant 0 : index
    %c0_7 = arith.constant 0 : index
    %9 = vector.load %arg7[%c0_6, %c0_7] : memref<16x64xf32, #tpu.memory_space<vmem>>, vector<16x64xf32>
    tpu.vector_store %arg7[%c0_6, %c0_7], %8 {strides = array<i32>} : memref<16x64xf32, #tpu.memory_space<vmem>>, vector<16x64xf32>,
    %c0_i32_8 = arith.constant 0 : i32
    %10 = arith.cmpi eq, %arg2, %c0_i32_8 : i32
    %11 = arith.extui %10 : i1 to i32
    %c0_i32_9 = arith.constant 0 : i32
    %12 = arith.cmpi ne, %11, %c0_i32_9 : i32
    scf.if %12 {
      %c0_10 = arith.constant 0 : index
      %c0_11 = arith.constant 0 : index
      %13 = vector.load %arg7[%c0_10, %c0_11] : memref<16x64xf32, #tpu.memory_space<vmem>>, vector<16x64xf32>
      %c0_12 = arith.constant 0 : index
      %c0_13 = arith.constant 0 : index
      %14 = vector.load %arg5[%c0_12, %c0_13] : memref<1x64xf32, #tpu.memory_space<vmem>>, vector<1x64xf32>
      %15 = vector.broadcast %14 : vector<1x64xf32> to vector<16x64xf32>
      %16 = arith.addf %13, %15 : vector<16x64xf32>
      %c0_14 = arith.constant 0 : index
      %c0_15 = arith.constant 0 : index
      %17 = vector.load %arg6[%c0_14, %c0_15] : memref<16x64xf32, #tpu.memory_space<vmem>>, vector<16x64xf32>
      tpu.vector_store %arg6[%c0_14, %c0_15], %16 {strides = array<i32>} : memref<16x64xf32, #tpu.memory_space<vmem>>, vector<16x64xf32>,
    } else {
    }
    return
  }
  func.func @transform_0(%arg0: i32, %arg1: i32, %arg2: i32) -> (i32, i32) {
    %c0_i32 = arith.constant 0 : i32
    return %arg0, %arg2 : i32, i32
  }
  func.func @transform_1(%arg0: i32, %arg1: i32, %arg2: i32) -> (i32, i32) {
    %c0_i32 = arith.constant 0 : i32
    return %arg2, %arg1 : i32, i32
  }
  func.func @transform_2(%arg0: i32, %arg1: i32, %arg2: i32) -> (i32, i32) {
    %c0_i32 = arith.constant 0 : i32
    %c0_i32_0 = arith.constant 0 : i32
    return %c0_i32, %arg1 : i32, i32
  }
  func.func @transform_3(%arg0: i32, %arg1: i32, %arg2: i32) -> (i32, i32) {
    %c0_i32 = arith.constant 0 : i32
    return %arg0, %arg1 : i32, i32
  }
}

module attributes {stable_mosaic.version = 11 : i64} {
  func.func @_ffn_kernel(%arg0: i32, %arg1: i32, %arg2: memref<16x32xf32, #tpu.memory_space<vmem>>, %arg3: memref<1x32xf32, #tpu.memory_space<vmem>>, %arg4: memref<32x128xbf16, #tpu.memory_space<vmem>>, %arg5: memref<1x128xf32, #tpu.memory_space<vmem>>, %arg6: memref<32x128xbf16, #tpu.memory_space<vmem>>, %arg7: memref<1x128xf32, #tpu.memory_space<vmem>>, %arg8: memref<128x32xbf16, #tpu.memory_space<vmem>>, %arg9: memref<1x32xf32, #tpu.memory_space<vmem>>, %arg10: memref<16x32xf32, #tpu.memory_space<vmem>>, %arg11: memref<16x32xf32, #tpu.memory_space<vmem>>, %arg12: memref<16x32xbf16, #tpu.memory_space<vmem>>) attributes {dimension_semantics = [#tpu.dimension_semantics<parallel>, #tpu.dimension_semantics<arbitrary>], iteration_bounds = array<i64: 1, 1>, scalar_prefetch = 0 : i64, scratch_operands = 2 : i64, tpu.core_type = #tpu.core_type<tc>, window_params = [{transform_indices = @transform_0, window_bounds = array<i64: 16, 32>}, {pipeline_mode = #tpu.pipeline_mode<synchronous>, transform_indices = @transform_1, window_bounds = array<i64: 1, 32>}, {transform_indices = @transform_2, window_bounds = array<i64: 32, 128>}, {transform_indices = @transform_3, window_bounds = array<i64: 1, 128>}, {transform_indices = @transform_4, window_bounds = array<i64: 32, 128>}, {transform_indices = @transform_5, window_bounds = array<i64: 1, 128>}, {transform_indices = @transform_6, window_bounds = array<i64: 128, 32>}, {pipeline_mode = #tpu.pipeline_mode<synchronous>, transform_indices = @transform_7, window_bounds = array<i64: 1, 32>}, {transform_indices = @transform_8, window_bounds = array<i64: 16, 32>}]} {
    %c0_i32 = arith.constant 0 : i32
    %0 = arith.cmpi eq, %arg1, %c0_i32 : i32
    %1 = arith.extui %0 : i1 to i32
    %c0_i32_0 = arith.constant 0 : i32
    %2 = arith.cmpi ne, %1, %c0_i32_0 : i32
    scf.if %2 {
      %c0_22 = arith.constant 0 : index
      %c0_23 = arith.constant 0 : index
      %31 = vector.load %arg2[%c0_22, %c0_23] : memref<16x32xf32, #tpu.memory_space<vmem>>, vector<16x32xf32>
      %32 = arith.mulf %31, %31 : vector<16x32xf32>
      %cst_24 = arith.constant dense<0.000000e+00> : vector<16xf32>
      %33 = vector.multi_reduction <add>, %32, %cst_24 [1] : vector<16x32xf32> to vector<16xf32>
      %34 = vector.shape_cast %33 : vector<16xf32> to vector<16x1xf32>
      %cst_25 = arith.constant 3.200000e+01 : f32
      %35 = vector.broadcast %cst_25 : f32 to vector<16x1xf32>
      %36 = arith.divf %34, %35 : vector<16x1xf32>
      %c0_26 = arith.constant 0 : index
      %c0_27 = arith.constant 0 : index
      %37 = vector.load %arg3[%c0_26, %c0_27] : memref<1x32xf32, #tpu.memory_space<vmem>>, vector<1x32xf32>
      %38 = vector.broadcast %37 : vector<1x32xf32> to vector<16x32xf32>
      %39 = arith.mulf %38, %31 : vector<16x32xf32>
      %cst_28 = arith.constant 9.99999974E-6 : f32
      %40 = vector.broadcast %cst_28 : f32 to vector<16x1xf32>
      %41 = arith.addf %36, %40 : vector<16x1xf32>
      %42 = math.rsqrt %41 : vector<16x1xf32>
      %43 = vector.broadcast %42 : vector<16x1xf32> to vector<16x32xf32>
      %44 = arith.mulf %39, %43 : vector<16x32xf32>
      %45 = arith.truncf %44 : vector<16x32xf32> to vector<16x32xbf16>
      %c0_29 = arith.constant 0 : index
      %c0_30 = arith.constant 0 : index
      %46 = vector.load %arg12[%c0_29, %c0_30] : memref<16x32xbf16, #tpu.memory_space<vmem>>, vector<16x32xbf16>
      tpu.vector_store %arg12[%c0_29, %c0_30], %45 {strides = array<i32>} : memref<16x32xbf16, #tpu.memory_space<vmem>>, vector<16x32xbf16>,
      %c0_31 = arith.constant 0 : index
      %c0_32 = arith.constant 0 : index
      %47 = vector.load %arg9[%c0_31, %c0_32] : memref<1x32xf32, #tpu.memory_space<vmem>>, vector<1x32xf32>
      %48 = vector.broadcast %47 : vector<1x32xf32> to vector<16x32xf32>
      %49 = arith.addf %31, %48 : vector<16x32xf32>
      %c0_33 = arith.constant 0 : index
      %c0_34 = arith.constant 0 : index
      %50 = vector.load %arg11[%c0_33, %c0_34] : memref<16x32xf32, #tpu.memory_space<vmem>>, vector<16x32xf32>
      tpu.vector_store %arg11[%c0_33, %c0_34], %49 {strides = array<i32>} : memref<16x32xf32, #tpu.memory_space<vmem>>, vector<16x32xf32>,
    } else {
    }
    %c0 = arith.constant 0 : index
    %c0_1 = arith.constant 0 : index
    %3 = vector.load %arg12[%c0, %c0_1] : memref<16x32xbf16, #tpu.memory_space<vmem>>, vector<16x32xbf16>
    %c0_2 = arith.constant 0 : index
    %c0_3 = arith.constant 0 : index
    %4 = vector.load %arg4[%c0_2, %c0_3] : memref<32x128xbf16, #tpu.memory_space<vmem>>, vector<32x128xbf16>
    %cst = arith.constant dense<0.000000e+00> : vector<16x128xf32>
    %5 = tpu.matmul %3, %4, %cst {dimension_numbers = #tpu.dot_dimension_numbers<[1], [0], [0], [1], [0, 0, 1, 1], [], []>} : vector<16x32xbf16>, vector<32x128xbf16>, vector<16x128xf32> -> vector<16x128xf32>
    %c0_4 = arith.constant 0 : index
    %c0_5 = arith.constant 0 : index
    %6 = vector.load %arg5[%c0_4, %c0_5] : memref<1x128xf32, #tpu.memory_space<vmem>>, vector<1x128xf32>
    %7 = vector.broadcast %6 : vector<1x128xf32> to vector<16x128xf32>
    %8 = arith.addf %5, %7 : vector<16x128xf32>
    %c0_6 = arith.constant 0 : index
    %c0_7 = arith.constant 0 : index
    %9 = vector.load %arg6[%c0_6, %c0_7] : memref<32x128xbf16, #tpu.memory_space<vmem>>, vector<32x128xbf16>
    %cst_8 = arith.constant dense<0.000000e+00> : vector<16x128xf32>
    %10 = tpu.matmul %3, %9, %cst_8 {dimension_numbers = #tpu.dot_dimension_numbers<[1], [0], [0], [1], [0, 0, 1, 1], [], []>} : vector<16x32xbf16>, vector<32x128xbf16>, vector<16x128xf32> -> vector<16x128xf32>
    %c0_9 = arith.constant 0 : index
    %c0_10 = arith.constant 0 : index
    %11 = vector.load %arg7[%c0_9, %c0_10] : memref<1x128xf32, #tpu.memory_space<vmem>>, vector<1x128xf32>
    %12 = vector.broadcast %11 : vector<1x128xf32> to vector<16x128xf32>
    %13 = arith.addf %10, %12 : vector<16x128xf32>
    %cst_11 = arith.constant 0.000000e+00 : f32
    %14 = vector.broadcast %cst_11 : f32 to vector<16x128xf32>
    %15 = arith.subf %14, %8 : vector<16x128xf32>
    %16 = math.exp %15 : vector<16x128xf32>
    %cst_12 = arith.constant 1.000000e+00 : f32
    %17 = vector.broadcast %cst_12 : f32 to vector<16x128xf32>
    %18 = arith.addf %17, %16 : vector<16x128xf32>
    %19 = tpu.reciprocal %18 {approx = true} : vector<16x128xf32> -> vector<16x128xf32>
    %20 = arith.mulf %8, %19 : vector<16x128xf32>
    %c0_13 = arith.constant 0 : index
    %c0_14 = arith.constant 0 : index
    %21 = vector.load %arg11[%c0_13, %c0_14] : memref<16x32xf32, #tpu.memory_space<vmem>>, vector<16x32xf32>
    %22 = arith.mulf %20, %13 : vector<16x128xf32>
    %23 = arith.truncf %22 : vector<16x128xf32> to vector<16x128xbf16>
    %c0_15 = arith.constant 0 : index
    %c0_16 = arith.constant 0 : index
    %24 = vector.load %arg8[%c0_15, %c0_16] : memref<128x32xbf16, #tpu.memory_space<vmem>>, vector<128x32xbf16>
    %cst_17 = arith.constant dense<0.000000e+00> : vector<16x32xf32>
    %25 = tpu.matmul %23, %24, %cst_17 {dimension_numbers = #tpu.dot_dimension_numbers<[1], [0], [0], [1], [0, 0, 1, 1], [], []>} : vector<16x128xbf16>, vector<128x32xbf16>, vector<16x32xf32> -> vector<16x32xf32>
    %26 = arith.addf %21, %25 : vector<16x32xf32>
    %c0_18 = arith.constant 0 : index
    %c0_19 = arith.constant 0 : index
    %27 = vector.load %arg11[%c0_18, %c0_19] : memref<16x32xf32, #tpu.memory_space<vmem>>, vector<16x32xf32>
    tpu.vector_store %arg11[%c0_18, %c0_19], %26 {strides = array<i32>} : memref<16x32xf32, #tpu.memory_space<vmem>>, vector<16x32xf32>,
    %c0_i32_20 = arith.constant 0 : i32
    %28 = arith.cmpi eq, %arg1, %c0_i32_20 : i32
    %29 = arith.extui %28 : i1 to i32
    %c0_i32_21 = arith.constant 0 : i32
    %30 = arith.cmpi ne, %29, %c0_i32_21 : i32
    scf.if %30 {
      %c0_22 = arith.constant 0 : index
      %c0_23 = arith.constant 0 : index
      %31 = vector.load %arg11[%c0_22, %c0_23] : memref<16x32xf32, #tpu.memory_space<vmem>>, vector<16x32xf32>
      %c0_24 = arith.constant 0 : index
      %c0_25 = arith.constant 0 : index
      %32 = vector.load %arg10[%c0_24, %c0_25] : memref<16x32xf32, #tpu.memory_space<vmem>>, vector<16x32xf32>
      tpu.vector_store %arg10[%c0_24, %c0_25], %31 {strides = array<i32>} : memref<16x32xf32, #tpu.memory_space<vmem>>, vector<16x32xf32>,
    } else {
    }
    return
  }
  func.func @transform_0(%arg0: i32, %arg1: i32) -> (i32, i32) {
    %c0_i32 = arith.constant 0 : i32
    %c0_i32_0 = arith.constant 0 : i32
    return %arg0, %c0_i32 : i32, i32
  }
  func.func @transform_1(%arg0: i32, %arg1: i32) -> (i32, i32) {
    %c0_i32 = arith.constant 0 : i32
    %c0_i32_0 = arith.constant 0 : i32
    %c0_i32_1 = arith.constant 0 : i32
    return %c0_i32, %c0_i32_0 : i32, i32
  }
  func.func @transform_2(%arg0: i32, %arg1: i32) -> (i32, i32) {
    %c0_i32 = arith.constant 0 : i32
    %c0_i32_0 = arith.constant 0 : i32
    return %c0_i32, %arg1 : i32, i32
  }
  func.func @transform_3(%arg0: i32, %arg1: i32) -> (i32, i32) {
    %c0_i32 = arith.constant 0 : i32
    %c0_i32_0 = arith.constant 0 : i32
    return %c0_i32, %arg1 : i32, i32
  }
  func.func @transform_4(%arg0: i32, %arg1: i32) -> (i32, i32) {
    %c0_i32 = arith.constant 0 : i32
    %c0_i32_0 = arith.constant 0 : i32
    return %c0_i32, %arg1 : i32, i32
  }
  func.func @transform_5(%arg0: i32, %arg1: i32) -> (i32, i32) {
    %c0_i32 = arith.constant 0 : i32
    %c0_i32_0 = arith.constant 0 : i32
    return %c0_i32, %arg1 : i32, i32
  }
  func.func @transform_6(%arg0: i32, %arg1: i32) -> (i32, i32) {
    %c0_i32 = arith.constant 0 : i32
    %c0_i32_0 = arith.constant 0 : i32
    return %arg1, %c0_i32 : i32, i32
  }
  func.func @transform_7(%arg0: i32, %arg1: i32) -> (i32, i32) {
    %c0_i32 = arith.constant 0 : i32
    %c0_i32_0 = arith.constant 0 : i32
    %c0_i32_1 = arith.constant 0 : i32
    return %c0_i32, %c0_i32_0 : i32, i32
  }
  func.func @transform_8(%arg0: i32, %arg1: i32) -> (i32, i32) {
    %c0_i32 = arith.constant 0 : i32
    %c0_i32_0 = arith.constant 0 : i32
    return %arg0, %c0_i32 : i32, i32
  }
}

module attributes {stable_mosaic.version = 11 : i64} {
  func.func @_qkv_rope_kernel(%arg0: i32, %arg1: i32, %arg2: i32, %arg3: memref<1x8x32xf32, #tpu.memory_space<vmem>>, %arg4: memref<1x32xf32, #tpu.memory_space<vmem>>, %arg5: memref<1x32x8xbf16, #tpu.memory_space<vmem>>, %arg6: memref<1x32x8xbf16, #tpu.memory_space<vmem>>, %arg7: memref<1x32x8xbf16, #tpu.memory_space<vmem>>, %arg8: memref<1x1x8xf32, #tpu.memory_space<vmem>>, %arg9: memref<1x1x8xf32, #tpu.memory_space<vmem>>, %arg10: memref<1x1x8xf32, #tpu.memory_space<vmem>>, %arg11: memref<8x8xf32, #tpu.memory_space<vmem>>, %arg12: memref<8x8xf32, #tpu.memory_space<vmem>>, %arg13: memref<1x1x8x8xbf16, #tpu.memory_space<vmem>>, %arg14: memref<1x1x8x8xbf16, #tpu.memory_space<vmem>>, %arg15: memref<1x1x8x8xbf16, #tpu.memory_space<vmem>>) attributes {dimension_semantics = [#tpu.dimension_semantics<parallel>, #tpu.dimension_semantics<parallel>, #tpu.dimension_semantics<parallel>], iteration_bounds = array<i64: 2, 4, 1>, scalar_prefetch = 0 : i64, scratch_operands = 0 : i64, tpu.core_type = #tpu.core_type<tc>, window_params = [{transform_indices = @transform_0, window_bounds = array<i64: 1, 8, 32>}, {pipeline_mode = #tpu.pipeline_mode<synchronous>, transform_indices = @transform_1, window_bounds = array<i64: 1, 32>}, {transform_indices = @transform_2, window_bounds = array<i64: 1, 32, 8>}, {transform_indices = @transform_3, window_bounds = array<i64: 1, 32, 8>}, {transform_indices = @transform_4, window_bounds = array<i64: 1, 32, 8>}, {transform_indices = @transform_5, window_bounds = array<i64: 1, 1, 8>}, {transform_indices = @transform_6, window_bounds = array<i64: 1, 1, 8>}, {transform_indices = @transform_7, window_bounds = array<i64: 1, 1, 8>}, {transform_indices = @transform_8, window_bounds = array<i64: 8, 8>}, {transform_indices = @transform_9, window_bounds = array<i64: 8, 8>}, {transform_indices = @transform_10, window_bounds = array<i64: 1, 1, 8, 8>}, {transform_indices = @transform_11, window_bounds = array<i64: 1, 1, 8, 8>}, {transform_indices = @transform_12, window_bounds = array<i64: 1, 1, 8, 8>}]} {
    %c0 = arith.constant 0 : index
    %c0_0 = arith.constant 0 : index
    %c0_1 = arith.constant 0 : index
    %0 = vector.load %arg3[%c0, %c0_0, %c0_1] : memref<1x8x32xf32, #tpu.memory_space<vmem>>, vector<1x8x32xf32>
    %1 = vector.shape_cast %0 : vector<1x8x32xf32> to vector<8x32xf32>
    %2 = arith.mulf %1, %1 : vector<8x32xf32>
    %cst = arith.constant dense<0.000000e+00> : vector<8xf32>
    %3 = vector.multi_reduction <add>, %2, %cst [1] : vector<8x32xf32> to vector<8xf32>
    %4 = vector.shape_cast %3 : vector<8xf32> to vector<8x1xf32>
    %cst_2 = arith.constant 3.200000e+01 : f32
    %5 = vector.broadcast %cst_2 : f32 to vector<8x1xf32>
    %6 = arith.divf %4, %5 : vector<8x1xf32>
    %c0_3 = arith.constant 0 : index
    %c0_4 = arith.constant 0 : index
    %7 = vector.load %arg4[%c0_3, %c0_4] : memref<1x32xf32, #tpu.memory_space<vmem>>, vector<1x32xf32>
    %8 = vector.broadcast %7 : vector<1x32xf32> to vector<8x32xf32>
    %9 = arith.mulf %8, %1 : vector<8x32xf32>
    %cst_5 = arith.constant 9.99999974E-6 : f32
    %10 = vector.broadcast %cst_5 : f32 to vector<8x1xf32>
    %11 = arith.addf %6, %10 : vector<8x1xf32>
    %12 = math.rsqrt %11 : vector<8x1xf32>
    %13 = vector.broadcast %12 : vector<8x1xf32> to vector<8x32xf32>
    %14 = arith.mulf %9, %13 : vector<8x32xf32>
    %15 = arith.truncf %14 : vector<8x32xf32> to vector<8x32xbf16>
    %c0_6 = arith.constant 0 : index
    %c0_7 = arith.constant 0 : index
    %c0_8 = arith.constant 0 : index
    %16 = vector.load %arg5[%c0_6, %c0_7, %c0_8] : memref<1x32x8xbf16, #tpu.memory_space<vmem>>, vector<1x32x8xbf16>
    %17 = vector.shape_cast %16 : vector<1x32x8xbf16> to vector<32x8xbf16>
    %cst_9 = arith.constant dense<0.000000e+00> : vector<8x8xf32>
    %18 = tpu.matmul %15, %17, %cst_9 {dimension_numbers = #tpu.dot_dimension_numbers<[1], [0], [0], [1], [0, 0, 1, 1], [], []>} : vector<8x32xbf16>, vector<32x8xbf16>, vector<8x8xf32> -> vector<8x8xf32>
    %c0_10 = arith.constant 0 : index
    %c0_11 = arith.constant 0 : index
    %c0_12 = arith.constant 0 : index
    %19 = vector.load %arg8[%c0_10, %c0_11, %c0_12] : memref<1x1x8xf32, #tpu.memory_space<vmem>>, vector<1x1x8xf32>
    %20 = vector.shape_cast %19 : vector<1x1x8xf32> to vector<1x8xf32>
    %21 = vector.broadcast %20 : vector<1x8xf32> to vector<8x8xf32>
    %22 = arith.addf %18, %21 : vector<8x8xf32>
    %c0_13 = arith.constant 0 : index
    %c0_14 = arith.constant 0 : index
    %c0_15 = arith.constant 0 : index
    %23 = vector.load %arg6[%c0_13, %c0_14, %c0_15] : memref<1x32x8xbf16, #tpu.memory_space<vmem>>, vector<1x32x8xbf16>
    %24 = vector.shape_cast %23 : vector<1x32x8xbf16> to vector<32x8xbf16>
    %cst_16 = arith.constant dense<0.000000e+00> : vector<8x8xf32>
    %25 = tpu.matmul %15, %24, %cst_16 {dimension_numbers = #tpu.dot_dimension_numbers<[1], [0], [0], [1], [0, 0, 1, 1], [], []>} : vector<8x32xbf16>, vector<32x8xbf16>, vector<8x8xf32> -> vector<8x8xf32>
    %c0_17 = arith.constant 0 : index
    %c0_18 = arith.constant 0 : index
    %c0_19 = arith.constant 0 : index
    %26 = vector.load %arg9[%c0_17, %c0_18, %c0_19] : memref<1x1x8xf32, #tpu.memory_space<vmem>>, vector<1x1x8xf32>
    %27 = vector.shape_cast %26 : vector<1x1x8xf32> to vector<1x8xf32>
    %28 = vector.broadcast %27 : vector<1x8xf32> to vector<8x8xf32>
    %29 = arith.addf %25, %28 : vector<8x8xf32>
    %c0_20 = arith.constant 0 : index
    %c0_21 = arith.constant 0 : index
    %c0_22 = arith.constant 0 : index
    %30 = vector.load %arg7[%c0_20, %c0_21, %c0_22] : memref<1x32x8xbf16, #tpu.memory_space<vmem>>, vector<1x32x8xbf16>
    %31 = vector.shape_cast %30 : vector<1x32x8xbf16> to vector<32x8xbf16>
    %cst_23 = arith.constant dense<0.000000e+00> : vector<8x8xf32>
    %32 = tpu.matmul %15, %31, %cst_23 {dimension_numbers = #tpu.dot_dimension_numbers<[1], [0], [0], [1], [0, 0, 1, 1], [], []>} : vector<8x32xbf16>, vector<32x8xbf16>, vector<8x8xf32> -> vector<8x8xf32>
    %c0_24 = arith.constant 0 : index
    %c0_25 = arith.constant 0 : index
    %c0_26 = arith.constant 0 : index
    %33 = vector.load %arg10[%c0_24, %c0_25, %c0_26] : memref<1x1x8xf32, #tpu.memory_space<vmem>>, vector<1x1x8xf32>
    %34 = vector.shape_cast %33 : vector<1x1x8xf32> to vector<1x8xf32>
    %35 = vector.broadcast %34 : vector<1x8xf32> to vector<8x8xf32>
    %36 = arith.addf %32, %35 : vector<8x8xf32>
    %c0_27 = arith.constant 0 : index
    %c0_28 = arith.constant 0 : index
    %37 = vector.load %arg11[%c0_27, %c0_28] : memref<8x8xf32, #tpu.memory_space<vmem>>, vector<8x8xf32>
    %c0_29 = arith.constant 0 : index
    %c0_30 = arith.constant 0 : index
    %38 = vector.load %arg12[%c0_29, %c0_30] : memref<8x8xf32, #tpu.memory_space<vmem>>, vector<8x8xf32>
    %39 = arith.mulf %22, %37 : vector<8x8xf32>
    %40 = vector.extract_strided_slice %22 {offsets = [0, 0], sizes = [8, 4], strides = [1, 1]} : vector<8x8xf32> to vector<8x4xf32>
    %41 = vector.extract_strided_slice %22 {offsets = [0, 4], sizes = [8, 4], strides = [1, 1]} : vector<8x8xf32> to vector<8x4xf32>
    %42 = tpu.concatenate %41, %40 in 1 : vector<8x4xf32>, vector<8x4xf32> -> vector<8x8xf32>
    %43 = arith.mulf %42, %38 : vector<8x8xf32>
    %44 = arith.addf %39, %43 : vector<8x8xf32>
    %45 = arith.mulf %29, %37 : vector<8x8xf32>
    %46 = vector.extract_strided_slice %29 {offsets = [0, 0], sizes = [8, 4], strides = [1, 1]} : vector<8x8xf32> to vector<8x4xf32>
    %47 = vector.extract_strided_slice %29 {offsets = [0, 4], sizes = [8, 4], strides = [1, 1]} : vector<8x8xf32> to vector<8x4xf32>
    %48 = tpu.concatenate %47, %46 in 1 : vector<8x4xf32>, vector<8x4xf32> -> vector<8x8xf32>
    %49 = arith.mulf %48, %38 : vector<8x8xf32>
    %50 = arith.addf %45, %49 : vector<8x8xf32>
    %51 = arith.truncf %44 : vector<8x8xf32> to vector<8x8xbf16>
    %c0_31 = arith.constant 0 : index
    %c0_32 = arith.constant 0 : index
    %c0_33 = arith.constant 0 : index
    %c0_34 = arith.constant 0 : index
    %52 = vector.load %arg13[%c0_31, %c0_32, %c0_33, %c0_34] : memref<1x1x8x8xbf16, #tpu.memory_space<vmem>>, vector<1x1x8x8xbf16>
    %53 = vector.shape_cast %52 : vector<1x1x8x8xbf16> to vector<8x8xbf16>
    %54 = vector.shape_cast %51 : vector<8x8xbf16> to vector<1x1x8x8xbf16>
    tpu.vector_store %arg13[%c0_31, %c0_32, %c0_33, %c0_34], %54 {strides = array<i32>} : memref<1x1x8x8xbf16, #tpu.memory_space<vmem>>, vector<1x1x8x8xbf16>,
    %55 = arith.truncf %50 : vector<8x8xf32> to vector<8x8xbf16>
    %c0_35 = arith.constant 0 : index
    %c0_36 = arith.constant 0 : index
    %c0_37 = arith.constant 0 : index
    %c0_38 = arith.constant 0 : index
    %56 = vector.load %arg14[%c0_35, %c0_36, %c0_37, %c0_38] : memref<1x1x8x8xbf16, #tpu.memory_space<vmem>>, vector<1x1x8x8xbf16>
    %57 = vector.shape_cast %56 : vector<1x1x8x8xbf16> to vector<8x8xbf16>
    %58 = vector.shape_cast %55 : vector<8x8xbf16> to vector<1x1x8x8xbf16>
    tpu.vector_store %arg14[%c0_35, %c0_36, %c0_37, %c0_38], %58 {strides = array<i32>} : memref<1x1x8x8xbf16, #tpu.memory_space<vmem>>, vector<1x1x8x8xbf16>,
    %59 = arith.truncf %36 : vector<8x8xf32> to vector<8x8xbf16>
    %c0_39 = arith.constant 0 : index
    %c0_40 = arith.constant 0 : index
    %c0_41 = arith.constant 0 : index
    %c0_42 = arith.constant 0 : index
    %60 = vector.load %arg15[%c0_39, %c0_40, %c0_41, %c0_42] : memref<1x1x8x8xbf16, #tpu.memory_space<vmem>>, vector<1x1x8x8xbf16>
    %61 = vector.shape_cast %60 : vector<1x1x8x8xbf16> to vector<8x8xbf16>
    %62 = vector.shape_cast %59 : vector<8x8xbf16> to vector<1x1x8x8xbf16>
    tpu.vector_store %arg15[%c0_39, %c0_40, %c0_41, %c0_42], %62 {strides = array<i32>} : memref<1x1x8x8xbf16, #tpu.memory_space<vmem>>, vector<1x1x8x8xbf16>,
    return
  }
  func.func @transform_0(%arg0: i32, %arg1: i32, %arg2: i32) -> (i32, i32, i32) {
    %c0_i32 = arith.constant 0 : i32
    %c0_i32_0 = arith.constant 0 : i32
    return %arg0, %arg2, %c0_i32 : i32, i32, i32
  }
  func.func @transform_1(%arg0: i32, %arg1: i32, %arg2: i32) -> (i32, i32) {
    %c0_i32 = arith.constant 0 : i32
    %c0_i32_0 = arith.constant 0 : i32
    %c0_i32_1 = arith.constant 0 : i32
    return %c0_i32, %c0_i32_0 : i32, i32
  }
  func.func @transform_2(%arg0: i32, %arg1: i32, %arg2: i32) -> (i32, i32, i32) {
    %c0_i32 = arith.constant 0 : i32
    %c0_i32_0 = arith.constant 0 : i32
    %c0_i32_1 = arith.constant 0 : i32
    return %arg1, %c0_i32, %c0_i32_0 : i32, i32, i32
  }
  func.func @transform_3(%arg0: i32, %arg1: i32, %arg2: i32) -> (i32, i32, i32) {
    %c0_i32 = arith.constant 0 : i32
    %c0_i32_0 = arith.constant 0 : i32
    %c0_i32_1 = arith.constant 0 : i32
    return %arg1, %c0_i32, %c0_i32_0 : i32, i32, i32
  }
  func.func @transform_4(%arg0: i32, %arg1: i32, %arg2: i32) -> (i32, i32, i32) {
    %c0_i32 = arith.constant 0 : i32
    %c0_i32_0 = arith.constant 0 : i32
    %c0_i32_1 = arith.constant 0 : i32
    return %arg1, %c0_i32, %c0_i32_0 : i32, i32, i32
  }
  func.func @transform_5(%arg0: i32, %arg1: i32, %arg2: i32) -> (i32, i32, i32) {
    %c0_i32 = arith.constant 0 : i32
    %c0_i32_0 = arith.constant 0 : i32
    %c0_i32_1 = arith.constant 0 : i32
    return %arg1, %c0_i32, %c0_i32_0 : i32, i32, i32
  }
  func.func @transform_6(%arg0: i32, %arg1: i32, %arg2: i32) -> (i32, i32, i32) {
    %c0_i32 = arith.constant 0 : i32
    %c0_i32_0 = arith.constant 0 : i32
    %c0_i32_1 = arith.constant 0 : i32
    return %arg1, %c0_i32, %c0_i32_0 : i32, i32, i32
  }
  func.func @transform_7(%arg0: i32, %arg1: i32, %arg2: i32) -> (i32, i32, i32) {
    %c0_i32 = arith.constant 0 : i32
    %c0_i32_0 = arith.constant 0 : i32
    %c0_i32_1 = arith.constant 0 : i32
    return %arg1, %c0_i32, %c0_i32_0 : i32, i32, i32
  }
  func.func @transform_8(%arg0: i32, %arg1: i32, %arg2: i32) -> (i32, i32) {
    %c0_i32 = arith.constant 0 : i32
    %c0_i32_0 = arith.constant 0 : i32
    return %arg2, %c0_i32 : i32, i32
  }
  func.func @transform_9(%arg0: i32, %arg1: i32, %arg2: i32) -> (i32, i32) {
    %c0_i32 = arith.constant 0 : i32
    %c0_i32_0 = arith.constant 0 : i32
    return %arg2, %c0_i32 : i32, i32
  }
  func.func @transform_10(%arg0: i32, %arg1: i32, %arg2: i32) -> (i32, i32, i32, i32) {
    %c0_i32 = arith.constant 0 : i32
    %c0_i32_0 = arith.constant 0 : i32
    return %arg0, %arg1, %arg2, %c0_i32 : i32, i32, i32, i32
  }
  func.func @transform_11(%arg0: i32, %arg1: i32, %arg2: i32) -> (i32, i32, i32, i32) {
    %c0_i32 = arith.constant 0 : i32
    %c0_i32_0 = arith.constant 0 : i32
    return %arg0, %arg1, %arg2, %c0_i32 : i32, i32, i32, i32
  }
  func.func @transform_12(%arg0: i32, %arg1: i32, %arg2: i32) -> (i32, i32, i32, i32) {
    %c0_i32 = arith.constant 0 : i32
    %c0_i32_0 = arith.constant 0 : i32
    return %arg0, %arg1, %arg2, %c0_i32 : i32, i32, i32, i32
  }
}

</mosaic_0001>

<llo_original>
// kernel: llama_forward.13
$region0: #{llama_forward.13}
  #allocation0 [shape = 'u32[]', space=smem, size = 0x4, offset = 0x4, fixed_abs, tag = 'smem constant byte address 0x4 - core index']
  #allocation1 [shape = 'u32[144,128]{1,0:T(1,128)}', space=vmem, size = 0x12000, scoped, tag = 'internal scratch']
  #allocation2 [shape = 'f32[16,64]{1,0:T(8,128)}', space=vmem, size = 0x2000, scoped, tag = 'scratch operand']
  %s0 = inlined_call_operand.vmem [shape: f32[16,32], index: 0, kind: input, shape index: {}]
  %s1 = inlined_call_operand.vmem [shape: bf16[32,64], index: 1, kind: input, shape index: {}]
  %s2 = inlined_call_operand.vmem [shape: f32[1,64], index: 2, kind: input, shape index: {}]
  %s3 = inlined_call_operand.hbm [shape: f32[16,64], index: 3, kind: output, shape index: {}]
  %s4 = sld [smem:[#allocation0]]
  $region30: #{llama_forward.13} parent=0
    _
  %s6 = ssub.s32 1, %s4
  %s7 = scalar_select 0, %s6, %s4
  $region1: #{llama_forward.13} parent=0
    #allocation3 [shape = 'u8[8192]{0}', space=vmem, size = 0x2000, scoped, tag = 'output window, operand 0, single buffered']
    #allocation4 [shape = 's32[1]{0}', space=sflag, size = 0x4, scoped, tag = 'scoped memory for llama_forward.13']
    %8 = vsyncpa [#allocation4], 0
    // Predicated region
    $region2: #{llama_forward.13} parent=1 // pred_check
      _
    $region3: #{llama_forward.13} parent=1 // pred_check_branch
      %10 = sbr.rel (0) target = $region5
    $region4: #{llama_forward.13} parent=1 // pred_region
      _
    $region5: #{llama_forward.13} parent=1 // pred_fallthru
      _
    // Predicated region
    $region6: #{llama_forward.13} parent=1 // pred_check
      _
    $region7: #{llama_forward.13} parent=1 // pred_check_branch
      %12 = sbr.rel (0) target = $region9
    $region8: #{llama_forward.13} parent=1 // pred_region
      _
    $region9: #{llama_forward.13} parent=1 // pred_fallthru
      _
    // Predicated region
    $region10: #{llama_forward.13} parent=1 // pred_check
      _
    $region11: #{llama_forward.13} parent=1 // pred_check_branch
      %14 = sbr.rel (0) target = $region13
    $region12: #{llama_forward.13} parent=1 // pred_region
      _
    $region13: #{llama_forward.13} parent=1 // pred_fallthru
      _
    %p16 = scmp.eq.s32.totalorder 0, 0
    // Predicated region
    $region14: #{llama_forward.13} parent=1 // pred_check
      %p17 = pneg %p16
    $region15: #{llama_forward.13} parent=1 // pred_check_branch
      %19 = sbr.rel (%p17) target = $region17
    $region16: #{llama_forward.13} parent=1 // pred_region
      %vm20 = vcmask 523264
      %21 = vst.msk [vmem:[#allocation2] sm:$0xff] %vm20, 0.0
      %22 = vst.msk [vmem:[#allocation2 + $0x8] sm:$0xff] %vm20, 0.0
    $region17: #{llama_forward.13} parent=1 // pred_fallthru
      _
    %v23 = vld [vmem:[#allocation2] sm:$0xff]
    %v24 = vld [vmem:[#allocation2 + $0x8] sm:$0xff]
    %v25 = vld [vmem:[%s0] sm:$0xff]
    %v26 = vld [vmem:[%s0 + $0x8] sm:$0xff]
    %v27 = vpack.c.bf16 %v26, %v25
    %v28 = vld [vmem:[%s1] sm:$0xf]
    %v29 = vld [vmem:[%s1 + $0x4] sm:$0xf]
    %v30 = vld [vmem:[%s1 + $0x8] sm:$0xf]
    %v31 = vld [vmem:[%s1 + $0xc] sm:$0xf]
    %v36 = vunpack.c.l.b16 %v28
    %v37 = vunpack.c.l.b16 %v29
    %v38 = vunpack.c.l.b16 %v30
    %v39 = vunpack.c.l.b16 %v31
    %v40 = vpack.c.b16 %v37, %v36
    %v41 = vpack.c.b16 %v39, %v38
    %vm44 = vcmask 261120
    %v46 = vsel %vm44, %v27, 0
    %48 = vmatprep.subr.bf16.mxu0 0
    %49 = vmatpush1.bf16.msra.mxu0 %v40
    %50 = vmatprep.subr.bf16.mxu0 0
    %51 = vmatpush1.bf16.msra.mxu0 %v41
    %52 = vmatprep.subr.bf16.mxu0 0
    %53 = vmatpush1.bf16.msra.mxu0 0
    %54 = vmatprep.subr.bf16.mxu0 0
    %55 = vmatpush1.bf16.msra.mxu0 0
    %56 = vmatprep.subr.bf16.mxu0 0
    %57 = vmatpush1.bf16.msra.mxu0 0
    %58 = vmatprep.subr.bf16.mxu0 0
    %59 = vmatpush1.bf16.msra.mxu0 0
    %60 = vmatprep.subr.bf16.mxu0 0
    %61 = vmatpush1.bf16.msra.mxu0 0
    %62 = vmatprep.subr.bf16.mxu0 0
    %63 = vmatpush1.bf16.msra.mxu0 0
    %64 = vmatprep.subr.bf16.mxu0 0
    %65 = vmatpush1.bf16.msra.mxu0 0
    %66 = vmatprep.subr.bf16.mxu0 0
    %67 = vmatpush1.bf16.msra.mxu0 0
    %68 = vmatprep.subr.bf16.mxu0 0
    %69 = vmatpush1.bf16.msra.mxu0 0
    %70 = vmatprep.subr.bf16.mxu0 0
    %71 = vmatpush1.bf16.msra.mxu0 0
    %72 = vmatprep.subr.bf16.mxu0 0
    %73 = vmatpush1.bf16.msra.mxu0 0
    %74 = vmatprep.subr.bf16.mxu0 0
    %75 = vmatpush1.bf16.msra.mxu0 0
    %76 = vmatprep.subr.bf16.mxu0 0
    %77 = vmatpush1.bf16.msra.mxu0 0
    %78 = vmatprep.subr.bf16.mxu0 0
    %79 = vmatpush1.bf16.msra.mxu0 0
    %80 = vmatprep.mubr.bf16.mxu0 0
    %81 = vmatmul.mubr.bf16.gmra.mrb[0].mxu0 %v46
    %v82 = vpop.f32.mrb[0].mxu0
    %v83 = vadd.f32 0.0, %v82
    %v84 = vpop.f32.mrb[0].mxu0
    %v85 = vpop.f32.mrb[0].mxu0
    %v86 = vadd.f32 0.0, %v85
    %v87 = vpop.f32.mrb[0].mxu0
    %88 = vdwg.mxu0
    %v89 = vadd.f32 %v23, %v83
    %v90 = vadd.f32 %v24, %v86
    %vm91 = vcmask 523264
    %92 = vst.msk [vmem:[#allocation2] sm:$0xff] %vm91, %v89
    %93 = vst.msk [vmem:[#allocation2 + $0x8] sm:$0xff] %vm91, %v90
    // Predicated region
    $region18: #{llama_forward.13} parent=1 // pred_check
      %p94 = pneg %p16
    $region19: #{llama_forward.13} parent=1 // pred_check_branch
      %96 = sbr.rel (%p94) target = $region21
    $region20: #{llama_forward.13} parent=1 // pred_region
      %v97 = vld [vmem:[#allocation2] sm:$0xff]
      %v98 = vld [vmem:[#allocation2 + $0x8] sm:$0xff]
      %v99 = vld [vmem:[%s2] sm:$0x1]
      %v101 = vlaneseq
      %v102 = vshrl.u32 %v101, 7
      %v103 = vsub.s32 0, %v102
      %v104 = vrot.slane %v99, %v103
      %v106 = vadd.f32 %v97, %v104
      %v107 = vadd.f32 %v98, %v104
      %108 = vst.msk [vmem:[#allocation3] sm:$0xff] %vm91, %v106
      %109 = vst.msk [vmem:[#allocation3 + $0x8] sm:$0xff] %vm91, %v107
    $region21: #{llama_forward.13} parent=1 // pred_fallthru
      _
    // Predicated region
    $region22: #{llama_forward.13} parent=1 // pred_check
      _
    $region23: #{llama_forward.13} parent=1 // pred_check_branch
      %111 = sbr.rel (0) target = $region25
    $region24: #{llama_forward.13} parent=1 // pred_region
      %s113 = ssub.s32 256, 256
      %114 = vsyncadd [#allocation4], %s113
      %s115 = sshll.u32 [#allocation3], 4
      %s116 = int_to_ptr.vmem [resolvable:$true] %s115
      %121 = dma.vmem_to_hbm [thread:$0]  %s116, 256, %s3, [#allocation4], 128, 128, 8
    $region25: #{llama_forward.13} parent=1 // pred_fallthru
      _
    // Predicated region
    $region26: #{llama_forward.13} parent=1 // pred_check
      _
    $region27: #{llama_forward.13} parent=1 // pred_check_branch
      %123 = sbr.rel (0) target = $region29
    $region28: #{llama_forward.13} parent=1 // pred_region
      %124 = dma.done [#allocation4], 256
    $region29: #{llama_forward.13} parent=1 // pred_fallthru
      _
    %125 = vsyncpa [#allocation4], 1

// kernel: llama_forward.7
$region0: #{llama_forward.7}
  #allocation0 [shape = 'u32[]', space=smem, size = 0x4, offset = 0x4, fixed_abs, tag = 'smem constant byte address 0x4 - core index']
  #allocation1 [shape = 'u32[144,128]{1,0:T(1,128)}', space=vmem, size = 0x12000, scoped, tag = 'internal scratch']
  %s0 = inlined_call_operand.vmem [shape: f32[2,8,32], index: 0, kind: input, shape index: {}]
  %s1 = inlined_call_operand.vmem [shape: f32[1,32], index: 1, kind: input, shape index: {}]
  %s2 = inlined_call_operand.vmem [shape: bf16[4,32,8], index: 2, kind: input, shape index: {}]
  %s3 = inlined_call_operand.vmem [shape: bf16[4,32,8], index: 3, kind: input, shape index: {}]
  %s4 = inlined_call_operand.vmem [shape: bf16[4,32,8], index: 4, kind: input, shape index: {}]
  %s5 = inlined_call_operand.vmem [shape: f32[4,1,8], index: 5, kind: input, shape index: {}]
  %s6 = inlined_call_operand.vmem [shape: f32[4,1,8], index: 6, kind: input, shape index: {}]
  %s7 = inlined_call_operand.vmem [shape: f32[4,1,8], index: 7, kind: input, shape index: {}]
  %s8 = inlined_call_operand.vmem [shape: f32[8,8], index: 8, kind: input, shape index: {}]
  %s9 = inlined_call_operand.vmem [shape: f32[8,8], index: 9, kind: input, shape index: {}]
  %s10 = inlined_call_operand.vmem [shape: bf16[2,4,8,8], index: 10, kind: output, shape index: {0}]
  %s11 = inlined_call_operand.vmem [shape: bf16[2,4,8,8], index: 11, kind: output, shape index: {1}]
  %s12 = inlined_call_operand.vmem [shape: bf16[2,4,8,8], index: 12, kind: output, shape index: {2}]
  %13 = xla_tuple %s10, %s11, %s12
  %s14 = sld [smem:[#allocation0]]
  $region89: #{llama_forward.7} parent=0
    _
  %s16 = ssub.s32 1, %s14
  %s17 = scalar_select 0, %s16, %s14
  loop: start=0, step=1, limit=10
  $region2: #{llama_forward.7} parent=0 // loop_pre_header
    _
  $region3: #{llama_forward.7} parent=0 // loop_header
    %s19 = sphi 0, %s23
    %p20 = scmp.ge.s32.totalorder %s19, 10
    %s26 = sphi 0, %s45
    %s27 = sphi 0, %s41
    %s28 = sphi 0, %s37
    %s29 = sphi 0, %s26
    %s30 = sphi 0, %s27
    %s31 = sphi 0, %s28
    %s32 = sphi 0, %s29
    %s33 = sphi 0, %s30
    %s34 = sphi 0, %s31
    %s50 = sphi 0, %s52
    %s53 = sphi 0, %s50
    %s54 = sphi 0, %s53
    %s70 = sphi 0, %s54
    %s74 = sphi 0, %s74
    %s76 = sphi 0, %s74
    %s77 = sphi 0, %s76
    %s91 = sphi 0, %s77
    %s97 = sphi 0, %s99
    %s100 = sphi 0, %s97
    %s101 = sphi 0, %s100
    %s117 = sphi 0, %s101
    %s123 = sphi 0, %s125
    %s126 = sphi 0, %s123
    %s127 = sphi 0, %s126
    %s143 = sphi 0, %s127
    %s149 = sphi 0, %s151
    %s152 = sphi 0, %s149
    %s153 = sphi 0, %s152
    %s169 = sphi 0, %s153
    %s175 = sphi 0, %s177
    %s178 = sphi 0, %s175
    %s179 = sphi 0, %s178
    %s195 = sphi 0, %s179
    %s201 = sphi 0, %s203
    %s204 = sphi 0, %s201
    %s205 = sphi 0, %s204
    %s221 = sphi 0, %s205
    %s227 = sphi 0, %s229
    %s230 = sphi 0, %s227
    %s231 = sphi 0, %s230
    %s247 = sphi 0, %s231
    %s253 = sphi 0, %s255
    %s256 = sphi 0, %s253
    %s257 = sphi 0, %s256
    %s273 = sphi 0, %s257
    %s279 = sphi 0, %s281
    %s282 = sphi 0, %s279
    %s283 = sphi 0, %s282
    %s299 = sphi 0, %s283
    %s309 = sphi 0, %s311
    %s312 = sphi 0, %s309
    %s313 = sphi 0, %s312
    %s329 = sphi 0, %s313
    %s339 = sphi 0, %s341
    %s342 = sphi 0, %s339
    %s343 = sphi 0, %s342
    %s359 = sphi 0, %s343
    %s369 = sphi 0, %s371
    %s372 = sphi 0, %s369
    %s373 = sphi 0, %s372
    %s389 = sphi 0, %s373
  $region4: #{llama_forward.7} parent=0 // loop_header_branch
    %22 = sbr.rel (%p20) target = $region8
  $region5: #{llama_forward.7} parent=0 // loop_body
    %s24 = ssub.s32 %s19, 1
    %s25 = ssub.s32 %s19, 2
    %s35 = sadd.s32 1, %s28
    %p36 = scmp.ge.s32.totalorder %s35, 1
    %s37 = scalar_select %p36, 0, %s35
    %s38 = sadd.s32 1, %s27
    %s39 = scalar_select %p36, %s38, %s27
    %p40 = scmp.ge.s32.totalorder %s39, 4
    %s41 = scalar_select %p40, 0, %s39
    %s42 = sadd.s32 1, %s26
    %s43 = scalar_select %p40, %s42, %s26
    %p44 = scmp.ge.s32.totalorder %s43, 2
    %s45 = scalar_select %p44, 0, %s43
    %s46 = ssub.s32 %s26, %s45
    %s47 = ssub.s32 %s28, %s37
    %s48 = sor.u32 %s46, %s47
    %p49 = scmp.eq.s32.totalorder %s48, 0
    %s51 = sadd.s32 %s50, 1
    %s52 = scalar_select %p49, %s50, %s51
    %p55 = pneg %p49
    %p56 = scmp.eq.s32.totalorder %s19, 7
    %p57 = por %p55, %p56
    %p58 = scmp.ne.s32.totalorder %s50, %s53
    %p59 = scmp.eq.s32.totalorder %s19, 0
    %p60 = por %p58, %p59
    %p61 = scmp.ne.s32.totalorder %s50, %s53
    %p62 = scmp.eq.s32.totalorder %s24, 7
    %p63 = por %p61, %p62
    %p64 = scmp.ne.s32.totalorder %s53, %s54
    %p65 = scmp.eq.s32.totalorder %s24, 0
    %p66 = por %p64, %p65
    %p67 = scmp.ne.s32.totalorder %s53, %s54
    %p68 = scmp.eq.s32.totalorder %s25, 7
    %p69 = por %p67, %p68
    %p71 = scmp.ne.s32.totalorder %s54, %s70
    %p72 = scmp.eq.s32.totalorder %s25, 0
    %p73 = por %p71, %p72
    %s75 = sadd.s32 %s74, 1
    %p78 = scmp.eq.s32.totalorder %s19, 7
    %p79 = scmp.ne.s32.totalorder %s74, %s76
    %p80 = scmp.eq.s32.totalorder %s19, 0
    %p81 = por %p79, %p80
    %p82 = scmp.ne.s32.totalorder %s74, %s76
    %p83 = scmp.eq.s32.totalorder %s24, 7
    %p84 = por %p82, %p83
    %p85 = scmp.ne.s32.totalorder %s76, %s77
    %p86 = scmp.eq.s32.totalorder %s24, 0
    %p87 = por %p85, %p86
    %p88 = scmp.ne.s32.totalorder %s76, %s77
    %p89 = scmp.eq.s32.totalorder %s25, 7
    %p90 = por %p88, %p89
    %p92 = scmp.ne.s32.totalorder %s77, %s91
    %p93 = scmp.eq.s32.totalorder %s25, 0
    %p94 = por %p92, %p93
    %s95 = ssub.s32 %s27, %s41
    %p96 = scmp.eq.s32.totalorder %s95, 0
    %s98 = sadd.s32 %s97, 1
    %s99 = scalar_select %p96, %s97, %s98
    %p102 = pneg %p96
    %p103 = scmp.eq.s32.totalorder %s19, 7
    %p104 = por %p102, %p103
    %p105 = scmp.ne.s32.totalorder %s97, %s100
    %p106 = scmp.eq.s32.totalorder %s19, 0
    %p107 = por %p105, %p106
    %p108 = scmp.ne.s32.totalorder %s97, %s100
    %p109 = scmp.eq.s32.totalorder %s24, 7
    %p110 = por %p108, %p109
    %p111 = scmp.ne.s32.totalorder %s100, %s101
    %p112 = scmp.eq.s32.totalorder %s24, 0
    %p113 = por %p111, %p112
    %p114 = scmp.ne.s32.totalorder %s100, %s101
    %p115 = scmp.eq.s32.totalorder %s25, 7
    %p116 = por %p114, %p115
    %p118 = scmp.ne.s32.totalorder %s101, %s117
    %p119 = scmp.eq.s32.totalorder %s25, 0
    %p120 = por %p118, %p119
    %s121 = ssub.s32 %s27, %s41
    %p122 = scmp.eq.s32.totalorder %s121, 0
    %s124 = sadd.s32 %s123, 1
    %s125 = scalar_select %p122, %s123, %s124
    %p128 = pneg %p122
    %p129 = scmp.eq.s32.totalorder %s19, 7
    %p130 = por %p128, %p129
    %p131 = scmp.ne.s32.totalorder %s123, %s126
    %p132 = scmp.eq.s32.totalorder %s19, 0
    %p133 = por %p131, %p132
    %p134 = scmp.ne.s32.totalorder %s123, %s126
    %p135 = scmp.eq.s32.totalorder %s24, 7
    %p136 = por %p134, %p135
    %p137 = scmp.ne.s32.totalorder %s126, %s127
    %p138 = scmp.eq.s32.totalorder %s24, 0
    %p139 = por %p137, %p138
    %p140 = scmp.ne.s32.totalorder %s126, %s127
    %p141 = scmp.eq.s32.totalorder %s25, 7
    %p142 = por %p140, %p141
    %p144 = scmp.ne.s32.totalorder %s127, %s143
    %p145 = scmp.eq.s32.totalorder %s25, 0
    %p146 = por %p144, %p145
    %s147 = ssub.s32 %s27, %s41
    %p148 = scmp.eq.s32.totalorder %s147, 0
    %s150 = sadd.s32 %s149, 1
    %s151 = scalar_select %p148, %s149, %s150
    %p154 = pneg %p148
    %p155 = scmp.eq.s32.totalorder %s19, 7
    %p156 = por %p154, %p155
    %p157 = scmp.ne.s32.totalorder %s149, %s152
    %p158 = scmp.eq.s32.totalorder %s19, 0
    %p159 = por %p157, %p158
    %p160 = scmp.ne.s32.totalorder %s149, %s152
    %p161 = scmp.eq.s32.totalorder %s24, 7
    %p162 = por %p160, %p161
    %p163 = scmp.ne.s32.totalorder %s152, %s153
    %p164 = scmp.eq.s32.totalorder %s24, 0
    %p165 = por %p163, %p164
    %p166 = scmp.ne.s32.totalorder %s152, %s153
    %p167 = scmp.eq.s32.totalorder %s25, 7
    %p168 = por %p166, %p167
    %p170 = scmp.ne.s32.totalorder %s153, %s169
    %p171 = scmp.eq.s32.totalorder %s25, 0
    %p172 = por %p170, %p171
    %s173 = ssub.s32 %s27, %s41
    %p174 = scmp.eq.s32.totalorder %s173, 0
    %s176 = sadd.s32 %s175, 1
    %s177 = scalar_select %p174, %s175, %s176
    %p180 = pneg %p174
    %p181 = scmp.eq.s32.totalorder %s19, 7
    %p182 = por %p180, %p181
    %p183 = scmp.ne.s32.totalorder %s175, %s178
    %p184 = scmp.eq.s32.totalorder %s19, 0
    %p185 = por %p183, %p184
    %p186 = scmp.ne.s32.totalorder %s175, %s178
    %p187 = scmp.eq.s32.totalorder %s24, 7
    %p188 = por %p186, %p187
    %p189 = scmp.ne.s32.totalorder %s178, %s179
    %p190 = scmp.eq.s32.totalorder %s24, 0
    %p191 = por %p189, %p190
    %p192 = scmp.ne.s32.totalorder %s178, %s179
    %p193 = scmp.eq.s32.totalorder %s25, 7
    %p194 = por %p192, %p193
    %p196 = scmp.ne.s32.totalorder %s179, %s195
    %p197 = scmp.eq.s32.totalorder %s25, 0
    %p198 = por %p196, %p197
    %s199 = ssub.s32 %s27, %s41
    %p200 = scmp.eq.s32.totalorder %s199, 0
    %s202 = sadd.s32 %s201, 1
    %s203 = scalar_select %p200, %s201, %s202
    %p206 = pneg %p200
    %p207 = scmp.eq.s32.totalorder %s19, 7
    %p208 = por %p206, %p207
    %p209 = scmp.ne.s32.totalorder %s201, %s204
    %p210 = scmp.eq.s32.totalorder %s19, 0
    %p211 = por %p209, %p210
    %p212 = scmp.ne.s32.totalorder %s201, %s204
    %p213 = scmp.eq.s32.totalorder %s24, 7
    %p214 = por %p212, %p213
    %p215 = scmp.ne.s32.totalorder %s204, %s205
    %p216 = scmp.eq.s32.totalorder %s24, 0
    %p217 = por %p215, %p216
    %p218 = scmp.ne.s32.totalorder %s204, %s205
    %p219 = scmp.eq.s32.totalorder %s25, 7
    %p220 = por %p218, %p219
    %p222 = scmp.ne.s32.totalorder %s205, %s221
    %p223 = scmp.eq.s32.totalorder %s25, 0
    %p224 = por %p222, %p223
    %s225 = ssub.s32 %s27, %s41
    %p226 = scmp.eq.s32.totalorder %s225, 0
    %s228 = sadd.s32 %s227, 1
    %s229 = scalar_select %p226, %s227, %s228
    %p232 = pneg %p226
    %p233 = scmp.eq.s32.totalorder %s19, 7
    %p234 = por %p232, %p233
    %p235 = scmp.ne.s32.totalorder %s227, %s230
    %p236 = scmp.eq.s32.totalorder %s19, 0
    %p237 = por %p235, %p236
    %p238 = scmp.ne.s32.totalorder %s227, %s230
    %p239 = scmp.eq.s32.totalorder %s24, 7
    %p240 = por %p238, %p239
    %p241 = scmp.ne.s32.totalorder %s230, %s231
    %p242 = scmp.eq.s32.totalorder %s24, 0
    %p243 = por %p241, %p242
    %p244 = scmp.ne.s32.totalorder %s230, %s231
    %p245 = scmp.eq.s32.totalorder %s25, 7
    %p246 = por %p244, %p245
    %p248 = scmp.ne.s32.totalorder %s231, %s247
    %p249 = scmp.eq.s32.totalorder %s25, 0
    %p250 = por %p248, %p249
    %s251 = ssub.s32 %s28, %s37
    %p252 = scmp.eq.s32.totalorder %s251, 0
    %s254 = sadd.s32 %s253, 1
    %s255 = scalar_select %p252, %s253, %s254
    %p258 = pneg %p252
    %p259 = scmp.eq.s32.totalorder %s19, 7
    %p260 = por %p258, %p259
    %p261 = scmp.ne.s32.totalorder %s253, %s256
    %p262 = scmp.eq.s32.totalorder %s19, 0
    %p263 = por %p261, %p262
    %p264 = scmp.ne.s32.totalorder %s253, %s256
    %p265 = scmp.eq.s32.totalorder %s24, 7
    %p266 = por %p264, %p265
    %p267 = scmp.ne.s32.totalorder %s256, %s257
    %p268 = scmp.eq.s32.totalorder %s24, 0
    %p269 = por %p267, %p268
    %p270 = scmp.ne.s32.totalorder %s256, %s257
    %p271 = scmp.eq.s32.totalorder %s25, 7
    %p272 = por %p270, %p271
    %p274 = scmp.ne.s32.totalorder %s257, %s273
    %p275 = scmp.eq.s32.totalorder %s25, 0
    %p276 = por %p274, %p275
    %s277 = ssub.s32 %s28, %s37
    %p278 = scmp.eq.s32.totalorder %s277, 0
    %s280 = sadd.s32 %s279, 1
    %s281 = scalar_select %p278, %s279, %s280
    %p284 = pneg %p278
    %p285 = scmp.eq.s32.totalorder %s19, 7
    %p286 = por %p284, %p285
    %p287 = scmp.ne.s32.totalorder %s279, %s282
    %p288 = scmp.eq.s32.totalorder %s19, 0
    %p289 = por %p287, %p288
    %p290 = scmp.ne.s32.totalorder %s279, %s282
    %p291 = scmp.eq.s32.totalorder %s24, 7
    %p292 = por %p290, %p291
    %p293 = scmp.ne.s32.totalorder %s282, %s283
    %p294 = scmp.eq.s32.totalorder %s24, 0
    %p295 = por %p293, %p294
    %p296 = scmp.ne.s32.totalorder %s282, %s283
    %p297 = scmp.eq.s32.totalorder %s25, 7
    %p298 = por %p296, %p297
    %p300 = scmp.ne.s32.totalorder %s283, %s299
    %p301 = scmp.eq.s32.totalorder %s25, 0
    %p302 = por %p300, %p301
    %s303 = ssub.s32 %s26, %s45
    %s304 = ssub.s32 %s27, %s41
    %s305 = sor.u32 %s303, %s304
    %s306 = ssub.s32 %s28, %s37
    %s307 = sor.u32 %s305, %s306
    %p308 = scmp.eq.s32.totalorder %s307, 0
    %s310 = sadd.s32 %s309, 1
    %s311 = scalar_select %p308, %s309, %s310
    %p314 = pneg %p308
    %p315 = scmp.eq.s32.totalorder %s19, 7
    %p316 = por %p314, %p315
    %p317 = scmp.ne.s32.totalorder %s309, %s312
    %p318 = scmp.eq.s32.totalorder %s19, 0
    %p319 = por %p317, %p318
    %p320 = scmp.ne.s32.totalorder %s309, %s312
    %p321 = scmp.eq.s32.totalorder %s24, 7
    %p322 = por %p320, %p321
    %p323 = scmp.ne.s32.totalorder %s312, %s313
    %p324 = scmp.eq.s32.totalorder %s24, 0
    %p325 = por %p323, %p324
    %p326 = scmp.ne.s32.totalorder %s312, %s313
    %p327 = scmp.eq.s32.totalorder %s25, 7
    %p328 = por %p326, %p327
    %p330 = scmp.ne.s32.totalorder %s313, %s329
    %p331 = scmp.eq.s32.totalorder %s25, 0
    %p332 = por %p330, %p331
    %s333 = ssub.s32 %s26, %s45
    %s334 = ssub.s32 %s27, %s41
    %s335 = sor.u32 %s333, %s334
    %s336 = ssub.s32 %s28, %s37
    %s337 = sor.u32 %s335, %s336
    %p338 = scmp.eq.s32.totalorder %s337, 0
    %s340 = sadd.s32 %s339, 1
    %s341 = scalar_select %p338, %s339, %s340
    %p344 = pneg %p338
    %p345 = scmp.eq.s32.totalorder %s19, 7
    %p346 = por %p344, %p345
    %p347 = scmp.ne.s32.totalorder %s339, %s342
    %p348 = scmp.eq.s32.totalorder %s19, 0
    %p349 = por %p347, %p348
    %p350 = scmp.ne.s32.totalorder %s339, %s342
    %p351 = scmp.eq.s32.totalorder %s24, 7
    %p352 = por %p350, %p351
    %p353 = scmp.ne.s32.totalorder %s342, %s343
    %p354 = scmp.eq.s32.totalorder %s24, 0
    %p355 = por %p353, %p354
    %p356 = scmp.ne.s32.totalorder %s342, %s343
    %p357 = scmp.eq.s32.totalorder %s25, 7
    %p358 = por %p356, %p357
    %p360 = scmp.ne.s32.totalorder %s343, %s359
    %p361 = scmp.eq.s32.totalorder %s25, 0
    %p362 = por %p360, %p361
    %s363 = ssub.s32 %s26, %s45
    %s364 = ssub.s32 %s27, %s41
    %s365 = sor.u32 %s363, %s364
    %s366 = ssub.s32 %s28, %s37
    %s367 = sor.u32 %s365, %s366
    %p368 = scmp.eq.s32.totalorder %s367, 0
    %s370 = sadd.s32 %s369, 1
    %s371 = scalar_select %p368, %s369, %s370
    %p374 = pneg %p368
    %p375 = scmp.eq.s32.totalorder %s19, 7
    %p376 = por %p374, %p375
    %p377 = scmp.ne.s32.totalorder %s369, %s372
    %p378 = scmp.eq.s32.totalorder %s19, 0
    %p379 = por %p377, %p378
    %p380 = scmp.ne.s32.totalorder %s369, %s372
    %p381 = scmp.eq.s32.totalorder %s24, 7
    %p382 = por %p380, %p381
    %p383 = scmp.ne.s32.totalorder %s372, %s373
    %p384 = scmp.eq.s32.totalorder %s24, 0
    %p385 = por %p383, %p384
    %p386 = scmp.ne.s32.totalorder %s372, %s373
    %p387 = scmp.eq.s32.totalorder %s25, 7
    %p388 = por %p386, %p387
    %p390 = scmp.ne.s32.totalorder %s373, %s389
    %p391 = scmp.eq.s32.totalorder %s25, 0
    %p392 = por %p390, %p391
    %p393 = scmp.le.s32.totalorder 1, %s19
    %p394 = scmp.lt.s32.totalorder %s19, 9
    %p395 = pnand %p393, %p394
    %p396 = pneg %p395
    // Predicated region
    $region9: #{llama_forward.7} parent=5 // pred_check
      _
    $region10: #{llama_forward.7} parent=5 // pred_check_branch
      %398 = sbr.rel (%p395) target = $region12
    $region11: #{llama_forward.7} parent=5 // pred_region
      %s399 = ssub.s32 %s19, 1
      // Predicated region
      $region13: #{llama_forward.7} parent=11 // pred_check
        %p400 = pneg %p87
      $region14: #{llama_forward.7} parent=11 // pred_check_branch
        %402 = sbr.rel (%p400) target = $region16
      $region15: #{llama_forward.7} parent=11 // pred_region
        _
      $region16: #{llama_forward.7} parent=11 // pred_fallthru
        _
      // Predicated region
      $region17: #{llama_forward.7} parent=11 // pred_check
        %p403 = pneg %p269
      $region18: #{llama_forward.7} parent=11 // pred_check_branch
        %405 = sbr.rel (%p403) target = $region20
      $region19: #{llama_forward.7} parent=11 // pred_region
        %p406 = scmp.lt.s32.totalorder %s31, 0
        %s407 = scalar_select %p406, %s31, 0
        %s408 = smul.addr %s407, 8
        %s409 = scalar_lea.vmem %s8, %s408
      $region20: #{llama_forward.7} parent=11 // pred_fallthru
        _
      // Predicated region
      $region21: #{llama_forward.7} parent=11 // pred_check
        %p410 = pneg %p295
      $region22: #{llama_forward.7} parent=11 // pred_check_branch
        %412 = sbr.rel (%p410) target = $region24
      $region23: #{llama_forward.7} parent=11 // pred_region
        %p413 = scmp.lt.s32.totalorder %s31, 0
        %s414 = scalar_select %p413, %s31, 0
        %s415 = smul.addr %s414, 8
        %s416 = scalar_lea.vmem %s9, %s415
      $region24: #{llama_forward.7} parent=11 // pred_fallthru
        _
    $region12: #{llama_forward.7} parent=5 // pred_fallthru
      _
    %p417 = scmp.lt.s32.totalorder %s19, 8
    // Predicated region
    $region25: #{llama_forward.7} parent=5 // pred_check
      %p418 = pneg %p417
    $region26: #{llama_forward.7} parent=5 // pred_check_branch
      %420 = sbr.rel (%p418) target = $region28
    $region27: #{llama_forward.7} parent=5 // pred_region
      // Predicated region
      $region29: #{llama_forward.7} parent=27 // pred_check
        %p421 = pneg %p60
      $region30: #{llama_forward.7} parent=27 // pred_check_branch
        %423 = sbr.rel (%p421) target = $region32
      $region31: #{llama_forward.7} parent=27 // pred_region
        %p424 = scmp.lt.s32.totalorder %s26, 1
        %s425 = scalar_select %p424, %s26, 1
        %p426 = scmp.lt.s32.totalorder %s28, 0
        %s427 = scalar_select %p426, %s28, 0
        %s428 = sadd.s32 %s427, %s425
        %s429 = smul.addr %s428, 8
        %s430 = scalar_lea.vmem %s0, %s429
      $region32: #{llama_forward.7} parent=27 // pred_fallthru
        _
      // Predicated region
      $region33: #{llama_forward.7} parent=27 // pred_check
        %p431 = pneg %p107
      $region34: #{llama_forward.7} parent=27 // pred_check_branch
        %433 = sbr.rel (%p431) target = $region36
      $region35: #{llama_forward.7} parent=27 // pred_region
        %p434 = scmp.lt.s32.totalorder %s27, 3
        %s435 = scalar_select %p434, %s27, 3
        %s436 = smul.addr %s435, 4
        %s437 = smul.addr %s436, 4
        %s438 = scalar_lea.vmem %s2, %s437
      $region36: #{llama_forward.7} parent=27 // pred_fallthru
        _
      // Predicated region
      $region37: #{llama_forward.7} parent=27 // pred_check
        %p439 = pneg %p133
      $region38: #{llama_forward.7} parent=27 // pred_check_branch
        %441 = sbr.rel (%p439) target = $region40
      $region39: #{llama_forward.7} parent=27 // pred_region
        %p442 = scmp.lt.s32.totalorder %s27, 3
        %s443 = scalar_select %p442, %s27, 3
        %s444 = smul.addr %s443, 4
        %s445 = smul.addr %s444, 4
        %s446 = scalar_lea.vmem %s3, %s445
      $region40: #{llama_forward.7} parent=27 // pred_fallthru
        _
      // Predicated region
      $region41: #{llama_forward.7} parent=27 // pred_check
        %p447 = pneg %p159
      $region42: #{llama_forward.7} parent=27 // pred_check_branch
        %449 = sbr.rel (%p447) target = $region44
      $region43: #{llama_forward.7} parent=27 // pred_region
        %p450 = scmp.lt.s32.totalorder %s27, 3
        %s451 = scalar_select %p450, %s27, 3
        %s452 = smul.addr %s451, 4
        %s453 = smul.addr %s452, 4
        %s454 = scalar_lea.vmem %s4, %s453
      $region44: #{llama_forward.7} parent=27 // pred_fallthru
        _
      // Predicated region
      $region45: #{llama_forward.7} parent=27 // pred_check
        %p455 = pneg %p185
      $region46: #{llama_forward.7} parent=27 // pred_check_branch
        %457 = sbr.rel (%p455) target = $region48
      $region47: #{llama_forward.7} parent=27 // pred_region
        %p458 = scmp.lt.s32.totalorder %s27, 3
        %s459 = scalar_select %p458, %s27, 3
        %s460 = scalar_lea.vmem %s5, %s459
      $region48: #{llama_forward.7} parent=27 // pred_fallthru
        _
      // Predicated region
      $region49: #{llama_forward.7} parent=27 // pred_check
        %p461 = pneg %p211
      $region50: #{llama_forward.7} parent=27 // pred_check_branch
        %463 = sbr.rel (%p461) target = $region52
      $region51: #{llama_forward.7} parent=27 // pred_region
        %p464 = scmp.lt.s32.totalorder %s27, 3
        %s465 = scalar_select %p464, %s27, 3
        %s466 = scalar_lea.vmem %s6, %s465
      $region52: #{llama_forward.7} parent=27 // pred_fallthru
        _
      // Predicated region
      $region53: #{llama_forward.7} parent=27 // pred_check
        %p467 = pneg %p237
      $region54: #{llama_forward.7} parent=27 // pred_check_branch
        %469 = sbr.rel (%p467) target = $region56
      $region55: #{llama_forward.7} parent=27 // pred_region
        %p470 = scmp.lt.s32.totalorder %s27, 3
        %s471 = scalar_select %p470, %s27, 3
        %s472 = scalar_lea.vmem %s7, %s471
      $region56: #{llama_forward.7} parent=27 // pred_fallthru
        _
    $region28: #{llama_forward.7} parent=5 // pred_fallthru
      _
    %p473 = scmp.le.s32.totalorder 1, %s19
    %p474 = scmp.lt.s32.totalorder %s19, 9
    %p475 = pnand %p473, %p474
    %p476 = pneg %p475
    // Predicated region
    $region57: #{llama_forward.7} parent=5 // pred_check
      _
    $region58: #{llama_forward.7} parent=5 // pred_check_branch
      %478 = sbr.rel (%p475) target = $region60
    $region59: #{llama_forward.7} parent=5 // pred_region
      %s479 = ssub.s32 %s19, 1
      %p480 = scmp.lt.s32.totalorder %s29, 1
      %s481 = scalar_select %p480, %s29, 1
      %p482 = scmp.lt.s32.totalorder %s31, 0
      %s483 = scalar_select %p482, %s31, 0
      %s484 = sadd.s32 %s483, %s481
      %s485 = smul.addr %s484, 8
      %s486 = scalar_lea.vmem %s0, %s485
      %p487 = pneg %p66
      %p488 = pneg %p63
      %p489 = pneg %p87
      %p490 = pneg %p84
      %p491 = scmp.lt.s32.totalorder %s30, 3
      %s492 = scalar_select %p491, %s30, 3
      %s493 = smul.addr %s492, 4
      %s494 = smul.addr %s493, 4
      %s495 = scalar_lea.vmem %s2, %s494
      %p496 = pneg %p113
      %p497 = pneg %p110
      %p498 = scmp.lt.s32.totalorder %s30, 3
      %s499 = scalar_select %p498, %s30, 3
      %s500 = smul.addr %s499, 4
      %s501 = smul.addr %s500, 4
      %s502 = scalar_lea.vmem %s3, %s501
      %p503 = pneg %p139
      %p504 = pneg %p136
      %p505 = scmp.lt.s32.totalorder %s30, 3
      %s506 = scalar_select %p505, %s30, 3
      %s507 = smul.addr %s506, 4
      %s508 = smul.addr %s507, 4
      %s509 = scalar_lea.vmem %s4, %s508
      %p510 = pneg %p165
      %p511 = pneg %p162
      %p512 = scmp.lt.s32.totalorder %s30, 3
      %s513 = scalar_select %p512, %s30, 3
      %s514 = scalar_lea.vmem %s5, %s513
      %p515 = pneg %p191
      %p516 = pneg %p188
      %p517 = scmp.lt.s32.totalorder %s30, 3
      %s518 = scalar_select %p517, %s30, 3
      %s519 = scalar_lea.vmem %s6, %s518
      %p520 = pneg %p217
      %p521 = pneg %p214
      %p522 = scmp.lt.s32.totalorder %s30, 3
      %s523 = scalar_select %p522, %s30, 3
      %s524 = scalar_lea.vmem %s7, %s523
      %p525 = pneg %p243
      %p526 = pneg %p240
      %p527 = scmp.lt.s32.totalorder %s31, 0
      %s528 = scalar_select %p527, %s31, 0
      %s529 = smul.addr %s528, 8
      %s530 = scalar_lea.vmem %s8, %s529
      %p531 = pneg %p269
      %p532 = pneg %p266
      %p533 = scmp.lt.s32.totalorder %s31, 0
      %s534 = scalar_select %p533, %s31, 0
      %s535 = smul.addr %s534, 8
      %s536 = scalar_lea.vmem %s9, %s535
      %p537 = pneg %p295
      %p538 = pneg %p292
      %p539 = pneg %p325
      %p540 = pneg %p322
      %p541 = scmp.lt.s32.totalorder %s29, 1
      %s542 = scalar_select %p541, %s29, 1
      %p543 = scmp.lt.s32.totalorder %s30, 3
      %s544 = scalar_select %p543, %s30, 3
      %p545 = scmp.lt.s32.totalorder %s31, 0
      %s546 = scalar_select %p545, %s31, 0
      %s547 = sadd.s32 %s546, %s544
      %s548 = smul.addr %s542, 4
      %s549 = sadd.s32 %s547, %s548
      %s550 = smul.addr %s549, 4
      %s551 = scalar_lea.vmem %s10, %s550
      %p552 = pneg %p355
      %p553 = pneg %p352
      %p554 = scmp.lt.s32.totalorder %s29, 1
      %s555 = scalar_select %p554, %s29, 1
      %p556 = scmp.lt.s32.totalorder %s30, 3
      %s557 = scalar_select %p556, %s30, 3
      %p558 = scmp.lt.s32.totalorder %s31, 0
      %s559 = scalar_select %p558, %s31, 0
      %s560 = sadd.s32 %s559, %s557
      %s561 = smul.addr %s555, 4
      %s562 = sadd.s32 %s560, %s561
      %s563 = smul.addr %s562, 4
      %s564 = scalar_lea.vmem %s11, %s563
      %p565 = pneg %p385
      %p566 = pneg %p382
      %p567 = scmp.lt.s32.totalorder %s29, 1
      %s568 = scalar_select %p567, %s29, 1
      %p569 = scmp.lt.s32.totalorder %s30, 3
      %s570 = scalar_select %p569, %s30, 3
      %p571 = scmp.lt.s32.totalorder %s31, 0
      %s572 = scalar_select %p571, %s31, 0
      %s573 = sadd.s32 %s572, %s570
      %s574 = smul.addr %s568, 4
      %s575 = sadd.s32 %s573, %s574
      %s576 = smul.addr %s575, 4
      %s577 = scalar_lea.vmem %s12, %s576
      %p578 = scmp.lt.s32.totalorder %s29, 1
      %s579 = scalar_select %p578, %s29, 1
      %p580 = scmp.lt.s32.totalorder %s31, 0
      %s581 = scalar_select %p580, %s31, 0
      %s582 = sadd.s32 %s581, %s579
      %s583 = smul.addr %s582, 8
      %s584 = scalar_lea.vmem %s0, %s583
      %p585 = scmp.lt.s32.totalorder %s30, 3
      %s586 = scalar_select %p585, %s30, 3
      %s587 = smul.addr %s586, 4
      %s588 = smul.addr %s587, 4
      %s589 = scalar_lea.vmem %s2, %s588
      %p590 = scmp.lt.s32.totalorder %s30, 3
      %s591 = scalar_select %p590, %s30, 3
      %s592 = smul.addr %s591, 4
      %s593 = smul.addr %s592, 4
      %s594 = scalar_lea.vmem %s3, %s593
      %p595 = scmp.lt.s32.totalorder %s30, 3
      %s596 = scalar_select %p595, %s30, 3
      %s597 = smul.addr %s596, 4
      %s598 = smul.addr %s597, 4
      %s599 = scalar_lea.vmem %s4, %s598
      %p600 = scmp.lt.s32.totalorder %s30, 3
      %s601 = scalar_select %p600, %s30, 3
      %s602 = scalar_lea.vmem %s5, %s601
      %p603 = scmp.lt.s32.totalorder %s30, 3
      %s604 = scalar_select %p603, %s30, 3
      %s605 = scalar_lea.vmem %s6, %s604
      %p606 = scmp.lt.s32.totalorder %s30, 3
      %s607 = scalar_select %p606, %s30, 3
      %s608 = scalar_lea.vmem %s7, %s607
      %p609 = scmp.lt.s32.totalorder %s31, 0
      %s610 = scalar_select %p609, %s31, 0
      %s611 = smul.addr %s610, 8
      %s612 = scalar_lea.vmem %s8, %s611
      %p613 = scmp.lt.s32.totalorder %s31, 0
      %s614 = scalar_select %p613, %s31, 0
      %s615 = smul.addr %s614, 8
      %s616 = scalar_lea.vmem %s9, %s615
      %p617 = scmp.lt.s32.totalorder %s29, 1
      %s618 = scalar_select %p617, %s29, 1
      %p619 = scmp.lt.s32.totalorder %s30, 3
      %s620 = scalar_select %p619, %s30, 3
      %p621 = scmp.lt.s32.totalorder %s31, 0
      %s622 = scalar_select %p621, %s31, 0
      %s623 = sadd.s32 %s622, %s620
      %s624 = smul.addr %s618, 4
      %s625 = sadd.s32 %s623, %s624
      %s626 = smul.addr %s625, 4
      %s627 = scalar_lea.vmem %s10, %s626
      %p628 = scmp.lt.s32.totalorder %s29, 1
      %s629 = scalar_select %p628, %s29, 1
      %p630 = scmp.lt.s32.totalorder %s30, 3
      %s631 = scalar_select %p630, %s30, 3
      %p632 = scmp.lt.s32.totalorder %s31, 0
      %s633 = scalar_select %p632, %s31, 0
      %s634 = sadd.s32 %s633, %s631
      %s635 = smul.addr %s629, 4
      %s636 = sadd.s32 %s634, %s635
      %s637 = smul.addr %s636, 4
      %s638 = scalar_lea.vmem %s11, %s637
      %p639 = scmp.lt.s32.totalorder %s29, 1
      %s640 = scalar_select %p639, %s29, 1
      %p641 = scmp.lt.s32.totalorder %s30, 3
      %s642 = scalar_select %p641, %s30, 3
      %p643 = scmp.lt.s32.totalorder %s31, 0
      %s644 = scalar_select %p643, %s31, 0
      %s645 = sadd.s32 %s644, %s642
      %s646 = smul.addr %s640, 4
      %s647 = sadd.s32 %s645, %s646
      %s648 = smul.addr %s647, 4
      %s649 = scalar_lea.vmem %s12, %s648
      %v651 = vld [vmem:[%s584] sm:$0xff]
      %v652 = vmul.f32 %v651, %v651
      %vm653 = vcmask 261120
      %v654 = vsel %vm653, %v652, 0.0
      %655 = vadd.xlane.f32.xlu0 %v654
      %v656 = vpop.xlane.xlu0 %655
      %v657 = vrcp.pop 32.0
      %v658 = vmul.f32 %v656, %v657
      %v659 = vld [vmem:[%s1] sm:$0x1]
      %v661 = vlaneseq
      %v662 = vshrl.u32 %v661, 7
      %v663 = vsub.s32 0, %v662
      %v664 = vrot.slane %v659, %v663
      %v666 = vmul.f32 %v664, %v651
      %v667 = vadd.f32 %v658, 1e-05
      %v668 = vrsqrt.pop %v667
      %v669 = vmul.f32 %v666, %v668
      %v670 = vpack.c.bf16 %v669, %v669
      %v671 = vld [vmem:[%s589] sm:$0xf]
      %v672 = vld [vmem:[%s589 + $0x4] sm:$0xf]
      %v673 = vld [vmem:[%s589 + $0x8] sm:$0xf]
      %v674 = vld [vmem:[%s589 + $0xc] sm:$0xf]
      %v675 = vld [vmem:[%s602] sm:$0x1]
      %v677 = vlaneseq
      %v678 = vshrl.u32 %v677, 7
      %v679 = vsub.s32 0, %v678
      %v680 = vrot.slane %v675, %v679
      %v686 = vunpack.c.l.b16 %v671
      %v687 = vunpack.c.l.b16 %v672
      %v688 = vunpack.c.l.b16 %v673
      %v689 = vunpack.c.l.b16 %v674
      %v690 = vpack.c.b16 %v687, %v686
      %v691 = vpack.c.b16 %v689, %v688
      %v695 = vsel %vm653, %v670, 0
      %697 = vmatprep.subr.bf16.mxu0 0
      %698 = vmatpush1.bf16.msra.mxu0 %v690
      %699 = vmatprep.subr.bf16.mxu0 0
      %700 = vmatpush1.bf16.msra.mxu0 %v691
      %701 = vmatprep.subr.bf16.mxu0 0
      %702 = vmatpush1.bf16.msra.mxu0 0
      %703 = vmatprep.subr.bf16.mxu0 0
      %704 = vmatpush1.bf16.msra.mxu0 0
      %705 = vmatprep.subr.bf16.mxu0 0
      %706 = vmatpush1.bf16.msra.mxu0 0
      %707 = vmatprep.subr.bf16.mxu0 0
      %708 = vmatpush1.bf16.msra.mxu0 0
      %709 = vmatprep.subr.bf16.mxu0 0
      %710 = vmatpush1.bf16.msra.mxu0 0
      %711 = vmatprep.subr.bf16.mxu0 0
      %712 = vmatpush1.bf16.msra.mxu0 0
      %713 = vmatprep.subr.bf16.mxu0 0
      %714 = vmatpush1.bf16.msra.mxu0 0
      %715 = vmatprep.subr.bf16.mxu0 0
      %716 = vmatpush1.bf16.msra.mxu0 0
      %717 = vmatprep.subr.bf16.mxu0 0
      %718 = vmatpush1.bf16.msra.mxu0 0
      %719 = vmatprep.subr.bf16.mxu0 0
      %720 = vmatpush1.bf16.msra.mxu0 0
      %721 = vmatprep.subr.bf16.mxu0 0
      %722 = vmatpush1.bf16.msra.mxu0 0
      %723 = vmatprep.subr.bf16.mxu0 0
      %724 = vmatpush1.bf16.msra.mxu0 0
      %725 = vmatprep.subr.bf16.mxu0 0
      %726 = vmatpush1.bf16.msra.mxu0 0
      %727 = vmatprep.subr.bf16.mxu0 0
      %728 = vmatpush1.bf16.msra.mxu0 0
      %729 = vmatprep.mubr.bf16.mxu0 0
      %730 = vmatmul.mubr.bf16.gmra.mrb[0].mxu0 %v695
      %v731 = vpop.f32.mrb[0].mxu0
      %v732 = vadd.f32 %v680, %v731
      %v733 = vpop.f32.mrb[0].mxu0
      %v734 = vpop.f32.mrb[0].mxu0
      %v735 = vpop.f32.mrb[0].mxu0
      %736 = vdwg.mxu0
      %v737 = vld [vmem:[%s594] sm:$0xf]
      %v738 = vld [vmem:[%s594 + $0x4] sm:$0xf]
      %v739 = vld [vmem:[%s594 + $0x8] sm:$0xf]
      %v740 = vld [vmem:[%s594 + $0xc] sm:$0xf]
      %v741 = vld [vmem:[%s605] sm:$0x1]
      %v743 = vlaneseq
      %v744 = vshrl.u32 %v743, 7
      %v745 = vsub.s32 0, %v744
      %v746 = vrot.slane %v741, %v745
      %v752 = vunpack.c.l.b16 %v737
      %v753 = vunpack.c.l.b16 %v738
      %v754 = vunpack.c.l.b16 %v739
      %v755 = vunpack.c.l.b16 %v740
      %v756 = vpack.c.b16 %v753, %v752
      %v757 = vpack.c.b16 %v755, %v754
      %760 = vmatprep.subr.bf16.mxu0 0
      %761 = vmatpush1.bf16.msra.mxu0 %v756
      %762 = vmatprep.subr.bf16.mxu0 0
      %763 = vmatpush1.bf16.msra.mxu0 %v757
      %764 = vmatprep.subr.bf16.mxu0 0
      %765 = vmatpush1.bf16.msra.mxu0 0
      %766 = vmatprep.subr.bf16.mxu0 0
      %767 = vmatpush1.bf16.msra.mxu0 0
      %768 = vmatprep.subr.bf16.mxu0 0
      %769 = vmatpush1.bf16.msra.mxu0 0
      %770 = vmatprep.subr.bf16.mxu0 0
      %771 = vmatpush1.bf16.msra.mxu0 0
      %772 = vmatprep.subr.bf16.mxu0 0
      %773 = vmatpush1.bf16.msra.mxu0 0
      %774 = vmatprep.subr.bf16.mxu0 0
      %775 = vmatpush1.bf16.msra.mxu0 0
      %776 = vmatprep.subr.bf16.mxu0 0
      %777 = vmatpush1.bf16.msra.mxu0 0
      %778 = vmatprep.subr.bf16.mxu0 0
      %779 = vmatpush1.bf16.msra.mxu0 0
      %780 = vmatprep.subr.bf16.mxu0 0
      %781 = vmatpush1.bf16.msra.mxu0 0
      %782 = vmatprep.subr.bf16.mxu0 0
      %783 = vmatpush1.bf16.msra.mxu0 0
      %784 = vmatprep.subr.bf16.mxu0 0
      %785 = vmatpush1.bf16.msra.mxu0 0
      %786 = vmatprep.subr.bf16.mxu0 0
      %787 = vmatpush1.bf16.msra.mxu0 0
      %788 = vmatprep.subr.bf16.mxu0 0
      %789 = vmatpush1.bf16.msra.mxu0 0
      %790 = vmatprep.subr.bf16.mxu0 0
      %791 = vmatpush1.bf16.msra.mxu0 0
      %792 = vmatprep.mubr.bf16.mxu0 0
      %793 = vmatmul.mubr.bf16.gmra.mrb[0].mxu0 %v695
      %v794 = vpop.f32.mrb[0].mxu0
      %v795 = vadd.f32 %v746, %v794
      %v796 = vpop.f32.mrb[0].mxu0
      %v797 = vpop.f32.mrb[0].mxu0
      %v798 = vpop.f32.mrb[0].mxu0
      %799 = vdwg.mxu0
      %v800 = vld [vmem:[%s599] sm:$0xf]
      %v801 = vld [vmem:[%s599 + $0x4] sm:$0xf]
      %v802 = vld [vmem:[%s599 + $0x8] sm:$0xf]
      %v803 = vld [vmem:[%s599 + $0xc] sm:$0xf]
      %v804 = vld [vmem:[%s608] sm:$0x1]
      %v806 = vlaneseq
      %v807 = vshrl.u32 %v806, 7
      %v808 = vsub.s32 0, %v807
      %v809 = vrot.slane %v804, %v808
      %v815 = vunpack.c.l.b16 %v800
      %v816 = vunpack.c.l.b16 %v801
      %v817 = vunpack.c.l.b16 %v802
      %v818 = vunpack.c.l.b16 %v803
      %v819 = vpack.c.b16 %v816, %v815
      %v820 = vpack.c.b16 %v818, %v817
      %823 = vmatprep.subr.bf16.mxu0 0
      %824 = vmatpush1.bf16.msra.mxu0 %v819
      %825 = vmatprep.subr.bf16.mxu0 0
      %826 = vmatpush1.bf16.msra.mxu0 %v820
      %827 = vmatprep.subr.bf16.mxu0 0
      %828 = vmatpush1.bf16.msra.mxu0 0
      %829 = vmatprep.subr.bf16.mxu0 0
      %830 = vmatpush1.bf16.msra.mxu0 0
      %831 = vmatprep.subr.bf16.mxu0 0
      %832 = vmatpush1.bf16.msra.mxu0 0
      %833 = vmatprep.subr.bf16.mxu0 0
      %834 = vmatpush1.bf16.msra.mxu0 0
      %835 = vmatprep.subr.bf16.mxu0 0
      %836 = vmatpush1.bf16.msra.mxu0 0
      %837 = vmatprep.subr.bf16.mxu0 0
      %838 = vmatpush1.bf16.msra.mxu0 0
      %839 = vmatprep.subr.bf16.mxu0 0
      %840 = vmatpush1.bf16.msra.mxu0 0
      %841 = vmatprep.subr.bf16.mxu0 0
      %842 = vmatpush1.bf16.msra.mxu0 0
      %843 = vmatprep.subr.bf16.mxu0 0
      %844 = vmatpush1.bf16.msra.mxu0 0
      %845 = vmatprep.subr.bf16.mxu0 0
      %846 = vmatpush1.bf16.msra.mxu0 0
      %847 = vmatprep.subr.bf16.mxu0 0
      %848 = vmatpush1.bf16.msra.mxu0 0
      %849 = vmatprep.subr.bf16.mxu0 0
      %850 = vmatpush1.bf16.msra.mxu0 0
      %851 = vmatprep.subr.bf16.mxu0 0
      %852 = vmatpush1.bf16.msra.mxu0 0
      %853 = vmatprep.subr.bf16.mxu0 0
      %854 = vmatpush1.bf16.msra.mxu0 0
      %855 = vmatprep.mubr.bf16.mxu0 0
      %856 = vmatmul.mubr.bf16.gmra.mrb[0].mxu0 %v695
      %v857 = vpop.f32.mrb[0].mxu0
      %v858 = vadd.f32 %v809, %v857
      %v859 = vpop.f32.mrb[0].mxu0
      %v860 = vpop.f32.mrb[0].mxu0
      %v861 = vpop.f32.mrb[0].mxu0
      %862 = vdwg.mxu0
      %v863 = vld [vmem:[%s612] sm:$0xff]
      %v864 = vld [vmem:[%s616] sm:$0xff]
      %v865 = vmul.f32 %v732, %v863
      %867 = vrot.lane.b32.xlu0 %v732, 124
      %v868 = vpop.permute.xlu0 %867
      %870 = vrot.lane.b32.xlu0 %v732, 4
      %v871 = vpop.permute.xlu0 %870
      %vm873 = vcmask 31744
      %v874 = vsel %vm873, %v868, %v871
      %v875 = vmul.f32 %v874, %v864
      %v876 = vadd.f32 %v865, %v875
      %v877 = vmul.f32 %v795, %v863
      %879 = vrot.lane.b32.xlu0 %v795, 124
      %v880 = vpop.permute.xlu0 %879
      %882 = vrot.lane.b32.xlu0 %v795, 4
      %v883 = vpop.permute.xlu0 %882
      %v885 = vsel %vm873, %v880, %v883
      %v886 = vmul.f32 %v885, %v864
      %v887 = vadd.f32 %v877, %v886
      %v888 = vpack.c.bf16 %v876, %v876
      %vm889 = vcmask 60416
      %890 = vst.msk [vmem:[%s627] sm:$0xf] %vm889, %v888
      %v891 = vpack.c.bf16 %v887, %v887
      %892 = vst.msk [vmem:[%s638] sm:$0xf] %vm889, %v891
      %v893 = vpack.c.bf16 %v858, %v858
      %894 = vst.msk [vmem:[%s649] sm:$0xf] %vm889, %v893
      %p895 = scmp.lt.s32.totalorder %s29, 1
      %s896 = scalar_select %p895, %s29, 1
      %p897 = scmp.lt.s32.totalorder %s30, 3
      %s898 = scalar_select %p897, %s30, 3
      %p899 = scmp.lt.s32.totalorder %s31, 0
      %s900 = scalar_select %p899, %s31, 0
      %s901 = sadd.s32 %s900, %s898
      %s902 = smul.addr %s896, 4
      %s903 = sadd.s32 %s901, %s902
      %s904 = smul.addr %s903, 4
      %s905 = scalar_lea.vmem %s10, %s904
      %p906 = scmp.lt.s32.totalorder %s29, 1
      %s907 = scalar_select %p906, %s29, 1
      %p908 = scmp.lt.s32.totalorder %s30, 3
      %s909 = scalar_select %p908, %s30, 3
      %p910 = scmp.lt.s32.totalorder %s31, 0
      %s911 = scalar_select %p910, %s31, 0
      %s912 = sadd.s32 %s911, %s909
      %s913 = smul.addr %s907, 4
      %s914 = sadd.s32 %s912, %s913
      %s915 = smul.addr %s914, 4
      %s916 = scalar_lea.vmem %s11, %s915
      %p917 = scmp.lt.s32.totalorder %s29, 1
      %s918 = scalar_select %p917, %s29, 1
      %p919 = scmp.lt.s32.totalorder %s30, 3
      %s920 = scalar_select %p919, %s30, 3
      %p921 = scmp.lt.s32.totalorder %s31, 0
      %s922 = scalar_select %p921, %s31, 0
      %s923 = sadd.s32 %s922, %s920
      %s924 = smul.addr %s918, 4
      %s925 = sadd.s32 %s923, %s924
      %s926 = smul.addr %s925, 4
      %s927 = scalar_lea.vmem %s12, %s926
      // Predicated region
      $region61: #{llama_forward.7} parent=59 // pred_check
        %p928 = pneg %p322
      $region62: #{llama_forward.7} parent=59 // pred_check_branch
        %930 = sbr.rel (%p928) target = $region64
      $region63: #{llama_forward.7} parent=59 // pred_region
        _
      $region64: #{llama_forward.7} parent=59 // pred_fallthru
        _
      // Predicated region
      $region65: #{llama_forward.7} parent=59 // pred_check
        %p931 = pneg %p352
      $region66: #{llama_forward.7} parent=59 // pred_check_branch
        %933 = sbr.rel (%p931) target = $region68
      $region67: #{llama_forward.7} parent=59 // pred_region
        _
      $region68: #{llama_forward.7} parent=59 // pred_fallthru
        _
      // Predicated region
      $region69: #{llama_forward.7} parent=59 // pred_check
        %p934 = pneg %p382
      $region70: #{llama_forward.7} parent=59 // pred_check_branch
        %936 = sbr.rel (%p934) target = $region72
      $region71: #{llama_forward.7} parent=59 // pred_region
        _
      $region72: #{llama_forward.7} parent=59 // pred_fallthru
        _
    $region60: #{llama_forward.7} parent=5 // pred_fallthru
      _
    %p937 = scmp.le.s32.totalorder 2, %s19
    // Predicated region
    $region73: #{llama_forward.7} parent=5 // pred_check
      %p938 = pneg %p937
    $region74: #{llama_forward.7} parent=5 // pred_check_branch
      %940 = sbr.rel (%p938) target = $region76
    $region75: #{llama_forward.7} parent=5 // pred_region
      %s941 = ssub.s32 %s19, 2
      // Predicated region
      $region77: #{llama_forward.7} parent=75 // pred_check
        %p942 = pneg %p328
      $region78: #{llama_forward.7} parent=75 // pred_check_branch
        %944 = sbr.rel (%p942) target = $region80
      $region79: #{llama_forward.7} parent=75 // pred_region
        %p945 = scmp.lt.s32.totalorder %s32, 1
        %s946 = scalar_select %p945, %s32, 1
        %p947 = scmp.lt.s32.totalorder %s33, 3
        %s948 = scalar_select %p947, %s33, 3
        %p949 = scmp.lt.s32.totalorder %s34, 0
        %s950 = scalar_select %p949, %s34, 0
        %s951 = sadd.s32 %s950, %s948
        %s952 = smul.addr %s946, 4
        %s953 = sadd.s32 %s951, %s952
        %s954 = smul.addr %s953, 4
        %s955 = scalar_lea.vmem %s10, %s954
      $region80: #{llama_forward.7} parent=75 // pred_fallthru
        _
      // Predicated region
      $region81: #{llama_forward.7} parent=75 // pred_check
        %p956 = pneg %p358
      $region82: #{llama_forward.7} parent=75 // pred_check_branch
        %958 = sbr.rel (%p956) target = $region84
      $region83: #{llama_forward.7} parent=75 // pred_region
        %p959 = scmp.lt.s32.totalorder %s32, 1
        %s960 = scalar_select %p959, %s32, 1
        %p961 = scmp.lt.s32.totalorder %s33, 3
        %s962 = scalar_select %p961, %s33, 3
        %p963 = scmp.lt.s32.totalorder %s34, 0
        %s964 = scalar_select %p963, %s34, 0
        %s965 = sadd.s32 %s964, %s962
        %s966 = smul.addr %s960, 4
        %s967 = sadd.s32 %s965, %s966
        %s968 = smul.addr %s967, 4
        %s969 = scalar_lea.vmem %s11, %s968
      $region84: #{llama_forward.7} parent=75 // pred_fallthru
        _
      // Predicated region
      $region85: #{llama_forward.7} parent=75 // pred_check
        %p970 = pneg %p388
      $region86: #{llama_forward.7} parent=75 // pred_check_branch
        %972 = sbr.rel (%p970) target = $region88
      $region87: #{llama_forward.7} parent=75 // pred_region
        %p973 = scmp.lt.s32.totalorder %s32, 1
        %s974 = scalar_select %p973, %s32, 1
        %p975 = scmp.lt.s32.totalorder %s33, 3
        %s976 = scalar_select %p975, %s33, 3
        %p977 = scmp.lt.s32.totalorder %s34, 0
        %s978 = scalar_select %p977, %s34, 0
        %s979 = sadd.s32 %s978, %s976
        %s980 = smul.addr %s974, 4
        %s981 = sadd.s32 %s979, %s980
        %s982 = smul.addr %s981, 4
        %s983 = scalar_lea.vmem %s12, %s982
      $region88: #{llama_forward.7} parent=75 // pred_fallthru
        _
    $region76: #{llama_forward.7} parent=5 // pred_fallthru
      _
  $region6: #{llama_forward.7} parent=0 // loop_footer
    %s23 = sadd.s32 1, %s19
  $region7: #{llama_forward.7} parent=0 // loop_footer_branch
    %18 = sbr.rel target = $region3
  $region8: #{llama_forward.7} parent=0 // loop_exit
    _

// kernel: llama_forward.8
$region0: #{llama_forward.8}
  #allocation0 [shape = 'u32[]', space=smem, size = 0x4, offset = 0x4, fixed_abs, tag = 'smem constant byte address 0x4 - core index']
  #allocation1 [shape = 'u32[144,128]{1,0:T(1,128)}', space=vmem, size = 0x12000, scoped, tag = 'internal scratch']
  #allocation2 [shape = 'f32[8,1]{1,0:T(8,128)}', space=vmem, size = 0x1000, scoped, tag = 'scratch operand']
  #allocation3 [shape = 'f32[8,1]{1,0:T(8,128)}', space=vmem, size = 0x1000, scoped, tag = 'scratch operand']
  #allocation4 [shape = 'f32[8,8]{1,0:T(8,128)}', space=vmem, size = 0x1000, scoped, tag = 'scratch operand']
  #allocation5 [shape = 'f32[8,32]{1,0:T(8,128)}', space=vmem, size = 0x1000, scoped, tag = 'scratch operand']
  %s0 = inlined_call_operand.vmem [shape: f32[2,8,32], index: 0, kind: input, shape index: {}]
  %s1 = inlined_call_operand.vmem [shape: bf16[2,4,8,8], index: 1, kind: input, shape index: {}]
  %s2 = inlined_call_operand.vmem [shape: bf16[2,4,8,8], index: 2, kind: input, shape index: {}]
  %s3 = inlined_call_operand.vmem [shape: bf16[2,4,8,8], index: 3, kind: input, shape index: {}]
  %s4 = inlined_call_operand.vmem [shape: bf16[4,8,32], index: 4, kind: input, shape index: {}]
  %s5 = inlined_call_operand.vmem [shape: f32[1,32], index: 5, kind: input, shape index: {}]
  %s6 = inlined_call_operand.vmem [shape: f32[2,8,32], index: 6, kind: output, shape index: {}]
  %s7 = sld [smem:[#allocation0]]
  $region77: #{llama_forward.8} parent=0
    _
  %s9 = ssub.s32 1, %s7
  %s10 = scalar_select 0, %s9, %s7
  loop: start=0, step=1, limit=10
  $region2: #{llama_forward.8} parent=0 // loop_pre_header
    _
  $region3: #{llama_forward.8} parent=0 // loop_header
    %s12 = sphi 0, %s16
    %p13 = scmp.ge.s32.totalorder %s12, 10
    %s19 = sphi 0, %s45
    %s20 = sphi 0, %s41
    %s21 = sphi 0, %s37
    %s22 = sphi 0, %s33
    %s23 = sphi 0, %s19
    %s24 = sphi 0, %s20
    %s25 = sphi 0, %s21
    %s26 = sphi 0, %s22
    %s27 = sphi 0, %s23
    %s28 = sphi 0, %s24
    %s29 = sphi 0, %s25
    %s30 = sphi 0, %s26
    %s50 = sphi 0, %s52
    %s53 = sphi 0, %s50
    %s54 = sphi 0, %s53
    %s70 = sphi 0, %s54
    %s80 = sphi 0, %s82
    %s83 = sphi 0, %s80
    %s84 = sphi 0, %s83
    %s100 = sphi 0, %s84
    %s110 = sphi 0, %s112
    %s113 = sphi 0, %s110
    %s114 = sphi 0, %s113
    %s130 = sphi 0, %s114
    %s140 = sphi 0, %s142
    %s143 = sphi 0, %s140
    %s144 = sphi 0, %s143
    %s160 = sphi 0, %s144
    %s166 = sphi 0, %s168
    %s169 = sphi 0, %s166
    %s170 = sphi 0, %s169
    %s186 = sphi 0, %s170
    %s190 = sphi 0, %s190
    %s192 = sphi 0, %s190
    %s193 = sphi 0, %s192
    %s207 = sphi 0, %s193
    %s215 = sphi 0, %s217
    %s218 = sphi 0, %s215
    %s219 = sphi 0, %s218
    %s235 = sphi 0, %s219
  $region4: #{llama_forward.8} parent=0 // loop_header_branch
    %15 = sbr.rel (%p13) target = $region8
  $region5: #{llama_forward.8} parent=0 // loop_body
    %s17 = ssub.s32 %s12, 1
    %s18 = ssub.s32 %s12, 2
    %s31 = sadd.s32 1, %s22
    %p32 = scmp.ge.s32.totalorder %s31, 1
    %s33 = scalar_select %p32, 0, %s31
    %s34 = sadd.s32 1, %s21
    %s35 = scalar_select %p32, %s34, %s21
    %p36 = scmp.ge.s32.totalorder %s35, 4
    %s37 = scalar_select %p36, 0, %s35
    %s38 = sadd.s32 1, %s20
    %s39 = scalar_select %p36, %s38, %s20
    %p40 = scmp.ge.s32.totalorder %s39, 1
    %s41 = scalar_select %p40, 0, %s39
    %s42 = sadd.s32 1, %s19
    %s43 = scalar_select %p40, %s42, %s19
    %p44 = scmp.ge.s32.totalorder %s43, 2
    %s45 = scalar_select %p44, 0, %s43
    %s46 = ssub.s32 %s19, %s45
    %s47 = ssub.s32 %s20, %s41
    %s48 = sor.u32 %s46, %s47
    %p49 = scmp.eq.s32.totalorder %s48, 0
    %s51 = sadd.s32 %s50, 1
    %s52 = scalar_select %p49, %s50, %s51
    %p55 = pneg %p49
    %p56 = scmp.eq.s32.totalorder %s12, 7
    %p57 = por %p55, %p56
    %p58 = scmp.ne.s32.totalorder %s50, %s53
    %p59 = scmp.eq.s32.totalorder %s12, 0
    %p60 = por %p58, %p59
    %p61 = scmp.ne.s32.totalorder %s50, %s53
    %p62 = scmp.eq.s32.totalorder %s17, 7
    %p63 = por %p61, %p62
    %p64 = scmp.ne.s32.totalorder %s53, %s54
    %p65 = scmp.eq.s32.totalorder %s17, 0
    %p66 = por %p64, %p65
    %p67 = scmp.ne.s32.totalorder %s53, %s54
    %p68 = scmp.eq.s32.totalorder %s18, 7
    %p69 = por %p67, %p68
    %p71 = scmp.ne.s32.totalorder %s54, %s70
    %p72 = scmp.eq.s32.totalorder %s18, 0
    %p73 = por %p71, %p72
    %s74 = ssub.s32 %s19, %s45
    %s75 = ssub.s32 %s21, %s37
    %s76 = sor.u32 %s74, %s75
    %s77 = ssub.s32 %s20, %s41
    %s78 = sor.u32 %s76, %s77
    %p79 = scmp.eq.s32.totalorder %s78, 0
    %s81 = sadd.s32 %s80, 1
    %s82 = scalar_select %p79, %s80, %s81
    %p85 = pneg %p79
    %p86 = scmp.eq.s32.totalorder %s12, 7
    %p87 = por %p85, %p86
    %p88 = scmp.ne.s32.totalorder %s80, %s83
    %p89 = scmp.eq.s32.totalorder %s12, 0
    %p90 = por %p88, %p89
    %p91 = scmp.ne.s32.totalorder %s80, %s83
    %p92 = scmp.eq.s32.totalorder %s17, 7
    %p93 = por %p91, %p92
    %p94 = scmp.ne.s32.totalorder %s83, %s84
    %p95 = scmp.eq.s32.totalorder %s17, 0
    %p96 = por %p94, %p95
    %p97 = scmp.ne.s32.totalorder %s83, %s84
    %p98 = scmp.eq.s32.totalorder %s18, 7
    %p99 = por %p97, %p98
    %p101 = scmp.ne.s32.totalorder %s84, %s100
    %p102 = scmp.eq.s32.totalorder %s18, 0
    %p103 = por %p101, %p102
    %s104 = ssub.s32 %s19, %s45
    %s105 = ssub.s32 %s21, %s37
    %s106 = sor.u32 %s104, %s105
    %s107 = ssub.s32 %s22, %s33
    %s108 = sor.u32 %s106, %s107
    %p109 = scmp.eq.s32.totalorder %s108, 0
    %s111 = sadd.s32 %s110, 1
    %s112 = scalar_select %p109, %s110, %s111
    %p115 = pneg %p109
    %p116 = scmp.eq.s32.totalorder %s12, 7
    %p117 = por %p115, %p116
    %p118 = scmp.ne.s32.totalorder %s110, %s113
    %p119 = scmp.eq.s32.totalorder %s12, 0
    %p120 = por %p118, %p119
    %p121 = scmp.ne.s32.totalorder %s110, %s113
    %p122 = scmp.eq.s32.totalorder %s17, 7
    %p123 = por %p121, %p122
    %p124 = scmp.ne.s32.totalorder %s113, %s114
    %p125 = scmp.eq.s32.totalorder %s17, 0
    %p126 = por %p124, %p125
    %p127 = scmp.ne.s32.totalorder %s113, %s114
    %p128 = scmp.eq.s32.totalorder %s18, 7
    %p129 = por %p127, %p128
    %p131 = scmp.ne.s32.totalorder %s114, %s130
    %p132 = scmp.eq.s32.totalorder %s18, 0
    %p133 = por %p131, %p132
    %s134 = ssub.s32 %s19, %s45
    %s135 = ssub.s32 %s21, %s37
    %s136 = sor.u32 %s134, %s135
    %s137 = ssub.s32 %s22, %s33
    %s138 = sor.u32 %s136, %s137
    %p139 = scmp.eq.s32.totalorder %s138, 0
    %s141 = sadd.s32 %s140, 1
    %s142 = scalar_select %p139, %s140, %s141
    %p145 = pneg %p139
    %p146 = scmp.eq.s32.totalorder %s12, 7
    %p147 = por %p145, %p146
    %p148 = scmp.ne.s32.totalorder %s140, %s143
    %p149 = scmp.eq.s32.totalorder %s12, 0
    %p150 = por %p148, %p149
    %p151 = scmp.ne.s32.totalorder %s140, %s143
    %p152 = scmp.eq.s32.totalorder %s17, 7
    %p153 = por %p151, %p152
    %p154 = scmp.ne.s32.totalorder %s143, %s144
    %p155 = scmp.eq.s32.totalorder %s17, 0
    %p156 = por %p154, %p155
    %p157 = scmp.ne.s32.totalorder %s143, %s144
    %p158 = scmp.eq.s32.totalorder %s18, 7
    %p159 = por %p157, %p158
    %p161 = scmp.ne.s32.totalorder %s144, %s160
    %p162 = scmp.eq.s32.totalorder %s18, 0
    %p163 = por %p161, %p162
    %s164 = ssub.s32 %s21, %s37
    %p165 = scmp.eq.s32.totalorder %s164, 0
    %s167 = sadd.s32 %s166, 1
    %s168 = scalar_select %p165, %s166, %s167
    %p171 = pneg %p165
    %p172 = scmp.eq.s32.totalorder %s12, 7
    %p173 = por %p171, %p172
    %p174 = scmp.ne.s32.totalorder %s166, %s169
    %p175 = scmp.eq.s32.totalorder %s12, 0
    %p176 = por %p174, %p175
    %p177 = scmp.ne.s32.totalorder %s166, %s169
    %p178 = scmp.eq.s32.totalorder %s17, 7
    %p179 = por %p177, %p178
    %p180 = scmp.ne.s32.totalorder %s169, %s170
    %p181 = scmp.eq.s32.totalorder %s17, 0
    %p182 = por %p180, %p181
    %p183 = scmp.ne.s32.totalorder %s169, %s170
    %p184 = scmp.eq.s32.totalorder %s18, 7
    %p185 = por %p183, %p184
    %p187 = scmp.ne.s32.totalorder %s170, %s186
    %p188 = scmp.eq.s32.totalorder %s18, 0
    %p189 = por %p187, %p188
    %s191 = sadd.s32 %s190, 1
    %p194 = scmp.eq.s32.totalorder %s12, 7
    %p195 = scmp.ne.s32.totalorder %s190, %s192
    %p196 = scmp.eq.s32.totalorder %s12, 0
    %p197 = por %p195, %p196
    %p198 = scmp.ne.s32.totalorder %s190, %s192
    %p199 = scmp.eq.s32.totalorder %s17, 7
    %p200 = por %p198, %p199
    %p201 = scmp.ne.s32.totalorder %s192, %s193
    %p202 = scmp.eq.s32.totalorder %s17, 0
    %p203 = por %p201, %p202
    %p204 = scmp.ne.s32.totalorder %s192, %s193
    %p205 = scmp.eq.s32.totalorder %s18, 7
    %p206 = por %p204, %p205
    %p208 = scmp.ne.s32.totalorder %s193, %s207
    %p209 = scmp.eq.s32.totalorder %s18, 0
    %p210 = por %p208, %p209
    %s211 = ssub.s32 %s19, %s45
    %s212 = ssub.s32 %s20, %s41
    %s213 = sor.u32 %s211, %s212
    %p214 = scmp.eq.s32.totalorder %s213, 0
    %s216 = sadd.s32 %s215, 1
    %s217 = scalar_select %p214, %s215, %s216
    %p220 = pneg %p214
    %p221 = scmp.eq.s32.totalorder %s12, 7
    %p222 = por %p220, %p221
    %p223 = scmp.ne.s32.totalorder %s215, %s218
    %p224 = scmp.eq.s32.totalorder %s12, 0
    %p225 = por %p223, %p224
    %p226 = scmp.ne.s32.totalorder %s215, %s218
    %p227 = scmp.eq.s32.totalorder %s17, 7
    %p228 = por %p226, %p227
    %p229 = scmp.ne.s32.totalorder %s218, %s219
    %p230 = scmp.eq.s32.totalorder %s17, 0
    %p231 = por %p229, %p230
    %p232 = scmp.ne.s32.totalorder %s218, %s219
    %p233 = scmp.eq.s32.totalorder %s18, 7
    %p234 = por %p232, %p233
    %p236 = scmp.ne.s32.totalorder %s219, %s235
    %p237 = scmp.eq.s32.totalorder %s18, 0
    %p238 = por %p236, %p237
    %p239 = scmp.le.s32.totalorder 1, %s12
    %p240 = scmp.lt.s32.totalorder %s12, 9
    %p241 = pnand %p239, %p240
    %p242 = pneg %p241
    // Predicated region
    $region9: #{llama_forward.8} parent=5 // pred_check
      _
    $region10: #{llama_forward.8} parent=5 // pred_check_branch
      %244 = sbr.rel (%p241) target = $region12
    $region11: #{llama_forward.8} parent=5 // pred_region
      %s245 = ssub.s32 %s12, 1
      // Predicated region
      $region13: #{llama_forward.8} parent=11 // pred_check
        %p246 = pneg %p203
      $region14: #{llama_forward.8} parent=11 // pred_check_branch
        %248 = sbr.rel (%p246) target = $region16
      $region15: #{llama_forward.8} parent=11 // pred_region
        _
      $region16: #{llama_forward.8} parent=11 // pred_fallthru
        _
    $region12: #{llama_forward.8} parent=5 // pred_fallthru
      _
    %p249 = scmp.lt.s32.totalorder %s12, 8
    // Predicated region
    $region17: #{llama_forward.8} parent=5 // pred_check
      %p250 = pneg %p249
    $region18: #{llama_forward.8} parent=5 // pred_check_branch
      %252 = sbr.rel (%p250) target = $region20
    $region19: #{llama_forward.8} parent=5 // pred_region
      // Predicated region
      $region21: #{llama_forward.8} parent=19 // pred_check
        %p253 = pneg %p60
      $region22: #{llama_forward.8} parent=19 // pred_check_branch
        %255 = sbr.rel (%p253) target = $region24
      $region23: #{llama_forward.8} parent=19 // pred_region
        %p256 = scmp.lt.s32.totalorder %s19, 1
        %s257 = scalar_select %p256, %s19, 1
        %p258 = scmp.lt.s32.totalorder %s20, 0
        %s259 = scalar_select %p258, %s20, 0
        %s260 = sadd.s32 %s259, %s257
        %s261 = smul.addr %s260, 8
        %s262 = scalar_lea.vmem %s0, %s261
      $region24: #{llama_forward.8} parent=19 // pred_fallthru
        _
      // Predicated region
      $region25: #{llama_forward.8} parent=19 // pred_check
        %p263 = pneg %p90
      $region26: #{llama_forward.8} parent=19 // pred_check_branch
        %265 = sbr.rel (%p263) target = $region28
      $region27: #{llama_forward.8} parent=19 // pred_region
        %p266 = scmp.lt.s32.totalorder %s19, 1
        %s267 = scalar_select %p266, %s19, 1
        %p268 = scmp.lt.s32.totalorder %s21, 3
        %s269 = scalar_select %p268, %s21, 3
        %p270 = scmp.lt.s32.totalorder %s20, 0
        %s271 = scalar_select %p270, %s20, 0
        %s272 = sadd.s32 %s271, %s269
        %s273 = smul.addr %s267, 4
        %s274 = sadd.s32 %s272, %s273
        %s275 = smul.addr %s274, 4
        %s276 = scalar_lea.vmem %s1, %s275
      $region28: #{llama_forward.8} parent=19 // pred_fallthru
        _
      // Predicated region
      $region29: #{llama_forward.8} parent=19 // pred_check
        %p277 = pneg %p120
      $region30: #{llama_forward.8} parent=19 // pred_check_branch
        %279 = sbr.rel (%p277) target = $region32
      $region31: #{llama_forward.8} parent=19 // pred_region
        %p280 = scmp.lt.s32.totalorder %s19, 1
        %s281 = scalar_select %p280, %s19, 1
        %p282 = scmp.lt.s32.totalorder %s21, 3
        %s283 = scalar_select %p282, %s21, 3
        %p284 = scmp.lt.s32.totalorder %s22, 0
        %s285 = scalar_select %p284, %s22, 0
        %s286 = sadd.s32 %s285, %s283
        %s287 = smul.addr %s281, 4
        %s288 = sadd.s32 %s286, %s287
        %s289 = smul.addr %s288, 4
        %s290 = scalar_lea.vmem %s2, %s289
      $region32: #{llama_forward.8} parent=19 // pred_fallthru
        _
      // Predicated region
      $region33: #{llama_forward.8} parent=19 // pred_check
        %p291 = pneg %p150
      $region34: #{llama_forward.8} parent=19 // pred_check_branch
        %293 = sbr.rel (%p291) target = $region36
      $region35: #{llama_forward.8} parent=19 // pred_region
        %p294 = scmp.lt.s32.totalorder %s19, 1
        %s295 = scalar_select %p294, %s19, 1
        %p296 = scmp.lt.s32.totalorder %s21, 3
        %s297 = scalar_select %p296, %s21, 3
        %p298 = scmp.lt.s32.totalorder %s22, 0
        %s299 = scalar_select %p298, %s22, 0
        %s300 = sadd.s32 %s299, %s297
        %s301 = smul.addr %s295, 4
        %s302 = sadd.s32 %s300, %s301
        %s303 = smul.addr %s302, 4
        %s304 = scalar_lea.vmem %s3, %s303
      $region36: #{llama_forward.8} parent=19 // pred_fallthru
        _
      // Predicated region
      $region37: #{llama_forward.8} parent=19 // pred_check
        %p305 = pneg %p176
      $region38: #{llama_forward.8} parent=19 // pred_check_branch
        %307 = sbr.rel (%p305) target = $region40
      $region39: #{llama_forward.8} parent=19 // pred_region
        %p308 = scmp.lt.s32.totalorder %s21, 3
        %s309 = scalar_select %p308, %s21, 3
        %s310 = smul.addr %s309, 4
        %s311 = scalar_lea.vmem %s4, %s310
      $region40: #{llama_forward.8} parent=19 // pred_fallthru
        _
    $region20: #{llama_forward.8} parent=5 // pred_fallthru
      _
    %p312 = scmp.le.s32.totalorder 1, %s12
    %p313 = scmp.lt.s32.totalorder %s12, 9
    %p314 = pnand %p312, %p313
    %p315 = pneg %p314
    // Predicated region
    $region41: #{llama_forward.8} parent=5 // pred_check
      _
    $region42: #{llama_forward.8} parent=5 // pred_check_branch
      %317 = sbr.rel (%p314) target = $region44
    $region43: #{llama_forward.8} parent=5 // pred_region
      %s318 = ssub.s32 %s12, 1
      %p319 = scmp.lt.s32.totalorder %s23, 1
      %s320 = scalar_select %p319, %s23, 1
      %p321 = scmp.lt.s32.totalorder %s24, 0
      %s322 = scalar_select %p321, %s24, 0
      %s323 = sadd.s32 %s322, %s320
      %s324 = smul.addr %s323, 8
      %s325 = scalar_lea.vmem %s0, %s324
      %p326 = pneg %p66
      %p327 = pneg %p63
      %p328 = scmp.lt.s32.totalorder %s23, 1
      %s329 = scalar_select %p328, %s23, 1
      %p330 = scmp.lt.s32.totalorder %s25, 3
      %s331 = scalar_select %p330, %s25, 3
      %p332 = scmp.lt.s32.totalorder %s24, 0
      %s333 = scalar_select %p332, %s24, 0
      %s334 = sadd.s32 %s333, %s331
      %s335 = smul.addr %s329, 4
      %s336 = sadd.s32 %s334, %s335
      %s337 = smul.addr %s336, 4
      %s338 = scalar_lea.vmem %s1, %s337
      %p339 = pneg %p96
      %p340 = pneg %p93
      %p341 = scmp.lt.s32.totalorder %s23, 1
      %s342 = scalar_select %p341, %s23, 1
      %p343 = scmp.lt.s32.totalorder %s25, 3
      %s344 = scalar_select %p343, %s25, 3
      %p345 = scmp.lt.s32.totalorder %s26, 0
      %s346 = scalar_select %p345, %s26, 0
      %s347 = sadd.s32 %s346, %s344
      %s348 = smul.addr %s342, 4
      %s349 = sadd.s32 %s347, %s348
      %s350 = smul.addr %s349, 4
      %s351 = scalar_lea.vmem %s2, %s350
      %p352 = pneg %p126
      %p353 = pneg %p123
      %p354 = scmp.lt.s32.totalorder %s23, 1
      %s355 = scalar_select %p354, %s23, 1
      %p356 = scmp.lt.s32.totalorder %s25, 3
      %s357 = scalar_select %p356, %s25, 3
      %p358 = scmp.lt.s32.totalorder %s26, 0
      %s359 = scalar_select %p358, %s26, 0
      %s360 = sadd.s32 %s359, %s357
      %s361 = smul.addr %s355, 4
      %s362 = sadd.s32 %s360, %s361
      %s363 = smul.addr %s362, 4
      %s364 = scalar_lea.vmem %s3, %s363
      %p365 = pneg %p156
      %p366 = pneg %p153
      %p367 = scmp.lt.s32.totalorder %s25, 3
      %s368 = scalar_select %p367, %s25, 3
      %s369 = smul.addr %s368, 4
      %s370 = scalar_lea.vmem %s4, %s369
      %p371 = pneg %p182
      %p372 = pneg %p179
      %p373 = pneg %p203
      %p374 = pneg %p200
      %p375 = pneg %p231
      %p376 = pneg %p228
      %p377 = scmp.lt.s32.totalorder %s23, 1
      %s378 = scalar_select %p377, %s23, 1
      %p379 = scmp.lt.s32.totalorder %s24, 0
      %s380 = scalar_select %p379, %s24, 0
      %s381 = sadd.s32 %s380, %s378
      %s382 = smul.addr %s381, 8
      %s383 = scalar_lea.vmem %s6, %s382
      %p384 = scmp.lt.s32.totalorder %s23, 1
      %s385 = scalar_select %p384, %s23, 1
      %p386 = scmp.lt.s32.totalorder %s24, 0
      %s387 = scalar_select %p386, %s24, 0
      %s388 = sadd.s32 %s387, %s385
      %s389 = smul.addr %s388, 8
      %s390 = scalar_lea.vmem %s0, %s389
      %p391 = scmp.lt.s32.totalorder %s23, 1
      %s392 = scalar_select %p391, %s23, 1
      %p393 = scmp.lt.s32.totalorder %s25, 3
      %s394 = scalar_select %p393, %s25, 3
      %p395 = scmp.lt.s32.totalorder %s24, 0
      %s396 = scalar_select %p395, %s24, 0
      %s397 = sadd.s32 %s396, %s394
      %s398 = smul.addr %s392, 4
      %s399 = sadd.s32 %s397, %s398
      %s400 = smul.addr %s399, 4
      %s401 = scalar_lea.vmem %s1, %s400
      %p402 = scmp.lt.s32.totalorder %s23, 1
      %s403 = scalar_select %p402, %s23, 1
      %p404 = scmp.lt.s32.totalorder %s25, 3
      %s405 = scalar_select %p404, %s25, 3
      %p406 = scmp.lt.s32.totalorder %s26, 0
      %s407 = scalar_select %p406, %s26, 0
      %s408 = sadd.s32 %s407, %s405
      %s409 = smul.addr %s403, 4
      %s410 = sadd.s32 %s408, %s409
      %s411 = smul.addr %s410, 4
      %s412 = scalar_lea.vmem %s2, %s411
      %p413 = scmp.lt.s32.totalorder %s23, 1
      %s414 = scalar_select %p413, %s23, 1
      %p415 = scmp.lt.s32.totalorder %s25, 3
      %s416 = scalar_select %p415, %s25, 3
      %p417 = scmp.lt.s32.totalorder %s26, 0
      %s418 = scalar_select %p417, %s26, 0
      %s419 = sadd.s32 %s418, %s416
      %s420 = smul.addr %s414, 4
      %s421 = sadd.s32 %s419, %s420
      %s422 = smul.addr %s421, 4
      %s423 = scalar_lea.vmem %s3, %s422
      %p424 = scmp.lt.s32.totalorder %s25, 3
      %s425 = scalar_select %p424, %s25, 3
      %s426 = smul.addr %s425, 4
      %s427 = scalar_lea.vmem %s4, %s426
      %p428 = scmp.lt.s32.totalorder %s23, 1
      %s429 = scalar_select %p428, %s23, 1
      %p430 = scmp.lt.s32.totalorder %s24, 0
      %s431 = scalar_select %p430, %s24, 0
      %s432 = sadd.s32 %s431, %s429
      %s433 = smul.addr %s432, 8
      %s434 = scalar_lea.vmem %s6, %s433
      %p436 = scmp.eq.s32.totalorder %s25, 0
      %p437 = scmp.eq.s32.totalorder %s26, 0
      %p438 = pnand %p436, %p437
      %p439 = pneg %p438
      // Predicated region
      $region45: #{llama_forward.8} parent=43 // pred_check
        _
      $region46: #{llama_forward.8} parent=43 // pred_check_branch
        %441 = sbr.rel (%p438) target = $region48
      $region47: #{llama_forward.8} parent=43 // pred_region
        %v442 = vld [vmem:[%s390] sm:$0xff]
        %v443 = vld [vmem:[%s5] sm:$0x1]
        %v445 = vlaneseq
        %v446 = vshrl.u32 %v445, 7
        %v447 = vsub.s32 0, %v446
        %v448 = vrot.slane %v443, %v447
        %v450 = vadd.f32 %v442, %v448
        %vm451 = vcmask 261120
        %452 = vst.msk [vmem:[#allocation5] sm:$0xff] %vm451, %v450
      $region48: #{llama_forward.8} parent=43 // pred_fallthru
        _
      // Predicated region
      $region49: #{llama_forward.8} parent=43 // pred_check
        %p453 = pneg %p437
      $region50: #{llama_forward.8} parent=43 // pred_check_branch
        %455 = sbr.rel (%p453) target = $region52
      $region51: #{llama_forward.8} parent=43 // pred_region
        %vm456 = vcmask 7168
        %457 = vst.msk [vmem:[#allocation2] sm:$0xff] %vm456, -inf
        %458 = vst.msk [vmem:[#allocation3] sm:$0xff] %vm456, 0.0
        %vm459 = vcmask 64512
        %460 = vst.msk [vmem:[#allocation4] sm:$0xff] %vm459, 0.0
      $region52: #{llama_forward.8} parent=43 // pred_fallthru
        _
      %s461 = smul.u32 %s26, 8
      %s462 = smul.u32 %s24, 8
      %s463 = sadd.s32 %s462, 7
      %p464 = scmp.le.s32.totalorder %s461, %s463
      // Predicated region
      $region53: #{llama_forward.8} parent=43 // pred_check
        %p465 = pneg %p464
      $region54: #{llama_forward.8} parent=43 // pred_check_branch
        %467 = sbr.rel (%p465) target = $region56
      $region55: #{llama_forward.8} parent=43 // pred_region
        %v468 = vld [vmem:[%s401] sm:$0xf]
        %v469 = vld [vmem:[%s412] sm:$0xf]
        %v470 = vld [vmem:[%s423] sm:$0xf]
        %vm471 = vcmask 64512
        %v473 = vsel %vm471, %v468, 0
        %v476 = vsel %vm471, %v469, 0
        %478 = vmatprep.subr.bf16.mxu0 0
        %479 = vmatpush1.bf16.xpose.msra.mxu0 %v476
        %480 = vmatprep.subr.bf16.mxu0 0
        %481 = vmatpush1.bf16.xpose.msra.mxu0 0
        %482 = vmatprep.subr.bf16.mxu0 0
        %483 = vmatpush1.bf16.xpose.msra.mxu0 0
        %484 = vmatprep.subr.bf16.mxu0 0
        %485 = vmatpush1.bf16.xpose.msra.mxu0 0
        %486 = vmatprep.subr.bf16.mxu0 0
        %487 = vmatpush1.bf16.xpose.msra.mxu0 0
        %488 = vmatprep.subr.bf16.mxu0 0
        %489 = vmatpush1.bf16.xpose.msra.mxu0 0
        %490 = vmatprep.subr.bf16.mxu0 0
        %491 = vmatpush1.bf16.xpose.msra.mxu0 0
        %492 = vmatprep.subr.bf16.mxu0 0
        %493 = vmatpush1.bf16.xpose.msra.mxu0 0
        %494 = vmatprep.subr.bf16.mxu0 0
        %495 = vmatpush1.bf16.xpose.msra.mxu0 0
        %496 = vmatprep.subr.bf16.mxu0 0
        %497 = vmatpush1.bf16.xpose.msra.mxu0 0
        %498 = vmatprep.subr.bf16.mxu0 0
        %499 = vmatpush1.bf16.xpose.msra.mxu0 0
        %500 = vmatprep.subr.bf16.mxu0 0
        %501 = vmatpush1.bf16.xpose.msra.mxu0 0
        %502 = vmatprep.subr.bf16.mxu0 0
        %503 = vmatpush1.bf16.xpose.msra.mxu0 0
        %504 = vmatprep.subr.bf16.mxu0 0
        %505 = vmatpush1.bf16.xpose.msra.mxu0 0
        %506 = vmatprep.subr.bf16.mxu0 0
        %507 = vmatpush1.bf16.xpose.msra.mxu0 0
        %508 = vmatprep.subr.bf16.mxu0 0
        %509 = vmatpush1.bf16.xpose.msra.mxu0 0
        %510 = vmatprep.mubr.bf16.mxu0 0
        %511 = vmatmul.mubr.bf16.gmra.mrb[0].mxu0 %v473
        %v512 = vpop.f32.mrb[0].mxu0
        %v513 = vadd.f32 0.0, %v512
        %v514 = vpop.f32.mrb[0].mxu0
        %v515 = vpop.f32.mrb[0].mxu0
        %v516 = vpop.f32.mrb[0].mxu0
        %517 = vdwg.mxu0
        %v518 = vmul.f32 %v513, 0.35355338
        %v519 = vlaneseq
        %v520 = vshrl.u32 %v519, 7
        %v521 = vstv %s462
        %v522 = vadd.s32 %v521, %v520
        %v523 = vlaneseq
        %v524 = vand.u32 %v523, 127
        %v525 = vstv %s461
        %v526 = vadd.s32 %v525, %v524
        %vm527 = vcmp.le.s32.totalorder %v526, %v522
        %v528 = vsel %vm527, %v518, -inf
        %v529 = vld [vmem:[#allocation2] sm:$0xff]
        %v530 = vsel %vm471, %v528, -inf
        %531 = vmax.xlane.f32.xlu0 %v530
        %v532 = vpop.xlane.xlu0 %531
        %v533 = vmax.f32 %v529, %v532
        %v534 = vsub.f32 %v529, %v533
        %v535 = vmul.f32 %v534, 1.442695
        %v536 = vpow.pop %v535
        %538 = vset.pattern.permute.xlu0 0
        %539 = vperm.xlu0 %538, %v533
        %v540 = vpop.permute.xlu0 %539
        %v542 = vsub.f32 %v528, %v540
        %v543 = vmul.f32 %v542, 1.442695
        %v544 = vpow.pop %v543
        %v545 = vld [vmem:[#allocation3] sm:$0xff]
        %v546 = vmul.f32 %v536, %v545
        %v547 = vsel %vm471, %v544, 0.0
        %548 = vadd.xlane.f32.xlu0 %v547
        %v549 = vpop.xlane.xlu0 %548
        %v550 = vadd.f32 %v546, %v549
        %vm551 = vcmask 7168
        %552 = vst.msk [vmem:[#allocation3] sm:$0xff] %vm551, %v550
        %v553 = vld [vmem:[#allocation4] sm:$0xff]
        %555 = vset.pattern.permute.xlu0 0
        %556 = vperm.xlu0 %555, %v536
        %v557 = vpop.permute.xlu0 %556
        %v559 = vmul.f32 %v557, %v553
        %v560 = vpack.c.bf16 %v544, %v544
        %v562 = vsel %vm471, %v560, 0
        %vm564 = vcmask 1043456
        %v566 = vsel %vm564, %v470, 0
        %568 = vmatprep.subr.bf16.mxu0 0
        %569 = vmatpush1.bf16.msra.mxu0 %v566
        %570 = vmatprep.subr.bf16.mxu0 0
        %571 = vmatpush1.bf16.msra.mxu0 0
        %572 = vmatprep.subr.bf16.mxu0 0
        %573 = vmatpush1.bf16.msra.mxu0 0
        %574 = vmatprep.subr.bf16.mxu0 0
        %575 = vmatpush1.bf16.msra.mxu0 0
        %576 = vmatprep.subr.bf16.mxu0 0
        %577 = vmatpush1.bf16.msra.mxu0 0
        %578 = vmatprep.subr.bf16.mxu0 0
        %579 = vmatpush1.bf16.msra.mxu0 0
        %580 = vmatprep.subr.bf16.mxu0 0
        %581 = vmatpush1.bf16.msra.mxu0 0
        %582 = vmatprep.subr.bf16.mxu0 0
        %583 = vmatpush1.bf16.msra.mxu0 0
        %584 = vmatprep.subr.bf16.mxu0 0
        %585 = vmatpush1.bf16.msra.mxu0 0
        %586 = vmatprep.subr.bf16.mxu0 0
        %587 = vmatpush1.bf16.msra.mxu0 0
        %588 = vmatprep.subr.bf16.mxu0 0
        %589 = vmatpush1.bf16.msra.mxu0 0
        %590 = vmatprep.subr.bf16.mxu0 0
        %591 = vmatpush1.bf16.msra.mxu0 0
        %592 = vmatprep.subr.bf16.mxu0 0
        %593 = vmatpush1.bf16.msra.mxu0 0
        %594 = vmatprep.subr.bf16.mxu0 0
        %595 = vmatpush1.bf16.msra.mxu0 0
        %596 = vmatprep.subr.bf16.mxu0 0
        %597 = vmatpush1.bf16.msra.mxu0 0
        %598 = vmatprep.subr.bf16.mxu0 0
        %599 = vmatpush1.bf16.msra.mxu0 0
        %600 = vmatprep.mubr.bf16.mxu0 0
        %601 = vmatmul.mubr.bf16.gmra.mrb[0].mxu0 %v562
        %v602 = vpop.f32.mrb[0].mxu0
        %v603 = vadd.f32 0.0, %v602
        %v604 = vpop.f32.mrb[0].mxu0
        %v605 = vpop.f32.mrb[0].mxu0
        %v606 = vpop.f32.mrb[0].mxu0
        %607 = vdwg.mxu0
        %v608 = vadd.f32 %v559, %v603
        %609 = vst.msk [vmem:[#allocation4] sm:$0xff] %vm471, %v608
        %610 = vst.msk [vmem:[#allocation2] sm:$0xff] %vm551, %v533
      $region56: #{llama_forward.8} parent=43 // pred_fallthru
        _
      // Predicated region
      $region57: #{llama_forward.8} parent=43 // pred_check
        %p611 = pneg %p437
      $region58: #{llama_forward.8} parent=43 // pred_check_branch
        %613 = sbr.rel (%p611) target = $region60
      $region59: #{llama_forward.8} parent=43 // pred_region
        %v614 = vld [vmem:[#allocation4] sm:$0xff]
        %v615 = vld [vmem:[#allocation3] sm:$0xff]
        %v616 = vrcp.pop %v615
        %618 = vset.pattern.permute.xlu0 0
        %619 = vperm.xlu0 %618, %v616
        %v620 = vpop.permute.xlu0 %619
        %v622 = vmul.f32 %v614, %v620
        %v623 = vld [vmem:[#allocation5] sm:$0xff]
        %v624 = vpack.c.bf16 %v622, %v622
        %v625 = vld [vmem:[%s427] sm:$0xf]
        %vm626 = vcmask 64512
        %v628 = vsel %vm626, %v624, 0
        %vm630 = vcmask 1043456
        %v632 = vsel %vm630, %v625, 0
        %634 = vmatprep.subr.bf16.mxu0 0
        %635 = vmatpush1.bf16.msra.mxu0 %v632
        %636 = vmatprep.subr.bf16.mxu0 0
        %637 = vmatpush1.bf16.msra.mxu0 0
        %638 = vmatprep.subr.bf16.mxu0 0
        %639 = vmatpush1.bf16.msra.mxu0 0
        %640 = vmatprep.subr.bf16.mxu0 0
        %641 = vmatpush1.bf16.msra.mxu0 0
        %642 = vmatprep.subr.bf16.mxu0 0
        %643 = vmatpush1.bf16.msra.mxu0 0
        %644 = vmatprep.subr.bf16.mxu0 0
        %645 = vmatpush1.bf16.msra.mxu0 0
        %646 = vmatprep.subr.bf16.mxu0 0
        %647 = vmatpush1.bf16.msra.mxu0 0
        %648 = vmatprep.subr.bf16.mxu0 0
        %649 = vmatpush1.bf16.msra.mxu0 0
        %650 = vmatprep.subr.bf16.mxu0 0
        %651 = vmatpush1.bf16.msra.mxu0 0
        %652 = vmatprep.subr.bf16.mxu0 0
        %653 = vmatpush1.bf16.msra.mxu0 0
        %654 = vmatprep.subr.bf16.mxu0 0
        %655 = vmatpush1.bf16.msra.mxu0 0
        %656 = vmatprep.subr.bf16.mxu0 0
        %657 = vmatpush1.bf16.msra.mxu0 0
        %658 = vmatprep.subr.bf16.mxu0 0
        %659 = vmatpush1.bf16.msra.mxu0 0
        %660 = vmatprep.subr.bf16.mxu0 0
        %661 = vmatpush1.bf16.msra.mxu0 0
        %662 = vmatprep.subr.bf16.mxu0 0
        %663 = vmatpush1.bf16.msra.mxu0 0
        %664 = vmatprep.subr.bf16.mxu0 0
        %665 = vmatpush1.bf16.msra.mxu0 0
        %666 = vmatprep.mubr.bf16.mxu0 0
        %667 = vmatmul.mubr.bf16.gmra.mrb[0].mxu0 %v628
        %v668 = vpop.f32.mrb[0].mxu0
        %v669 = vadd.f32 0.0, %v668
        %v670 = vpop.f32.mrb[0].mxu0
        %v671 = vpop.f32.mrb[0].mxu0
        %v672 = vpop.f32.mrb[0].mxu0
        %673 = vdwg.mxu0
        %v674 = vadd.f32 %v623, %v669
        %vm675 = vcmask 261120
        %676 = vst.msk [vmem:[#allocation5] sm:$0xff] %vm675, %v674
      $region60: #{llama_forward.8} parent=43 // pred_fallthru
        _
      %p677 = scmp.eq.s32.totalorder %s25, 3
      %p678 = pnand %p677, %p437
      %p679 = pneg %p678
      // Predicated region
      $region61: #{llama_forward.8} parent=43 // pred_check
        _
      $region62: #{llama_forward.8} parent=43 // pred_check_branch
        %681 = sbr.rel (%p678) target = $region64
      $region63: #{llama_forward.8} parent=43 // pred_region
        %v682 = vld [vmem:[#allocation5] sm:$0xff]
        %vm683 = vcmask 261120
        %684 = vst.msk [vmem:[%s434] sm:$0xff] %vm683, %v682
      $region64: #{llama_forward.8} parent=43 // pred_fallthru
        _
      %p685 = scmp.lt.s32.totalorder %s23, 1
      %s686 = scalar_select %p685, %s23, 1
      %p687 = scmp.lt.s32.totalorder %s24, 0
      %s688 = scalar_select %p687, %s24, 0
      %s689 = sadd.s32 %s688, %s686
      %s690 = smul.addr %s689, 8
      %s691 = scalar_lea.vmem %s6, %s690
      // Predicated region
      $region65: #{llama_forward.8} parent=43 // pred_check
        %p692 = pneg %p228
      $region66: #{llama_forward.8} parent=43 // pred_check_branch
        %694 = sbr.rel (%p692) target = $region68
      $region67: #{llama_forward.8} parent=43 // pred_region
        _
      $region68: #{llama_forward.8} parent=43 // pred_fallthru
        _
    $region44: #{llama_forward.8} parent=5 // pred_fallthru
      _
    %p695 = scmp.le.s32.totalorder 2, %s12
    // Predicated region
    $region69: #{llama_forward.8} parent=5 // pred_check
      %p696 = pneg %p695
    $region70: #{llama_forward.8} parent=5 // pred_check_branch
      %698 = sbr.rel (%p696) target = $region72
    $region71: #{llama_forward.8} parent=5 // pred_region
      %s699 = ssub.s32 %s12, 2
      // Predicated region
      $region73: #{llama_forward.8} parent=71 // pred_check
        %p700 = pneg %p234
      $region74: #{llama_forward.8} parent=71 // pred_check_branch
        %702 = sbr.rel (%p700) target = $region76
      $region75: #{llama_forward.8} parent=71 // pred_region
        %p703 = scmp.lt.s32.totalorder %s27, 1
        %s704 = scalar_select %p703, %s27, 1
        %p705 = scmp.lt.s32.totalorder %s28, 0
        %s706 = scalar_select %p705, %s28, 0
        %s707 = sadd.s32 %s706, %s704
        %s708 = smul.addr %s707, 8
        %s709 = scalar_lea.vmem %s6, %s708
      $region76: #{llama_forward.8} parent=71 // pred_fallthru
        _
    $region72: #{llama_forward.8} parent=5 // pred_fallthru
      _
  $region6: #{llama_forward.8} parent=0 // loop_footer
    %s16 = sadd.s32 1, %s12
  $region7: #{llama_forward.8} parent=0 // loop_footer_branch
    %11 = sbr.rel target = $region3
  $region8: #{llama_forward.8} parent=0 // loop_exit
    _

// kernel: llama_forward.9
$region0: #{llama_forward.9}
  #allocation0 [shape = 'u32[]', space=smem, size = 0x4, offset = 0x4, fixed_abs, tag = 'smem constant byte address 0x4 - core index']
  #allocation1 [shape = 'u32[144,128]{1,0:T(1,128)}', space=vmem, size = 0x12000, scoped, tag = 'internal scratch']
  #allocation2 [shape = 'f32[16,32]{1,0:T(8,128)}', space=vmem, size = 0x2000, scoped, tag = 'scratch operand']
  #allocation3 [shape = 'bf16[16,32]{1,0:T(16,128)(2,1)}', space=vmem, size = 0x1000, scoped, tag = 'scratch operand']
  %s0 = inlined_call_operand.vmem [shape: f32[16,32], index: 0, kind: input, shape index: {}]
  %s1 = inlined_call_operand.vmem [shape: f32[1,32], index: 1, kind: input, shape index: {}]
  %s2 = inlined_call_operand.vmem [shape: bf16[32,128], index: 2, kind: input, shape index: {}]
  %s3 = inlined_call_operand.vmem [shape: f32[1,128], index: 3, kind: input, shape index: {}]
  %s4 = inlined_call_operand.vmem [shape: bf16[32,128], index: 4, kind: input, shape index: {}]
  %s5 = inlined_call_operand.vmem [shape: f32[1,128], index: 5, kind: input, shape index: {}]
  %s6 = inlined_call_operand.vmem [shape: bf16[128,32], index: 6, kind: input, shape index: {}]
  %s7 = inlined_call_operand.vmem [shape: f32[1,32], index: 7, kind: input, shape index: {}]
  %s8 = inlined_call_operand.vmem [shape: f32[16,32], index: 8, kind: output, shape index: {}]
  %s9 = sld [smem:[#allocation0]]
  $region50: #{llama_forward.9} parent=0
    _
  %s11 = ssub.s32 1, %s9
  %s12 = scalar_select 0, %s11, %s9
  // Predicated region
  $region2: #{llama_forward.9} parent=0 // pred_check
    _
  $region3: #{llama_forward.9} parent=0 // pred_check_branch
    %14 = sbr.rel (0) target = $region5
  $region4: #{llama_forward.9} parent=0 // pred_region
    _
  $region5: #{llama_forward.9} parent=0 // pred_fallthru
    _
  // Predicated region
  $region6: #{llama_forward.9} parent=0 // pred_check
    _
  $region7: #{llama_forward.9} parent=0 // pred_check_branch
    %16 = sbr.rel (0) target = $region9
  $region8: #{llama_forward.9} parent=0 // pred_region
    _
  $region9: #{llama_forward.9} parent=0 // pred_fallthru
    _
  // Predicated region
  $region10: #{llama_forward.9} parent=0 // pred_check
    _
  $region11: #{llama_forward.9} parent=0 // pred_check_branch
    %18 = sbr.rel (0) target = $region13
  $region12: #{llama_forward.9} parent=0 // pred_region
    _
  $region13: #{llama_forward.9} parent=0 // pred_fallthru
    _
  // Predicated region
  $region14: #{llama_forward.9} parent=0 // pred_check
    _
  $region15: #{llama_forward.9} parent=0 // pred_check_branch
    %20 = sbr.rel (0) target = $region17
  $region16: #{llama_forward.9} parent=0 // pred_region
    _
  $region17: #{llama_forward.9} parent=0 // pred_fallthru
    _
  // Predicated region
  $region18: #{llama_forward.9} parent=0 // pred_check
    _
  $region19: #{llama_forward.9} parent=0 // pred_check_branch
    %22 = sbr.rel (0) target = $region21
  $region20: #{llama_forward.9} parent=0 // pred_region
    _
  $region21: #{llama_forward.9} parent=0 // pred_fallthru
    _
  // Predicated region
  $region22: #{llama_forward.9} parent=0 // pred_check
    _
  $region23: #{llama_forward.9} parent=0 // pred_check_branch
    %24 = sbr.rel (0) target = $region25
  $region24: #{llama_forward.9} parent=0 // pred_region
    _
  $region25: #{llama_forward.9} parent=0 // pred_fallthru
    _
  // Predicated region
  $region26: #{llama_forward.9} parent=0 // pred_check
    _
  $region27: #{llama_forward.9} parent=0 // pred_check_branch
    %26 = sbr.rel (0) target = $region29
  $region28: #{llama_forward.9} parent=0 // pred_region
    _
  $region29: #{llama_forward.9} parent=0 // pred_fallthru
    _
  // Predicated region
  $region30: #{llama_forward.9} parent=0 // pred_check
    _
  $region31: #{llama_forward.9} parent=0 // pred_check_branch
    %28 = sbr.rel (0) target = $region33
  $region32: #{llama_forward.9} parent=0 // pred_region
    _
  $region33: #{llama_forward.9} parent=0 // pred_fallthru
    _
  %p30 = scmp.eq.s32.totalorder 0, 0
  // Predicated region
  $region34: #{llama_forward.9} parent=0 // pred_check
    %p31 = pneg %p30
  $region35: #{llama_forward.9} parent=0 // pred_check_branch
    %33 = sbr.rel (%p31) target = $region37
  $region36: #{llama_forward.9} parent=0 // pred_region
    %v34 = vld [vmem:[%s0] sm:$0xff]
    %v35 = vld [vmem:[%s0 + $0x8] sm:$0xff]
    %v36 = vmul.f32 %v34, %v34
    %v37 = vmul.f32 %v35, %v35
    %vm38 = vcmask 261120
    %v39 = vsel %vm38, %v36, 0.0
    %40 = vadd.xlane.f32.xlu0 %v39
    %v41 = vpop.xlane.xlu0 %40
    %v42 = vsel %vm38, %v37, 0.0
    %43 = vadd.xlane.f32.xlu0 %v42
    %v44 = vpop.xlane.xlu0 %43
    %v45 = vrcp.pop 32.0
    %v46 = vmul.f32 %v41, %v45
    %v47 = vmul.f32 %v44, %v45
    %v48 = vld [vmem:[%s1] sm:$0x1]
    %v50 = vlaneseq
    %v51 = vshrl.u32 %v50, 7
    %v52 = vsub.s32 0, %v51
    %v53 = vrot.slane %v48, %v52
    %v55 = vmul.f32 %v53, %v34
    %v56 = vmul.f32 %v53, %v35
    %v57 = vadd.f32 %v46, 1e-05
    %v58 = vadd.f32 %v47, 1e-05
    %v59 = vrsqrt.pop %v57
    %v60 = vrsqrt.pop %v58
    %v61 = vmul.f32 %v55, %v59
    %v62 = vmul.f32 %v56, %v60
    %v63 = vpack.c.bf16 %v62, %v61
    %64 = vst.msk [vmem:[#allocation3] sm:$0xff] %vm38, %v63
    %v65 = vld [vmem:[%s7] sm:$0x1]
    %v67 = vlaneseq
    %v68 = vshrl.u32 %v67, 7
    %v69 = vsub.s32 0, %v68
    %v70 = vrot.slane %v65, %v69
    %v72 = vadd.f32 %v34, %v70
    %v73 = vadd.f32 %v35, %v70
    %74 = vst.msk [vmem:[#allocation2] sm:$0xff] %vm38, %v72
    %75 = vst.msk [vmem:[#allocation2 + $0x8] sm:$0xff] %vm38, %v73
  $region37: #{llama_forward.9} parent=0 // pred_fallthru
    _
  %v76 = vld [vmem:[#allocation3] sm:$0xff]
  %v77 = vld [vmem:[%s2] sm:$0xf]
  %v78 = vld [vmem:[%s2 + $0x4] sm:$0xf]
  %v79 = vld [vmem:[%s2 + $0x8] sm:$0xf]
  %v80 = vld [vmem:[%s2 + $0xc] sm:$0xf]
  %v81 = vld [vmem:[%s3] sm:$0x1]
  %v83 = vlaneseq
  %v84 = vshrl.u32 %v83, 7
  %v85 = vsub.s32 0, %v84
  %v86 = vrot.slane %v81, %v85
  %v92 = vunpack.c.l.b16 %v77
  %v93 = vunpack.c.l.b16 %v78
  %v94 = vunpack.c.l.b16 %v79
  %v95 = vunpack.c.l.b16 %v80
  %v96 = vpack.c.b16 %v93, %v92
  %v97 = vpack.c.b16 %v95, %v94
  %vm100 = vcmask 261120
  %v102 = vsel %vm100, %v76, 0
  %104 = vmatprep.subr.bf16.mxu0 0
  %105 = vmatpush1.bf16.msra.mxu0 %v96
  %106 = vmatprep.subr.bf16.mxu0 0
  %107 = vmatpush1.bf16.msra.mxu0 %v97
  %108 = vmatprep.subr.bf16.mxu0 0
  %109 = vmatpush1.bf16.msra.mxu0 0
  %110 = vmatprep.subr.bf16.mxu0 0
  %111 = vmatpush1.bf16.msra.mxu0 0
  %112 = vmatprep.subr.bf16.mxu0 0
  %113 = vmatpush1.bf16.msra.mxu0 0
  %114 = vmatprep.subr.bf16.mxu0 0
  %115 = vmatpush1.bf16.msra.mxu0 0
  %116 = vmatprep.subr.bf16.mxu0 0
  %117 = vmatpush1.bf16.msra.mxu0 0
  %118 = vmatprep.subr.bf16.mxu0 0
  %119 = vmatpush1.bf16.msra.mxu0 0
  %120 = vmatprep.subr.bf16.mxu0 0
  %121 = vmatpush1.bf16.msra.mxu0 0
  %122 = vmatprep.subr.bf16.mxu0 0
  %123 = vmatpush1.bf16.msra.mxu0 0
  %124 = vmatprep.subr.bf16.mxu0 0
  %125 = vmatpush1.bf16.msra.mxu0 0
  %126 = vmatprep.subr.bf16.mxu0 0
  %127 = vmatpush1.bf16.msra.mxu0 0
  %128 = vmatprep.subr.bf16.mxu0 0
  %129 = vmatpush1.bf16.msra.mxu0 0
  %130 = vmatprep.subr.bf16.mxu0 0
  %131 = vmatpush1.bf16.msra.mxu0 0
  %132 = vmatprep.subr.bf16.mxu0 0
  %133 = vmatpush1.bf16.msra.mxu0 0
  %134 = vmatprep.subr.bf16.mxu0 0
  %135 = vmatpush1.bf16.msra.mxu0 0
  %136 = vmatprep.mubr.bf16.mxu0 0
  %137 = vmatmul.mubr.bf16.gmra.mrb[0].mxu0 %v102
  %v138 = vpop.f32.mrb[0].mxu0
  %v139 = vadd.f32 %v86, %v138
  %v140 = vpop.f32.mrb[0].mxu0
  %v141 = vpop.f32.mrb[0].mxu0
  %v142 = vadd.f32 %v86, %v141
  %v143 = vpop.f32.mrb[0].mxu0
  %144 = vdwg.mxu0
  %v145 = vld [vmem:[%s4] sm:$0xf]
  %v146 = vld [vmem:[%s4 + $0x4] sm:$0xf]
  %v147 = vld [vmem:[%s4 + $0x8] sm:$0xf]
  %v148 = vld [vmem:[%s4 + $0xc] sm:$0xf]
  %v149 = vld [vmem:[%s5] sm:$0x1]
  %v151 = vlaneseq
  %v152 = vshrl.u32 %v151, 7
  %v153 = vsub.s32 0, %v152
  %v154 = vrot.slane %v149, %v153
  %v160 = vunpack.c.l.b16 %v145
  %v161 = vunpack.c.l.b16 %v146
  %v162 = vunpack.c.l.b16 %v147
  %v163 = vunpack.c.l.b16 %v148
  %v164 = vpack.c.b16 %v161, %v160
  %v165 = vpack.c.b16 %v163, %v162
  %168 = vmatprep.subr.bf16.mxu0 0
  %169 = vmatpush1.bf16.msra.mxu0 %v164
  %170 = vmatprep.subr.bf16.mxu0 0
  %171 = vmatpush1.bf16.msra.mxu0 %v165
  %172 = vmatprep.subr.bf16.mxu0 0
  %173 = vmatpush1.bf16.msra.mxu0 0
  %174 = vmatprep.subr.bf16.mxu0 0
  %175 = vmatpush1.bf16.msra.mxu0 0
  %176 = vmatprep.subr.bf16.mxu0 0
  %177 = vmatpush1.bf16.msra.mxu0 0
  %178 = vmatprep.subr.bf16.mxu0 0
  %179 = vmatpush1.bf16.msra.mxu0 0
  %180 = vmatprep.subr.bf16.mxu0 0
  %181 = vmatpush1.bf16.msra.mxu0 0
  %182 = vmatprep.subr.bf16.mxu0 0
  %183 = vmatpush1.bf16.msra.mxu0 0
  %184 = vmatprep.subr.bf16.mxu0 0
  %185 = vmatpush1.bf16.msra.mxu0 0
  %186 = vmatprep.subr.bf16.mxu0 0
  %187 = vmatpush1.bf16.msra.mxu0 0
  %188 = vmatprep.subr.bf16.mxu0 0
  %189 = vmatpush1.bf16.msra.mxu0 0
  %190 = vmatprep.subr.bf16.mxu0 0
  %191 = vmatpush1.bf16.msra.mxu0 0
  %192 = vmatprep.subr.bf16.mxu0 0
  %193 = vmatpush1.bf16.msra.mxu0 0
  %194 = vmatprep.subr.bf16.mxu0 0
  %195 = vmatpush1.bf16.msra.mxu0 0
  %196 = vmatprep.subr.bf16.mxu0 0
  %197 = vmatpush1.bf16.msra.mxu0 0
  %198 = vmatprep.subr.bf16.mxu0 0
  %199 = vmatpush1.bf16.msra.mxu0 0
  %200 = vmatprep.mubr.bf16.mxu0 0
  %201 = vmatmul.mubr.bf16.gmra.mrb[0].mxu0 %v102
  %v202 = vpop.f32.mrb[0].mxu0
  %v203 = vadd.f32 %v154, %v202
  %v204 = vpop.f32.mrb[0].mxu0
  %v205 = vpop.f32.mrb[0].mxu0
  %v206 = vadd.f32 %v154, %v205
  %v207 = vpop.f32.mrb[0].mxu0
  %208 = vdwg.mxu0
  %v209 = vsub.f32 0.0, %v139
  %v210 = vsub.f32 0.0, %v142
  %v211 = vmul.f32 %v209, 1.442695
  %v212 = vpow.pop %v211
  %v213 = vmul.f32 %v210, 1.442695
  %v214 = vpow.pop %v213
  %v215 = vadd.f32 %v212, 1.0
  %v216 = vadd.f32 %v214, 1.0
  %v217 = vrcp.pop %v215
  %v218 = vrcp.pop %v216
  %v219 = vmul.f32 %v139, %v217
  %v220 = vmul.f32 %v142, %v218
  %v221 = vld [vmem:[#allocation2] sm:$0xff]
  %v222 = vld [vmem:[#allocation2 + $0x8] sm:$0xff]
  %v223 = vmul.f32 %v219, %v203
  %v224 = vmul.f32 %v220, %v206
  %v225 = vpack.c.bf16 %v224, %v223
  %v226 = vld [vmem:[%s6] sm:$0xf]
  %v227 = vld [vmem:[%s6 + $0x4] sm:$0xf]
  %v228 = vld [vmem:[%s6 + $0x8] sm:$0xf]
  %v229 = vld [vmem:[%s6 + $0xc] sm:$0xf]
  %v230 = vld [vmem:[%s6 + $0x10] sm:$0xf]
  %v231 = vld [vmem:[%s6 + $0x14] sm:$0xf]
  %v232 = vld [vmem:[%s6 + $0x18] sm:$0xf]
  %v233 = vld [vmem:[%s6 + $0x1c] sm:$0xf]
  %v234 = vld [vmem:[%s6 + $0x20] sm:$0xf]
  %v235 = vld [vmem:[%s6 + $0x24] sm:$0xf]
  %v236 = vld [vmem:[%s6 + $0x28] sm:$0xf]
  %v237 = vld [vmem:[%s6 + $0x2c] sm:$0xf]
  %v238 = vld [vmem:[%s6 + $0x30] sm:$0xf]
  %v239 = vld [vmem:[%s6 + $0x34] sm:$0xf]
  %v240 = vld [vmem:[%s6 + $0x38] sm:$0xf]
  %v241 = vld [vmem:[%s6 + $0x3c] sm:$0xf]
  %v258 = vunpack.c.l.b16 %v226
  %v259 = vunpack.c.l.b16 %v227
  %v260 = vunpack.c.l.b16 %v228
  %v261 = vunpack.c.l.b16 %v229
  %v262 = vunpack.c.l.b16 %v230
  %v263 = vunpack.c.l.b16 %v231
  %v264 = vunpack.c.l.b16 %v232
  %v265 = vunpack.c.l.b16 %v233
  %v266 = vunpack.c.l.b16 %v234
  %v267 = vunpack.c.l.b16 %v235
  %v268 = vunpack.c.l.b16 %v236
  %v269 = vunpack.c.l.b16 %v237
  %v270 = vunpack.c.l.b16 %v238
  %v271 = vunpack.c.l.b16 %v239
  %v272 = vunpack.c.l.b16 %v240
  %v273 = vunpack.c.l.b16 %v241
  %v274 = vpack.c.b16 %v259, %v258
  %v275 = vpack.c.b16 %v261, %v260
  %v276 = vpack.c.b16 %v263, %v262
  %v277 = vpack.c.b16 %v265, %v264
  %v278 = vpack.c.b16 %v267, %v266
  %v279 = vpack.c.b16 %v269, %v268
  %v280 = vpack.c.b16 %v271, %v270
  %v281 = vpack.c.b16 %v273, %v272
  %290 = vmatprep.subr.bf16.mxu0 0
  %291 = vmatpush1.bf16.msra.mxu0 %v274
  %292 = vmatprep.subr.bf16.mxu0 0
  %293 = vmatpush1.bf16.msra.mxu0 %v275
  %294 = vmatprep.subr.bf16.mxu0 0
  %295 = vmatpush1.bf16.msra.mxu0 %v276
  %296 = vmatprep.subr.bf16.mxu0 0
  %297 = vmatpush1.bf16.msra.mxu0 %v277
  %298 = vmatprep.subr.bf16.mxu0 0
  %299 = vmatpush1.bf16.msra.mxu0 %v278
  %300 = vmatprep.subr.bf16.mxu0 0
  %301 = vmatpush1.bf16.msra.mxu0 %v279
  %302 = vmatprep.subr.bf16.mxu0 0
  %303 = vmatpush1.bf16.msra.mxu0 %v280
  %304 = vmatprep.subr.bf16.mxu0 0
  %305 = vmatpush1.bf16.msra.mxu0 %v281
  %306 = vmatprep.subr.bf16.mxu0 0
  %307 = vmatpush1.bf16.msra.mxu0 0
  %308 = vmatprep.subr.bf16.mxu0 0
  %309 = vmatpush1.bf16.msra.mxu0 0
  %310 = vmatprep.subr.bf16.mxu0 0
  %311 = vmatpush1.bf16.msra.mxu0 0
  %312 = vmatprep.subr.bf16.mxu0 0
  %313 = vmatpush1.bf16.msra.mxu0 0
  %314 = vmatprep.subr.bf16.mxu0 0
  %315 = vmatpush1.bf16.msra.mxu0 0
  %316 = vmatprep.subr.bf16.mxu0 0
  %317 = vmatpush1.bf16.msra.mxu0 0
  %318 = vmatprep.subr.bf16.mxu0 0
  %319 = vmatpush1.bf16.msra.mxu0 0
  %320 = vmatprep.subr.bf16.mxu0 0
  %321 = vmatpush1.bf16.msra.mxu0 0
  %322 = vmatprep.mubr.bf16.mxu0 0
  %323 = vmatmul.mubr.bf16.gmra.mrb[0].mxu0 %v225
  %v324 = vpop.f32.mrb[0].mxu0
  %v325 = vadd.f32 0.0, %v324
  %v326 = vpop.f32.mrb[0].mxu0
  %v327 = vpop.f32.mrb[0].mxu0
  %v328 = vadd.f32 0.0, %v327
  %v329 = vpop.f32.mrb[0].mxu0
  %330 = vdwg.mxu0
  %v331 = vadd.f32 %v221, %v325
  %v332 = vadd.f32 %v222, %v328
  %333 = vst.msk [vmem:[#allocation2] sm:$0xff] %vm100, %v331
  %334 = vst.msk [vmem:[#allocation2 + $0x8] sm:$0xff] %vm100, %v332
  // Predicated region
  $region38: #{llama_forward.9} parent=0 // pred_check
    %p335 = pneg %p30
  $region39: #{llama_forward.9} parent=0 // pred_check_branch
    %337 = sbr.rel (%p335) target = $region41
  $region40: #{llama_forward.9} parent=0 // pred_region
    %v338 = vld [vmem:[#allocation2] sm:$0xff]
    %v339 = vld [vmem:[#allocation2 + $0x8] sm:$0xff]
    %340 = vst.msk [vmem:[%s8] sm:$0xff] %vm100, %v338
    %341 = vst.msk [vmem:[%s8 + $0x8] sm:$0xff] %vm100, %v339
  $region41: #{llama_forward.9} parent=0 // pred_fallthru
    _
  // Predicated region
  $region42: #{llama_forward.9} parent=0 // pred_check
    _
  $region43: #{llama_forward.9} parent=0 // pred_check_branch
    %343 = sbr.rel (0) target = $region45
  $region44: #{llama_forward.9} parent=0 // pred_region
    _
  $region45: #{llama_forward.9} parent=0 // pred_fallthru
    _
  // Predicated region
  $region46: #{llama_forward.9} parent=0 // pred_check
    _
  $region47: #{llama_forward.9} parent=0 // pred_check_branch
    %345 = sbr.rel (0) target = $region49
  $region48: #{llama_forward.9} parent=0 // pred_region
    _
  $region49: #{llama_forward.9} parent=0 // pred_fallthru
    _

</llo_original>
